<compile_context>
chip_gen: v7x
topology: tpu7x:2x2x1
jax: 0.10.0
libtpu: 0.0.40
codegen_flags: <defaults>
</compile_context>

<pallas_src>
import math
import numpy as np
import jax
import jax.numpy as jnp
from jax.experimental import pallas as pl
from jax.experimental.pallas import tpu as pltpu


# ----------------------------------------------------------------------------
# Pallas kernel: lane-parallel over pixels, pure-VPU FMA accumulation over F.
# ----------------------------------------------------------------------------
def _adjacent2d_kernel(x_ref, w_ref, b_ref, o_ref):
    # x_ref: (B, F, Pt)      gathered patches, pixel tile on lanes
    # w_ref: (F, out_c, Pt)  natural weight layout, pixel tile on lanes
    # b_ref: (out_c, Pt)     natural bias layout
    # o_ref: (B, out_c, Pt)  lane-dense output
    B, F, Pt = x_ref.shape

    # Lane chunk small enough that the accumulator, one weight row and the
    # broadcast activation row all live in vregs (no spilled intermediate).
    if Pt % 512 == 0:
        pc = 512
    elif Pt % 256 == 0:
        pc = 256
    elif Pt % 128 == 0:
        pc = 128
    else:
        pc = Pt

    for c in range(Pt // pc):
        lo = c * pc
        bias_c = b_ref[:, lo:lo + pc]                    # (out_c, pc)
        for b in range(B):                               # B tiny & static
            acc = bias_c                                 # init with bias
            for f in range(F):                           # FMA accumulation
                xf = x_ref[b, f, lo:lo + pc]             # (pc,)
                wf = w_ref[f, :, lo:lo + pc]             # (out_c, pc)
                acc = acc + xf[None, :] * wf
            o_ref[b, :, lo:lo + pc] = acc


# ----------------------------------------------------------------------------
# Tile sizing helpers.
# ----------------------------------------------------------------------------
def _ceil8(n):
    return ((n + 7) // 8) * 8


def _choose_pixel_tile(P, per_pixel_bytes, budget_bytes, min_tiles):
    """Largest 128-multiple divisor of P whose double-buffered blocks fit the
    budget while leaving at least `min_tiles` grid steps (P % 128 == 0)."""
    for mult in range(P // 128, 0, -1):
        pt = mult * 128
        if P % pt:
            continue
        if (P // pt) < min_tiles:
            continue
        if 2 * pt * per_pixel_bytes <= budget_bytes:
            return pt
    return 128


def adjacent2d_pallas(x_g, w_r, b_r):
    """x_g: (B, F, P); w_r: (F, out_c, P); b_r: (out_c, P) -> (B, out_c, P).
    P must be a multiple of 128 (wrapper pads)."""
    B, F, P = x_g.shape
    out_c = w_r.shape[1]
    assert P % 128 == 0

    # Honest per-pixel VMEM footprint of all blocks, with (8,128) sublane
    # padding of the second-to-last dims (out_c=4 pads to 8, F pads to mult 8).
    per_pixel_bytes = 4 * (B * _ceil8(F)          # x block
                           + F * _ceil8(out_c)    # w block
                           + _ceil8(out_c)        # bias block
                           + B * _ceil8(out_c))   # out block

    # Chip-conditional double-buffered tile budget.
    try:
        info = pltpu.get_tpu_info()
        vmem_cap = int(getattr(info, "vmem_capacity_bytes", 64 << 20))
    except Exception:  # pragma: no cover - conservative fallback
        vmem_cap = 64 << 20
    budget = min(28 << 20, max(8 << 20, vmem_cap // 4))

    # Keep >=2 (>=4) pixel tiles for pipelining / v7x megacore sharding, but
    # never shrink a tile below ~512 lanes just to split.
    if P >= 4096:
        min_tiles = 4
    elif P >= 1024:
        min_tiles = 2
    else:
        min_tiles = 1

    Pt = _choose_pixel_tile(P, per_pixel_bytes, budget, min_tiles)
    grid = (P // Pt,)

    block_bytes = Pt * per_pixel_bytes
    vmem_limit = int(2 * block_bytes * 1.2) + (2 << 20)
    vmem_limit = max(vmem_limit, 8 << 20)
    vmem_limit = min(vmem_limit, max(vmem_cap - (8 << 20), 8 << 20))

    cost = pl.CostEstimate(
        flops=2 * B * F * out_c * P,
        transcendentals=0,
        bytes_accessed=4 * P * (B * F + F * out_c + out_c + B * out_c),
    )

    return pl.pallas_call(
        _adjacent2d_kernel,
        out_shape=jax.ShapeDtypeStruct((B, out_c, P), jnp.float32),
        grid=grid,
        in_specs=[
            pl.BlockSpec((B, F, Pt), lambda p: (0, 0, p)),
            pl.BlockSpec((F, out_c, Pt), lambda p: (0, 0, p)),
            pl.BlockSpec((out_c, Pt), lambda p: (0, p)),
        ],
        out_specs=pl.BlockSpec((B, out_c, Pt), lambda p: (0, 0, p)),
        compiler_params=pltpu.CompilerParams(
            dimension_semantics=("parallel",),   # shards pixel tiles on v7x's 2 TCs
            vmem_limit_bytes=vmem_limit,
        ),
        cost_estimate=cost,
    )(x_g, w_r, b_r)


# ----------------------------------------------------------------------------
# Adjacent2d forward wrapper.
# ----------------------------------------------------------------------------
def adjacent2d_forward(x, weights, bias, output_dim, kernel_size):
    """
    x:       (B, in_c, in_h, in_w)            NCHW, float32
    weights: (in_c, ker_h, ker_w, out_c, out_h, out_w)
    bias:    (out_c, out_h, out_w)
    returns  (B, out_c, out_h, out_w)
    """
    B, in_c, in_h, in_w = x.shape
    out_c, out_h, out_w = output_dim
    ker_h, ker_w = kernel_size
    F = in_c * ker_h * ker_w
    P = out_h * out_w
    P_pad = ((P + 127) // 128) * 128

    # Static per-output-pixel patch start offsets (same Python round()
    # semantics as the PyTorch reference).  Guard the out==1 degenerate case.
    in_step_x = 0.0 if out_w == 1 else float(in_w - ker_w) / (float(out_w) - 1.0)
    in_step_y = 0.0 if out_h == 1 else float(in_h - ker_h) / (float(out_h) - 1.0)
    starts_x = np.array([round(float(xx) * in_step_x) for xx in range(out_w)],
                        dtype=np.int32)
    starts_y = np.array([round(float(yy) * in_step_y) for yy in range(out_h)],
                        dtype=np.int32)

    # Patch gather with index arrays ordered (ker, out): the gather result is
    # already (B, in_c, ker_h, ker_w, out_h, out_w) — no separate 6-D transpose.
    # TODO(synk): fuse this non-uniform-offset gather into the Pallas kernel
    # (scalar-prefetched starts + per-row DMAs) so x_g (ker_h*ker_w x larger
    # than x) never round-trips HBM.
    rows = np.arange(ker_h, dtype=np.int32)[:, None] + starts_y[None, :]  # (ker_h, out_h)
    cols = np.arange(ker_w, dtype=np.int32)[:, None] + starts_x[None, :]  # (ker_w, out_w)
    idx_h = rows[:, None, :, None]          # (ker_h, 1, out_h, 1)
    idx_w = cols[None, :, None, :]          # (1, ker_w, 1, out_w)
    patches = x[:, :, idx_h, idx_w]         # (B, in_c, ker_h, ker_w, out_h, out_w)
    x_g = patches.reshape(B, F, P)

    # Natural parameter layouts — no transposes needed with P on the lane axis.
    w_r = weights.reshape(F, out_c, P)
    b_r = bias.reshape(out_c, P)

    # Pad the pixel axis up to a multiple of 128 so every block is lane-dense.
    if P_pad != P:
        pad = P_pad - P
        x_g = jnp.pad(x_g, ((0, 0), (0, 0), (0, pad)))
        w_r = jnp.pad(w_r, ((0, 0), (0, 0), (0, pad)))
        b_r = jnp.pad(b_r, ((0, 0), (0, pad)))

    # Hot path: per-pixel contraction + bias in Pallas (VPU, lane-dense).
    res = adjacent2d_pallas(x_g, w_r, b_r)            # (B, out_c, P_pad)

    # Drop padding; (B, out_c, P) -> (B, out_c, out_h, out_w) is a pure reshape.
    return res[:, :, :P].reshape(B, out_c, out_h, out_w)


# ----------------------------------------------------------------------------
# Pure reference (same math, no Pallas) for a correctness sanity check.
# ----------------------------------------------------------------------------
def adjacent2d_forward_ref(x, weights, bias, output_dim, kernel_size):
    B, in_c, in_h, in_w = x.shape
    out_c, out_h, out_w = output_dim
    ker_h, ker_w = kernel_size
    F = in_c * ker_h * ker_w
    P = out_h * out_w
    in_step_x = 0.0 if out_w == 1 else float(in_w - ker_w) / (float(out_w) - 1.0)
    in_step_y = 0.0 if out_h == 1 else float(in_h - ker_h) / (float(out_h) - 1.0)
    starts_x = [round(float(xx) * in_step_x) for xx in range(out_w)]
    starts_y = [round(float(yy) * in_step_y) for yy in range(out_h)]
    w_np = np.asarray(weights).reshape(F, out_c, P)
    b_np = np.asarray(bias)
    out = np.zeros((B, out_c, out_h, out_w), dtype=np.float32)
    for yy in range(out_h):
        for xx in range(out_w):
            p = yy * out_w + xx
            sy, sx = starts_y[yy], starts_x[xx]
            patch = x[:, :, sy:sy + ker_h, sx:sx + ker_w].reshape(B, F)
            out[:, :, yy, xx] = patch @ w_np[:, :, p] + b_np[:, yy, xx]
    return out


if __name__ == "__main__":
    # Small shapes consistent with the module's asserts
    # (in_w/ker_w <= out_w, in_h/ker_h <= out_h).
    B = 2
    input_dim = (4, 16, 16)          # (in_c, in_h, in_w)
    output_dim = (4, 8, 8)           # (out_c, out_h, out_w)
    kernel_size = (4, 4)             # (ker_h, ker_w)

    in_c, in_h, in_w = input_dim
    out_c, out_h, out_w = output_dim
    ker_h, ker_w = kernel_size

    key = jax.random.PRNGKey(0)
    kx, kw, kb = jax.random.split(key, 3)

    x = jax.random.normal(kx, (B, in_c, in_h, in_w), dtype=jnp.float32)

    # Deterministic parameter init mimicking reset_parameters():
    # kaiming_uniform_(a=sqrt(5)) -> uniform(-bound_w, bound_w), PyTorch fan_in
    # convention for a 6-D parameter: size(1) * prod(size(2:)).
    fan_in = ker_h * (ker_w * out_c * out_h * out_w)
    gain = math.sqrt(2.0 / (1.0 + 5.0))
    bound_w = gain * math.sqrt(3.0 / fan_in)
    weights = jax.random.uniform(
        kw, (in_c, ker_h, ker_w, out_c, out_h, out_w),
        minval=-bound_w, maxval=bound_w, dtype=jnp.float32)
    bound_b = 1.0 / math.sqrt(fan_in)
    bias = jax.random.uniform(
        kb, (out_c, out_h, out_w),
        minval=-bound_b, maxval=bound_b, dtype=jnp.float32)

    out = adjacent2d_forward(x, weights, bias, output_dim, kernel_size)
    out = jax.block_until_ready(out)

    ref = adjacent2d_forward_ref(np.asarray(x), weights, bias,
                                 output_dim, kernel_size)
    np.testing.assert_allclose(np.asarray(out), ref, rtol=1e-5, atol=1e-5)

    assert out.shape == (B, out_c, out_h, out_w)
    print("KERNEL_OK")
</pallas_src>

<mosaic_0001>
module attributes {stable_mosaic.version = 11 : i64} {
  func.func @_adjacent2d_kernel(%arg0: i32, %arg1: memref<2x64x128xf32, #tpu.memory_space<vmem>>, %arg2: memref<64x4x128xf32, #tpu.memory_space<vmem>>, %arg3: memref<4x128xf32, #tpu.memory_space<vmem>>, %arg4: memref<2x4x128xf32, #tpu.memory_space<vmem>>) attributes {dimension_semantics = [#tpu.dimension_semantics<parallel>], iteration_bounds = array<i64: 1>, scalar_prefetch = 0 : i64, scratch_operands = 0 : i64, tpu.core_type = #tpu.core_type<tc>, window_params = [{transform_indices = @transform_0, window_bounds = array<i64: 2, 64, 128>}, {transform_indices = @transform_1, window_bounds = array<i64: 64, 4, 128>}, {transform_indices = @transform_2, window_bounds = array<i64: 4, 128>}, {transform_indices = @transform_3, window_bounds = array<i64: 2, 4, 128>}]} {
    %c0 = arith.constant 0 : index
    %c0_0 = arith.constant 0 : index
    %0 = vector.load %arg3[%c0, %c0_0] : memref<4x128xf32, #tpu.memory_space<vmem>>, vector<4x128xf32>
    %c0_1 = arith.constant 0 : index
    %c0_2 = arith.constant 0 : index
    %c0_3 = arith.constant 0 : index
    %1 = vector.load %arg1[%c0_1, %c0_2, %c0_3] : memref<2x64x128xf32, #tpu.memory_space<vmem>>, vector<1x1x128xf32>
    %2 = vector.shape_cast %1 : vector<1x1x128xf32> to vector<128xf32>
    %c0_4 = arith.constant 0 : index
    %c0_5 = arith.constant 0 : index
    %c0_6 = arith.constant 0 : index
    %3 = vector.load %arg2[%c0_4, %c0_5, %c0_6] : memref<64x4x128xf32, #tpu.memory_space<vmem>>, vector<1x4x128xf32>
    %4 = vector.shape_cast %3 : vector<1x4x128xf32> to vector<4x128xf32>
    %5 = vector.shape_cast %2 : vector<128xf32> to vector<1x128xf32>
    %6 = vector.broadcast %5 : vector<1x128xf32> to vector<4x128xf32>
    %7 = arith.mulf %6, %4 : vector<4x128xf32>
    %8 = arith.addf %0, %7 : vector<4x128xf32>
    %c0_7 = arith.constant 0 : index
    %c1 = arith.constant 1 : index
    %c0_8 = arith.constant 0 : index
    %9 = vector.load %arg1[%c0_7, %c1, %c0_8] : memref<2x64x128xf32, #tpu.memory_space<vmem>>, vector<1x1x128xf32>
    %10 = vector.shape_cast %9 : vector<1x1x128xf32> to vector<128xf32>
    %c1_9 = arith.constant 1 : index
    %c0_10 = arith.constant 0 : index
    %c0_11 = arith.constant 0 : index
    %11 = vector.load %arg2[%c1_9, %c0_10, %c0_11] : memref<64x4x128xf32, #tpu.memory_space<vmem>>, vector<1x4x128xf32>
    %12 = vector.shape_cast %11 : vector<1x4x128xf32> to vector<4x128xf32>
    %13 = vector.shape_cast %10 : vector<128xf32> to vector<1x128xf32>
    %14 = vector.broadcast %13 : vector<1x128xf32> to vector<4x128xf32>
    %15 = arith.mulf %14, %12 : vector<4x128xf32>
    %16 = arith.addf %8, %15 : vector<4x128xf32>
    %c0_12 = arith.constant 0 : index
    %c2 = arith.constant 2 : index
    %c0_13 = arith.constant 0 : index
    %17 = vector.load %arg1[%c0_12, %c2, %c0_13] : memref<2x64x128xf32, #tpu.memory_space<vmem>>, vector<1x1x128xf32>
    %18 = vector.shape_cast %17 : vector<1x1x128xf32> to vector<128xf32>
    %c2_14 = arith.constant 2 : index
    %c0_15 = arith.constant 0 : index
    %c0_16 = arith.constant 0 : index
    %19 = vector.load %arg2[%c2_14, %c0_15, %c0_16] : memref<64x4x128xf32, #tpu.memory_space<vmem>>, vector<1x4x128xf32>
    %20 = vector.shape_cast %19 : vector<1x4x128xf32> to vector<4x128xf32>
    %21 = vector.shape_cast %18 : vector<128xf32> to vector<1x128xf32>
    %22 = vector.broadcast %21 : vector<1x128xf32> to vector<4x128xf32>
    %23 = arith.mulf %22, %20 : vector<4x128xf32>
    %24 = arith.addf %16, %23 : vector<4x128xf32>
    %c0_17 = arith.constant 0 : index
    %c3 = arith.constant 3 : index
    %c0_18 = arith.constant 0 : index
    %25 = vector.load %arg1[%c0_17, %c3, %c0_18] : memref<2x64x128xf32, #tpu.memory_space<vmem>>, vector<1x1x128xf32>
    %26 = vector.shape_cast %25 : vector<1x1x128xf32> to vector<128xf32>
    %c3_19 = arith.constant 3 : index
    %c0_20 = arith.constant 0 : index
    %c0_21 = arith.constant 0 : index
    %27 = vector.load %arg2[%c3_19, %c0_20, %c0_21] : memref<64x4x128xf32, #tpu.memory_space<vmem>>, vector<1x4x128xf32>
    %28 = vector.shape_cast %27 : vector<1x4x128xf32> to vector<4x128xf32>
    %29 = vector.shape_cast %26 : vector<128xf32> to vector<1x128xf32>
    %30 = vector.broadcast %29 : vector<1x128xf32> to vector<4x128xf32>
    %31 = arith.mulf %30, %28 : vector<4x128xf32>
    %32 = arith.addf %24, %31 : vector<4x128xf32>
    %c0_22 = arith.constant 0 : index
    %c4 = arith.constant 4 : index
    %c0_23 = arith.constant 0 : index
    %33 = vector.load %arg1[%c0_22, %c4, %c0_23] : memref<2x64x128xf32, #tpu.memory_space<vmem>>, vector<1x1x128xf32>
    %34 = vector.shape_cast %33 : vector<1x1x128xf32> to vector<128xf32>
    %c4_24 = arith.constant 4 : index
    %c0_25 = arith.constant 0 : index
    %c0_26 = arith.constant 0 : index
    %35 = vector.load %arg2[%c4_24, %c0_25, %c0_26] : memref<64x4x128xf32, #tpu.memory_space<vmem>>, vector<1x4x128xf32>
    %36 = vector.shape_cast %35 : vector<1x4x128xf32> to vector<4x128xf32>
    %37 = vector.shape_cast %34 : vector<128xf32> to vector<1x128xf32>
    %38 = vector.broadcast %37 : vector<1x128xf32> to vector<4x128xf32>
    %39 = arith.mulf %38, %36 : vector<4x128xf32>
    %40 = arith.addf %32, %39 : vector<4x128xf32>
    %c0_27 = arith.constant 0 : index
    %c5 = arith.constant 5 : index
    %c0_28 = arith.constant 0 : index
    %41 = vector.load %arg1[%c0_27, %c5, %c0_28] : memref<2x64x128xf32, #tpu.memory_space<vmem>>, vector<1x1x128xf32>
    %42 = vector.shape_cast %41 : vector<1x1x128xf32> to vector<128xf32>
    %c5_29 = arith.constant 5 : index
    %c0_30 = arith.constant 0 : index
    %c0_31 = arith.constant 0 : index
    %43 = vector.load %arg2[%c5_29, %c0_30, %c0_31] : memref<64x4x128xf32, #tpu.memory_space<vmem>>, vector<1x4x128xf32>
    %44 = vector.shape_cast %43 : vector<1x4x128xf32> to vector<4x128xf32>
    %45 = vector.shape_cast %42 : vector<128xf32> to vector<1x128xf32>
    %46 = vector.broadcast %45 : vector<1x128xf32> to vector<4x128xf32>
    %47 = arith.mulf %46, %44 : vector<4x128xf32>
    %48 = arith.addf %40, %47 : vector<4x128xf32>
    %c0_32 = arith.constant 0 : index
    %c6 = arith.constant 6 : index
    %c0_33 = arith.constant 0 : index
    %49 = vector.load %arg1[%c0_32, %c6, %c0_33] : memref<2x64x128xf32, #tpu.memory_space<vmem>>, vector<1x1x128xf32>
    %50 = vector.shape_cast %49 : vector<1x1x128xf32> to vector<128xf32>
    %c6_34 = arith.constant 6 : index
    %c0_35 = arith.constant 0 : index
    %c0_36 = arith.constant 0 : index
    %51 = vector.load %arg2[%c6_34, %c0_35, %c0_36] : memref<64x4x128xf32, #tpu.memory_space<vmem>>, vector<1x4x128xf32>
    %52 = vector.shape_cast %51 : vector<1x4x128xf32> to vector<4x128xf32>
    %53 = vector.shape_cast %50 : vector<128xf32> to vector<1x128xf32>
    %54 = vector.broadcast %53 : vector<1x128xf32> to vector<4x128xf32>
    %55 = arith.mulf %54, %52 : vector<4x128xf32>
    %56 = arith.addf %48, %55 : vector<4x128xf32>
    %c0_37 = arith.constant 0 : index
    %c7 = arith.constant 7 : index
    %c0_38 = arith.constant 0 : index
    %57 = vector.load %arg1[%c0_37, %c7, %c0_38] : memref<2x64x128xf32, #tpu.memory_space<vmem>>, vector<1x1x128xf32>
    %58 = vector.shape_cast %57 : vector<1x1x128xf32> to vector<128xf32>
    %c7_39 = arith.constant 7 : index
    %c0_40 = arith.constant 0 : index
    %c0_41 = arith.constant 0 : index
    %59 = vector.load %arg2[%c7_39, %c0_40, %c0_41] : memref<64x4x128xf32, #tpu.memory_space<vmem>>, vector<1x4x128xf32>
    %60 = vector.shape_cast %59 : vector<1x4x128xf32> to vector<4x128xf32>
    %61 = vector.shape_cast %58 : vector<128xf32> to vector<1x128xf32>
    %62 = vector.broadcast %61 : vector<1x128xf32> to vector<4x128xf32>
    %63 = arith.mulf %62, %60 : vector<4x128xf32>
    %64 = arith.addf %56, %63 : vector<4x128xf32>
    %c0_42 = arith.constant 0 : index
    %c8 = arith.constant 8 : index
    %c0_43 = arith.constant 0 : index
    %65 = vector.load %arg1[%c0_42, %c8, %c0_43] : memref<2x64x128xf32, #tpu.memory_space<vmem>>, vector<1x1x128xf32>
    %66 = vector.shape_cast %65 : vector<1x1x128xf32> to vector<128xf32>
    %c8_44 = arith.constant 8 : index
    %c0_45 = arith.constant 0 : index
    %c0_46 = arith.constant 0 : index
    %67 = vector.load %arg2[%c8_44, %c0_45, %c0_46] : memref<64x4x128xf32, #tpu.memory_space<vmem>>, vector<1x4x128xf32>
    %68 = vector.shape_cast %67 : vector<1x4x128xf32> to vector<4x128xf32>
    %69 = vector.shape_cast %66 : vector<128xf32> to vector<1x128xf32>
    %70 = vector.broadcast %69 : vector<1x128xf32> to vector<4x128xf32>
    %71 = arith.mulf %70, %68 : vector<4x128xf32>
    %72 = arith.addf %64, %71 : vector<4x128xf32>
    %c0_47 = arith.constant 0 : index
    %c9 = arith.constant 9 : index
    %c0_48 = arith.constant 0 : index
    %73 = vector.load %arg1[%c0_47, %c9, %c0_48] : memref<2x64x128xf32, #tpu.memory_space<vmem>>, vector<1x1x128xf32>
    %74 = vector.shape_cast %73 : vector<1x1x128xf32> to vector<128xf32>
    %c9_49 = arith.constant 9 : index
    %c0_50 = arith.constant 0 : index
    %c0_51 = arith.constant 0 : index
    %75 = vector.load %arg2[%c9_49, %c0_50, %c0_51] : memref<64x4x128xf32, #tpu.memory_space<vmem>>, vector<1x4x128xf32>
    %76 = vector.shape_cast %75 : vector<1x4x128xf32> to vector<4x128xf32>
    %77 = vector.shape_cast %74 : vector<128xf32> to vector<1x128xf32>
    %78 = vector.broadcast %77 : vector<1x128xf32> to vector<4x128xf32>
    %79 = arith.mulf %78, %76 : vector<4x128xf32>
    %80 = arith.addf %72, %79 : vector<4x128xf32>
    %c0_52 = arith.constant 0 : index
    %c10 = arith.constant 10 : index
    %c0_53 = arith.constant 0 : index
    %81 = vector.load %arg1[%c0_52, %c10, %c0_53] : memref<2x64x128xf32, #tpu.memory_space<vmem>>, vector<1x1x128xf32>
    %82 = vector.shape_cast %81 : vector<1x1x128xf32> to vector<128xf32>
    %c10_54 = arith.constant 10 : index
    %c0_55 = arith.constant 0 : index
    %c0_56 = arith.constant 0 : index
    %83 = vector.load %arg2[%c10_54, %c0_55, %c0_56] : memref<64x4x128xf32, #tpu.memory_space<vmem>>, vector<1x4x128xf32>
    %84 = vector.shape_cast %83 : vector<1x4x128xf32> to vector<4x128xf32>
    %85 = vector.shape_cast %82 : vector<128xf32> to vector<1x128xf32>
    %86 = vector.broadcast %85 : vector<1x128xf32> to vector<4x128xf32>
    %87 = arith.mulf %86, %84 : vector<4x128xf32>
    %88 = arith.addf %80, %87 : vector<4x128xf32>
    %c0_57 = arith.constant 0 : index
    %c11 = arith.constant 11 : index
    %c0_58 = arith.constant 0 : index
    %89 = vector.load %arg1[%c0_57, %c11, %c0_58] : memref<2x64x128xf32, #tpu.memory_space<vmem>>, vector<1x1x128xf32>
    %90 = vector.shape_cast %89 : vector<1x1x128xf32> to vector<128xf32>
    %c11_59 = arith.constant 11 : index
    %c0_60 = arith.constant 0 : index
    %c0_61 = arith.constant 0 : index
    %91 = vector.load %arg2[%c11_59, %c0_60, %c0_61] : memref<64x4x128xf32, #tpu.memory_space<vmem>>, vector<1x4x128xf32>
    %92 = vector.shape_cast %91 : vector<1x4x128xf32> to vector<4x128xf32>
    %93 = vector.shape_cast %90 : vector<128xf32> to vector<1x128xf32>
    %94 = vector.broadcast %93 : vector<1x128xf32> to vector<4x128xf32>
    %95 = arith.mulf %94, %92 : vector<4x128xf32>
    %96 = arith.addf %88, %95 : vector<4x128xf32>
    %c0_62 = arith.constant 0 : index
    %c12 = arith.constant 12 : index
    %c0_63 = arith.constant 0 : index
    %97 = vector.load %arg1[%c0_62, %c12, %c0_63] : memref<2x64x128xf32, #tpu.memory_space<vmem>>, vector<1x1x128xf32>
    %98 = vector.shape_cast %97 : vector<1x1x128xf32> to vector<128xf32>
    %c12_64 = arith.constant 12 : index
    %c0_65 = arith.constant 0 : index
    %c0_66 = arith.constant 0 : index
    %99 = vector.load %arg2[%c12_64, %c0_65, %c0_66] : memref<64x4x128xf32, #tpu.memory_space<vmem>>, vector<1x4x128xf32>
    %100 = vector.shape_cast %99 : vector<1x4x128xf32> to vector<4x128xf32>
    %101 = vector.shape_cast %98 : vector<128xf32> to vector<1x128xf32>
    %102 = vector.broadcast %101 : vector<1x128xf32> to vector<4x128xf32>
    %103 = arith.mulf %102, %100 : vector<4x128xf32>
    %104 = arith.addf %96, %103 : vector<4x128xf32>
    %c0_67 = arith.constant 0 : index
    %c13 = arith.constant 13 : index
    %c0_68 = arith.constant 0 : index
    %105 = vector.load %arg1[%c0_67, %c13, %c0_68] : memref<2x64x128xf32, #tpu.memory_space<vmem>>, vector<1x1x128xf32>
    %106 = vector.shape_cast %105 : vector<1x1x128xf32> to vector<128xf32>
    %c13_69 = arith.constant 13 : index
    %c0_70 = arith.constant 0 : index
    %c0_71 = arith.constant 0 : index
    %107 = vector.load %arg2[%c13_69, %c0_70, %c0_71] : memref<64x4x128xf32, #tpu.memory_space<vmem>>, vector<1x4x128xf32>
    %108 = vector.shape_cast %107 : vector<1x4x128xf32> to vector<4x128xf32>
    %109 = vector.shape_cast %106 : vector<128xf32> to vector<1x128xf32>
    %110 = vector.broadcast %109 : vector<1x128xf32> to vector<4x128xf32>
    %111 = arith.mulf %110, %108 : vector<4x128xf32>
    %112 = arith.addf %104, %111 : vector<4x128xf32>
    %c0_72 = arith.constant 0 : index
    %c14 = arith.constant 14 : index
    %c0_73 = arith.constant 0 : index
    %113 = vector.load %arg1[%c0_72, %c14, %c0_73] : memref<2x64x128xf32, #tpu.memory_space<vmem>>, vector<1x1x128xf32>
    %114 = vector.shape_cast %113 : vector<1x1x128xf32> to vector<128xf32>
    %c14_74 = arith.constant 14 : index
    %c0_75 = arith.constant 0 : index
    %c0_76 = arith.constant 0 : index
    %115 = vector.load %arg2[%c14_74, %c0_75, %c0_76] : memref<64x4x128xf32, #tpu.memory_space<vmem>>, vector<1x4x128xf32>
    %116 = vector.shape_cast %115 : vector<1x4x128xf32> to vector<4x128xf32>
    %117 = vector.shape_cast %114 : vector<128xf32> to vector<1x128xf32>
    %118 = vector.broadcast %117 : vector<1x128xf32> to vector<4x128xf32>
    %119 = arith.mulf %118, %116 : vector<4x128xf32>
    %120 = arith.addf %112, %119 : vector<4x128xf32>
    %c0_77 = arith.constant 0 : index
    %c15 = arith.constant 15 : index
    %c0_78 = arith.constant 0 : index
    %121 = vector.load %arg1[%c0_77, %c15, %c0_78] : memref<2x64x128xf32, #tpu.memory_space<vmem>>, vector<1x1x128xf32>
    %122 = vector.shape_cast %121 : vector<1x1x128xf32> to vector<128xf32>
    %c15_79 = arith.constant 15 : index
    %c0_80 = arith.constant 0 : index
    %c0_81 = arith.constant 0 : index
    %123 = vector.load %arg2[%c15_79, %c0_80, %c0_81] : memref<64x4x128xf32, #tpu.memory_space<vmem>>, vector<1x4x128xf32>
    %124 = vector.shape_cast %123 : vector<1x4x128xf32> to vector<4x128xf32>
    %125 = vector.shape_cast %122 : vector<128xf32> to vector<1x128xf32>
    %126 = vector.broadcast %125 : vector<1x128xf32> to vector<4x128xf32>
    %127 = arith.mulf %126, %124 : vector<4x128xf32>
    %128 = arith.addf %120, %127 : vector<4x128xf32>
    %c0_82 = arith.constant 0 : index
    %c16 = arith.constant 16 : index
    %c0_83 = arith.constant 0 : index
    %129 = vector.load %arg1[%c0_82, %c16, %c0_83] : memref<2x64x128xf32, #tpu.memory_space<vmem>>, vector<1x1x128xf32>
    %130 = vector.shape_cast %129 : vector<1x1x128xf32> to vector<128xf32>
    %c16_84 = arith.constant 16 : index
    %c0_85 = arith.constant 0 : index
    %c0_86 = arith.constant 0 : index
    %131 = vector.load %arg2[%c16_84, %c0_85, %c0_86] : memref<64x4x128xf32, #tpu.memory_space<vmem>>, vector<1x4x128xf32>
    %132 = vector.shape_cast %131 : vector<1x4x128xf32> to vector<4x128xf32>
    %133 = vector.shape_cast %130 : vector<128xf32> to vector<1x128xf32>
    %134 = vector.broadcast %133 : vector<1x128xf32> to vector<4x128xf32>
    %135 = arith.mulf %134, %132 : vector<4x128xf32>
    %136 = arith.addf %128, %135 : vector<4x128xf32>
    %c0_87 = arith.constant 0 : index
    %c17 = arith.constant 17 : index
    %c0_88 = arith.constant 0 : index
    %137 = vector.load %arg1[%c0_87, %c17, %c0_88] : memref<2x64x128xf32, #tpu.memory_space<vmem>>, vector<1x1x128xf32>
    %138 = vector.shape_cast %137 : vector<1x1x128xf32> to vector<128xf32>
    %c17_89 = arith.constant 17 : index
    %c0_90 = arith.constant 0 : index
    %c0_91 = arith.constant 0 : index
    %139 = vector.load %arg2[%c17_89, %c0_90, %c0_91] : memref<64x4x128xf32, #tpu.memory_space<vmem>>, vector<1x4x128xf32>
    %140 = vector.shape_cast %139 : vector<1x4x128xf32> to vector<4x128xf32>
    %141 = vector.shape_cast %138 : vector<128xf32> to vector<1x128xf32>
    %142 = vector.broadcast %141 : vector<1x128xf32> to vector<4x128xf32>
    %143 = arith.mulf %142, %140 : vector<4x128xf32>
    %144 = arith.addf %136, %143 : vector<4x128xf32>
    %c0_92 = arith.constant 0 : index
    %c18 = arith.constant 18 : index
    %c0_93 = arith.constant 0 : index
    %145 = vector.load %arg1[%c0_92, %c18, %c0_93] : memref<2x64x128xf32, #tpu.memory_space<vmem>>, vector<1x1x128xf32>
    %146 = vector.shape_cast %145 : vector<1x1x128xf32> to vector<128xf32>
    %c18_94 = arith.constant 18 : index
    %c0_95 = arith.constant 0 : index
    %c0_96 = arith.constant 0 : index
    %147 = vector.load %arg2[%c18_94, %c0_95, %c0_96] : memref<64x4x128xf32, #tpu.memory_space<vmem>>, vector<1x4x128xf32>
    %148 = vector.shape_cast %147 : vector<1x4x128xf32> to vector<4x128xf32>
    %149 = vector.shape_cast %146 : vector<128xf32> to vector<1x128xf32>
    %150 = vector.broadcast %149 : vector<1x128xf32> to vector<4x128xf32>
    %151 = arith.mulf %150, %148 : vector<4x128xf32>
    %152 = arith.addf %144, %151 : vector<4x128xf32>
    %c0_97 = arith.constant 0 : index
    %c19 = arith.constant 19 : index
    %c0_98 = arith.constant 0 : index
    %153 = vector.load %arg1[%c0_97, %c19, %c0_98] : memref<2x64x128xf32, #tpu.memory_space<vmem>>, vector<1x1x128xf32>
    %154 = vector.shape_cast %153 : vector<1x1x128xf32> to vector<128xf32>
    %c19_99 = arith.constant 19 : index
    %c0_100 = arith.constant 0 : index
    %c0_101 = arith.constant 0 : index
    %155 = vector.load %arg2[%c19_99, %c0_100, %c0_101] : memref<64x4x128xf32, #tpu.memory_space<vmem>>, vector<1x4x128xf32>
    %156 = vector.shape_cast %155 : vector<1x4x128xf32> to vector<4x128xf32>
    %157 = vector.shape_cast %154 : vector<128xf32> to vector<1x128xf32>
    %158 = vector.broadcast %157 : vector<1x128xf32> to vector<4x128xf32>
    %159 = arith.mulf %158, %156 : vector<4x128xf32>
    %160 = arith.addf %152, %159 : vector<4x128xf32>
    %c0_102 = arith.constant 0 : index
    %c20 = arith.constant 20 : index
    %c0_103 = arith.constant 0 : index
    %161 = vector.load %arg1[%c0_102, %c20, %c0_103] : memref<2x64x128xf32, #tpu.memory_space<vmem>>, vector<1x1x128xf32>
    %162 = vector.shape_cast %161 : vector<1x1x128xf32> to vector<128xf32>
    %c20_104 = arith.constant 20 : index
    %c0_105 = arith.constant 0 : index
    %c0_106 = arith.constant 0 : index
    %163 = vector.load %arg2[%c20_104, %c0_105, %c0_106] : memref<64x4x128xf32, #tpu.memory_space<vmem>>, vector<1x4x128xf32>
    %164 = vector.shape_cast %163 : vector<1x4x128xf32> to vector<4x128xf32>
    %165 = vector.shape_cast %162 : vector<128xf32> to vector<1x128xf32>
    %166 = vector.broadcast %165 : vector<1x128xf32> to vector<4x128xf32>
    %167 = arith.mulf %166, %164 : vector<4x128xf32>
    %168 = arith.addf %160, %167 : vector<4x128xf32>
    %c0_107 = arith.constant 0 : index
    %c21 = arith.constant 21 : index
    %c0_108 = arith.constant 0 : index
    %169 = vector.load %arg1[%c0_107, %c21, %c0_108] : memref<2x64x128xf32, #tpu.memory_space<vmem>>, vector<1x1x128xf32>
    %170 = vector.shape_cast %169 : vector<1x1x128xf32> to vector<128xf32>
    %c21_109 = arith.constant 21 : index
    %c0_110 = arith.constant 0 : index
    %c0_111 = arith.constant 0 : index
    %171 = vector.load %arg2[%c21_109, %c0_110, %c0_111] : memref<64x4x128xf32, #tpu.memory_space<vmem>>, vector<1x4x128xf32>
    %172 = vector.shape_cast %171 : vector<1x4x128xf32> to vector<4x128xf32>
    %173 = vector.shape_cast %170 : vector<128xf32> to vector<1x128xf32>
    %174 = vector.broadcast %173 : vector<1x128xf32> to vector<4x128xf32>
    %175 = arith.mulf %174, %172 : vector<4x128xf32>
    %176 = arith.addf %168, %175 : vector<4x128xf32>
    %c0_112 = arith.constant 0 : index
    %c22 = arith.constant 22 : index
    %c0_113 = arith.constant 0 : index
    %177 = vector.load %arg1[%c0_112, %c22, %c0_113] : memref<2x64x128xf32, #tpu.memory_space<vmem>>, vector<1x1x128xf32>
    %178 = vector.shape_cast %177 : vector<1x1x128xf32> to vector<128xf32>
    %c22_114 = arith.constant 22 : index
    %c0_115 = arith.constant 0 : index
    %c0_116 = arith.constant 0 : index
    %179 = vector.load %arg2[%c22_114, %c0_115, %c0_116] : memref<64x4x128xf32, #tpu.memory_space<vmem>>, vector<1x4x128xf32>
    %180 = vector.shape_cast %179 : vector<1x4x128xf32> to vector<4x128xf32>
    %181 = vector.shape_cast %178 : vector<128xf32> to vector<1x128xf32>
    %182 = vector.broadcast %181 : vector<1x128xf32> to vector<4x128xf32>
    %183 = arith.mulf %182, %180 : vector<4x128xf32>
    %184 = arith.addf %176, %183 : vector<4x128xf32>
    %c0_117 = arith.constant 0 : index
    %c23 = arith.constant 23 : index
    %c0_118 = arith.constant 0 : index
    %185 = vector.load %arg1[%c0_117, %c23, %c0_118] : memref<2x64x128xf32, #tpu.memory_space<vmem>>, vector<1x1x128xf32>
    %186 = vector.shape_cast %185 : vector<1x1x128xf32> to vector<128xf32>
    %c23_119 = arith.constant 23 : index
    %c0_120 = arith.constant 0 : index
    %c0_121 = arith.constant 0 : index
    %187 = vector.load %arg2[%c23_119, %c0_120, %c0_121] : memref<64x4x128xf32, #tpu.memory_space<vmem>>, vector<1x4x128xf32>
    %188 = vector.shape_cast %187 : vector<1x4x128xf32> to vector<4x128xf32>
    %189 = vector.shape_cast %186 : vector<128xf32> to vector<1x128xf32>
    %190 = vector.broadcast %189 : vector<1x128xf32> to vector<4x128xf32>
    %191 = arith.mulf %190, %188 : vector<4x128xf32>
    %192 = arith.addf %184, %191 : vector<4x128xf32>
    %c0_122 = arith.constant 0 : index
    %c24 = arith.constant 24 : index
    %c0_123 = arith.constant 0 : index
    %193 = vector.load %arg1[%c0_122, %c24, %c0_123] : memref<2x64x128xf32, #tpu.memory_space<vmem>>, vector<1x1x128xf32>
    %194 = vector.shape_cast %193 : vector<1x1x128xf32> to vector<128xf32>
    %c24_124 = arith.constant 24 : index
    %c0_125 = arith.constant 0 : index
    %c0_126 = arith.constant 0 : index
    %195 = vector.load %arg2[%c24_124, %c0_125, %c0_126] : memref<64x4x128xf32, #tpu.memory_space<vmem>>, vector<1x4x128xf32>
    %196 = vector.shape_cast %195 : vector<1x4x128xf32> to vector<4x128xf32>
    %197 = vector.shape_cast %194 : vector<128xf32> to vector<1x128xf32>
    %198 = vector.broadcast %197 : vector<1x128xf32> to vector<4x128xf32>
    %199 = arith.mulf %198, %196 : vector<4x128xf32>
    %200 = arith.addf %192, %199 : vector<4x128xf32>
    %c0_127 = arith.constant 0 : index
    %c25 = arith.constant 25 : index
    %c0_128 = arith.constant 0 : index
    %201 = vector.load %arg1[%c0_127, %c25, %c0_128] : memref<2x64x128xf32, #tpu.memory_space<vmem>>, vector<1x1x128xf32>
    %202 = vector.shape_cast %201 : vector<1x1x128xf32> to vector<128xf32>
    %c25_129 = arith.constant 25 : index
    %c0_130 = arith.constant 0 : index
    %c0_131 = arith.constant 0 : index
    %203 = vector.load %arg2[%c25_129, %c0_130, %c0_131] : memref<64x4x128xf32, #tpu.memory_space<vmem>>, vector<1x4x128xf32>
    %204 = vector.shape_cast %203 : vector<1x4x128xf32> to vector<4x128xf32>
    %205 = vector.shape_cast %202 : vector<128xf32> to vector<1x128xf32>
    %206 = vector.broadcast %205 : vector<1x128xf32> to vector<4x128xf32>
    %207 = arith.mulf %206, %204 : vector<4x128xf32>
    %208 = arith.addf %200, %207 : vector<4x128xf32>
    %c0_132 = arith.constant 0 : index
    %c26 = arith.constant 26 : index
    %c0_133 = arith.constant 0 : index
    %209 = vector.load %arg1[%c0_132, %c26, %c0_133] : memref<2x64x128xf32, #tpu.memory_space<vmem>>, vector<1x1x128xf32>
    %210 = vector.shape_cast %209 : vector<1x1x128xf32> to vector<128xf32>
    %c26_134 = arith.constant 26 : index
    %c0_135 = arith.constant 0 : index
    %c0_136 = arith.constant 0 : index
    %211 = vector.load %arg2[%c26_134, %c0_135, %c0_136] : memref<64x4x128xf32, #tpu.memory_space<vmem>>, vector<1x4x128xf32>
    %212 = vector.shape_cast %211 : vector<1x4x128xf32> to vector<4x128xf32>
    %213 = vector.shape_cast %210 : vector<128xf32> to vector<1x128xf32>
    %214 = vector.broadcast %213 : vector<1x128xf32> to vector<4x128xf32>
    %215 = arith.mulf %214, %212 : vector<4x128xf32>
    %216 = arith.addf %208, %215 : vector<4x128xf32>
    %c0_137 = arith.constant 0 : index
    %c27 = arith.constant 27 : index
    %c0_138 = arith.constant 0 : index
    %217 = vector.load %arg1[%c0_137, %c27, %c0_138] : memref<2x64x128xf32, #tpu.memory_space<vmem>>, vector<1x1x128xf32>
    %218 = vector.shape_cast %217 : vector<1x1x128xf32> to vector<128xf32>
    %c27_139 = arith.constant 27 : index
    %c0_140 = arith.constant 0 : index
    %c0_141 = arith.constant 0 : index
    %219 = vector.load %arg2[%c27_139, %c0_140, %c0_141] : memref<64x4x128xf32, #tpu.memory_space<vmem>>, vector<1x4x128xf32>
    %220 = vector.shape_cast %219 : vector<1x4x128xf32> to vector<4x128xf32>
    %221 = vector.shape_cast %218 : vector<128xf32> to vector<1x128xf32>
    %222 = vector.broadcast %221 : vector<1x128xf32> to vector<4x128xf32>
    %223 = arith.mulf %222, %220 : vector<4x128xf32>
    %224 = arith.addf %216, %223 : vector<4x128xf32>
    %c0_142 = arith.constant 0 : index
    %c28 = arith.constant 28 : index
    %c0_143 = arith.constant 0 : index
    %225 = vector.load %arg1[%c0_142, %c28, %c0_143] : memref<2x64x128xf32, #tpu.memory_space<vmem>>, vector<1x1x128xf32>
    %226 = vector.shape_cast %225 : vector<1x1x128xf32> to vector<128xf32>
    %c28_144 = arith.constant 28 : index
    %c0_145 = arith.constant 0 : index
    %c0_146 = arith.constant 0 : index
    %227 = vector.load %arg2[%c28_144, %c0_145, %c0_146] : memref<64x4x128xf32, #tpu.memory_space<vmem>>, vector<1x4x128xf32>
    %228 = vector.shape_cast %227 : vector<1x4x128xf32> to vector<4x128xf32>
    %229 = vector.shape_cast %226 : vector<128xf32> to vector<1x128xf32>
    %230 = vector.broadcast %229 : vector<1x128xf32> to vector<4x128xf32>
    %231 = arith.mulf %230, %228 : vector<4x128xf32>
    %232 = arith.addf %224, %231 : vector<4x128xf32>
    %c0_147 = arith.constant 0 : index
    %c29 = arith.constant 29 : index
    %c0_148 = arith.constant 0 : index
    %233 = vector.load %arg1[%c0_147, %c29, %c0_148] : memref<2x64x128xf32, #tpu.memory_space<vmem>>, vector<1x1x128xf32>
    %234 = vector.shape_cast %233 : vector<1x1x128xf32> to vector<128xf32>
    %c29_149 = arith.constant 29 : index
    %c0_150 = arith.constant 0 : index
    %c0_151 = arith.constant 0 : index
    %235 = vector.load %arg2[%c29_149, %c0_150, %c0_151] : memref<64x4x128xf32, #tpu.memory_space<vmem>>, vector<1x4x128xf32>
    %236 = vector.shape_cast %235 : vector<1x4x128xf32> to vector<4x128xf32>
    %237 = vector.shape_cast %234 : vector<128xf32> to vector<1x128xf32>
    %238 = vector.broadcast %237 : vector<1x128xf32> to vector<4x128xf32>
    %239 = arith.mulf %238, %236 : vector<4x128xf32>
    %240 = arith.addf %232, %239 : vector<4x128xf32>
    %c0_152 = arith.constant 0 : index
    %c30 = arith.constant 30 : index
    %c0_153 = arith.constant 0 : index
    %241 = vector.load %arg1[%c0_152, %c30, %c0_153] : memref<2x64x128xf32, #tpu.memory_space<vmem>>, vector<1x1x128xf32>
    %242 = vector.shape_cast %241 : vector<1x1x128xf32> to vector<128xf32>
    %c30_154 = arith.constant 30 : index
    %c0_155 = arith.constant 0 : index
    %c0_156 = arith.constant 0 : index
    %243 = vector.load %arg2[%c30_154, %c0_155, %c0_156] : memref<64x4x128xf32, #tpu.memory_space<vmem>>, vector<1x4x128xf32>
    %244 = vector.shape_cast %243 : vector<1x4x128xf32> to vector<4x128xf32>
    %245 = vector.shape_cast %242 : vector<128xf32> to vector<1x128xf32>
    %246 = vector.broadcast %245 : vector<1x128xf32> to vector<4x128xf32>
    %247 = arith.mulf %246, %244 : vector<4x128xf32>
    %248 = arith.addf %240, %247 : vector<4x128xf32>
    %c0_157 = arith.constant 0 : index
    %c31 = arith.constant 31 : index
    %c0_158 = arith.constant 0 : index
    %249 = vector.load %arg1[%c0_157, %c31, %c0_158] : memref<2x64x128xf32, #tpu.memory_space<vmem>>, vector<1x1x128xf32>
    %250 = vector.shape_cast %249 : vector<1x1x128xf32> to vector<128xf32>
    %c31_159 = arith.constant 31 : index
    %c0_160 = arith.constant 0 : index
    %c0_161 = arith.constant 0 : index
    %251 = vector.load %arg2[%c31_159, %c0_160, %c0_161] : memref<64x4x128xf32, #tpu.memory_space<vmem>>, vector<1x4x128xf32>
    %252 = vector.shape_cast %251 : vector<1x4x128xf32> to vector<4x128xf32>
    %253 = vector.shape_cast %250 : vector<128xf32> to vector<1x128xf32>
    %254 = vector.broadcast %253 : vector<1x128xf32> to vector<4x128xf32>
    %255 = arith.mulf %254, %252 : vector<4x128xf32>
    %256 = arith.addf %248, %255 : vector<4x128xf32>
    %c0_162 = arith.constant 0 : index
    %c32 = arith.constant 32 : index
    %c0_163 = arith.constant 0 : index
    %257 = vector.load %arg1[%c0_162, %c32, %c0_163] : memref<2x64x128xf32, #tpu.memory_space<vmem>>, vector<1x1x128xf32>
    %258 = vector.shape_cast %257 : vector<1x1x128xf32> to vector<128xf32>
    %c32_164 = arith.constant 32 : index
    %c0_165 = arith.constant 0 : index
    %c0_166 = arith.constant 0 : index
    %259 = vector.load %arg2[%c32_164, %c0_165, %c0_166] : memref<64x4x128xf32, #tpu.memory_space<vmem>>, vector<1x4x128xf32>
    %260 = vector.shape_cast %259 : vector<1x4x128xf32> to vector<4x128xf32>
    %261 = vector.shape_cast %258 : vector<128xf32> to vector<1x128xf32>
    %262 = vector.broadcast %261 : vector<1x128xf32> to vector<4x128xf32>
    %263 = arith.mulf %262, %260 : vector<4x128xf32>
    %264 = arith.addf %256, %263 : vector<4x128xf32>
    %c0_167 = arith.constant 0 : index
    %c33 = arith.constant 33 : index
    %c0_168 = arith.constant 0 : index
    %265 = vector.load %arg1[%c0_167, %c33, %c0_168] : memref<2x64x128xf32, #tpu.memory_space<vmem>>, vector<1x1x128xf32>
    %266 = vector.shape_cast %265 : vector<1x1x128xf32> to vector<128xf32>
    %c33_169 = arith.constant 33 : index
    %c0_170 = arith.constant 0 : index
    %c0_171 = arith.constant 0 : index
    %267 = vector.load %arg2[%c33_169, %c0_170, %c0_171] : memref<64x4x128xf32, #tpu.memory_space<vmem>>, vector<1x4x128xf32>
    %268 = vector.shape_cast %267 : vector<1x4x128xf32> to vector<4x128xf32>
    %269 = vector.shape_cast %266 : vector<128xf32> to vector<1x128xf32>
    %270 = vector.broadcast %269 : vector<1x128xf32> to vector<4x128xf32>
    %271 = arith.mulf %270, %268 : vector<4x128xf32>
    %272 = arith.addf %264, %271 : vector<4x128xf32>
    %c0_172 = arith.constant 0 : index
    %c34 = arith.constant 34 : index
    %c0_173 = arith.constant 0 : index
    %273 = vector.load %arg1[%c0_172, %c34, %c0_173] : memref<2x64x128xf32, #tpu.memory_space<vmem>>, vector<1x1x128xf32>
    %274 = vector.shape_cast %273 : vector<1x1x128xf32> to vector<128xf32>
    %c34_174 = arith.constant 34 : index
    %c0_175 = arith.constant 0 : index
    %c0_176 = arith.constant 0 : index
    %275 = vector.load %arg2[%c34_174, %c0_175, %c0_176] : memref<64x4x128xf32, #tpu.memory_space<vmem>>, vector<1x4x128xf32>
    %276 = vector.shape_cast %275 : vector<1x4x128xf32> to vector<4x128xf32>
    %277 = vector.shape_cast %274 : vector<128xf32> to vector<1x128xf32>
    %278 = vector.broadcast %277 : vector<1x128xf32> to vector<4x128xf32>
    %279 = arith.mulf %278, %276 : vector<4x128xf32>
    %280 = arith.addf %272, %279 : vector<4x128xf32>
    %c0_177 = arith.constant 0 : index
    %c35 = arith.constant 35 : index
    %c0_178 = arith.constant 0 : index
    %281 = vector.load %arg1[%c0_177, %c35, %c0_178] : memref<2x64x128xf32, #tpu.memory_space<vmem>>, vector<1x1x128xf32>
    %282 = vector.shape_cast %281 : vector<1x1x128xf32> to vector<128xf32>
    %c35_179 = arith.constant 35 : index
    %c0_180 = arith.constant 0 : index
    %c0_181 = arith.constant 0 : index
    %283 = vector.load %arg2[%c35_179, %c0_180, %c0_181] : memref<64x4x128xf32, #tpu.memory_space<vmem>>, vector<1x4x128xf32>
    %284 = vector.shape_cast %283 : vector<1x4x128xf32> to vector<4x128xf32>
    %285 = vector.shape_cast %282 : vector<128xf32> to vector<1x128xf32>
    %286 = vector.broadcast %285 : vector<1x128xf32> to vector<4x128xf32>
    %287 = arith.mulf %286, %284 : vector<4x128xf32>
    %288 = arith.addf %280, %287 : vector<4x128xf32>
    %c0_182 = arith.constant 0 : index
    %c36 = arith.constant 36 : index
    %c0_183 = arith.constant 0 : index
    %289 = vector.load %arg1[%c0_182, %c36, %c0_183] : memref<2x64x128xf32, #tpu.memory_space<vmem>>, vector<1x1x128xf32>
    %290 = vector.shape_cast %289 : vector<1x1x128xf32> to vector<128xf32>
    %c36_184 = arith.constant 36 : index
    %c0_185 = arith.constant 0 : index
    %c0_186 = arith.constant 0 : index
    %291 = vector.load %arg2[%c36_184, %c0_185, %c0_186] : memref<64x4x128xf32, #tpu.memory_space<vmem>>, vector<1x4x128xf32>
    %292 = vector.shape_cast %291 : vector<1x4x128xf32> to vector<4x128xf32>
    %293 = vector.shape_cast %290 : vector<128xf32> to vector<1x128xf32>
    %294 = vector.broadcast %293 : vector<1x128xf32> to vector<4x128xf32>
    %295 = arith.mulf %294, %292 : vector<4x128xf32>
    %296 = arith.addf %288, %295 : vector<4x128xf32>
    %c0_187 = arith.constant 0 : index
    %c37 = arith.constant 37 : index
    %c0_188 = arith.constant 0 : index
    %297 = vector.load %arg1[%c0_187, %c37, %c0_188] : memref<2x64x128xf32, #tpu.memory_space<vmem>>, vector<1x1x128xf32>
    %298 = vector.shape_cast %297 : vector<1x1x128xf32> to vector<128xf32>
    %c37_189 = arith.constant 37 : index
    %c0_190 = arith.constant 0 : index
    %c0_191 = arith.constant 0 : index
    %299 = vector.load %arg2[%c37_189, %c0_190, %c0_191] : memref<64x4x128xf32, #tpu.memory_space<vmem>>, vector<1x4x128xf32>
    %300 = vector.shape_cast %299 : vector<1x4x128xf32> to vector<4x128xf32>
    %301 = vector.shape_cast %298 : vector<128xf32> to vector<1x128xf32>
    %302 = vector.broadcast %301 : vector<1x128xf32> to vector<4x128xf32>
    %303 = arith.mulf %302, %300 : vector<4x128xf32>
    %304 = arith.addf %296, %303 : vector<4x128xf32>
    %c0_192 = arith.constant 0 : index
    %c38 = arith.constant 38 : index
    %c0_193 = arith.constant 0 : index
    %305 = vector.load %arg1[%c0_192, %c38, %c0_193] : memref<2x64x128xf32, #tpu.memory_space<vmem>>, vector<1x1x128xf32>
    %306 = vector.shape_cast %305 : vector<1x1x128xf32> to vector<128xf32>
    %c38_194 = arith.constant 38 : index
    %c0_195 = arith.constant 0 : index
    %c0_196 = arith.constant 0 : index
    %307 = vector.load %arg2[%c38_194, %c0_195, %c0_196] : memref<64x4x128xf32, #tpu.memory_space<vmem>>, vector<1x4x128xf32>
    %308 = vector.shape_cast %307 : vector<1x4x128xf32> to vector<4x128xf32>
    %309 = vector.shape_cast %306 : vector<128xf32> to vector<1x128xf32>
    %310 = vector.broadcast %309 : vector<1x128xf32> to vector<4x128xf32>
    %311 = arith.mulf %310, %308 : vector<4x128xf32>
    %312 = arith.addf %304, %311 : vector<4x128xf32>
    %c0_197 = arith.constant 0 : index
    %c39 = arith.constant 39 : index
    %c0_198 = arith.constant 0 : index
    %313 = vector.load %arg1[%c0_197, %c39, %c0_198] : memref<2x64x128xf32, #tpu.memory_space<vmem>>, vector<1x1x128xf32>
    %314 = vector.shape_cast %313 : vector<1x1x128xf32> to vector<128xf32>
    %c39_199 = arith.constant 39 : index
    %c0_200 = arith.constant 0 : index
    %c0_201 = arith.constant 0 : index
    %315 = vector.load %arg2[%c39_199, %c0_200, %c0_201] : memref<64x4x128xf32, #tpu.memory_space<vmem>>, vector<1x4x128xf32>
    %316 = vector.shape_cast %315 : vector<1x4x128xf32> to vector<4x128xf32>
    %317 = vector.shape_cast %314 : vector<128xf32> to vector<1x128xf32>
    %318 = vector.broadcast %317 : vector<1x128xf32> to vector<4x128xf32>
    %319 = arith.mulf %318, %316 : vector<4x128xf32>
    %320 = arith.addf %312, %319 : vector<4x128xf32>
    %c0_202 = arith.constant 0 : index
    %c40 = arith.constant 40 : index
    %c0_203 = arith.constant 0 : index
    %321 = vector.load %arg1[%c0_202, %c40, %c0_203] : memref<2x64x128xf32, #tpu.memory_space<vmem>>, vector<1x1x128xf32>
    %322 = vector.shape_cast %321 : vector<1x1x128xf32> to vector<128xf32>
    %c40_204 = arith.constant 40 : index
    %c0_205 = arith.constant 0 : index
    %c0_206 = arith.constant 0 : index
    %323 = vector.load %arg2[%c40_204, %c0_205, %c0_206] : memref<64x4x128xf32, #tpu.memory_space<vmem>>, vector<1x4x128xf32>
    %324 = vector.shape_cast %323 : vector<1x4x128xf32> to vector<4x128xf32>
    %325 = vector.shape_cast %322 : vector<128xf32> to vector<1x128xf32>
    %326 = vector.broadcast %325 : vector<1x128xf32> to vector<4x128xf32>
    %327 = arith.mulf %326, %324 : vector<4x128xf32>
    %328 = arith.addf %320, %327 : vector<4x128xf32>
    %c0_207 = arith.constant 0 : index
    %c41 = arith.constant 41 : index
    %c0_208 = arith.constant 0 : index
    %329 = vector.load %arg1[%c0_207, %c41, %c0_208] : memref<2x64x128xf32, #tpu.memory_space<vmem>>, vector<1x1x128xf32>
    %330 = vector.shape_cast %329 : vector<1x1x128xf32> to vector<128xf32>
    %c41_209 = arith.constant 41 : index
    %c0_210 = arith.constant 0 : index
    %c0_211 = arith.constant 0 : index
    %331 = vector.load %arg2[%c41_209, %c0_210, %c0_211] : memref<64x4x128xf32, #tpu.memory_space<vmem>>, vector<1x4x128xf32>
    %332 = vector.shape_cast %331 : vector<1x4x128xf32> to vector<4x128xf32>
    %333 = vector.shape_cast %330 : vector<128xf32> to vector<1x128xf32>
    %334 = vector.broadcast %333 : vector<1x128xf32> to vector<4x128xf32>
    %335 = arith.mulf %334, %332 : vector<4x128xf32>
    %336 = arith.addf %328, %335 : vector<4x128xf32>
    %c0_212 = arith.constant 0 : index
    %c42 = arith.constant 42 : index
    %c0_213 = arith.constant 0 : index
    %337 = vector.load %arg1[%c0_212, %c42, %c0_213] : memref<2x64x128xf32, #tpu.memory_space<vmem>>, vector<1x1x128xf32>
    %338 = vector.shape_cast %337 : vector<1x1x128xf32> to vector<128xf32>
    %c42_214 = arith.constant 42 : index
    %c0_215 = arith.constant 0 : index
    %c0_216 = arith.constant 0 : index
    %339 = vector.load %arg2[%c42_214, %c0_215, %c0_216] : memref<64x4x128xf32, #tpu.memory_space<vmem>>, vector<1x4x128xf32>
    %340 = vector.shape_cast %339 : vector<1x4x128xf32> to vector<4x128xf32>
    %341 = vector.shape_cast %338 : vector<128xf32> to vector<1x128xf32>
    %342 = vector.broadcast %341 : vector<1x128xf32> to vector<4x128xf32>
    %343 = arith.mulf %342, %340 : vector<4x128xf32>
    %344 = arith.addf %336, %343 : vector<4x128xf32>
    %c0_217 = arith.constant 0 : index
    %c43 = arith.constant 43 : index
    %c0_218 = arith.constant 0 : index
    %345 = vector.load %arg1[%c0_217, %c43, %c0_218] : memref<2x64x128xf32, #tpu.memory_space<vmem>>, vector<1x1x128xf32>
    %346 = vector.shape_cast %345 : vector<1x1x128xf32> to vector<128xf32>
    %c43_219 = arith.constant 43 : index
    %c0_220 = arith.constant 0 : index
    %c0_221 = arith.constant 0 : index
    %347 = vector.load %arg2[%c43_219, %c0_220, %c0_221] : memref<64x4x128xf32, #tpu.memory_space<vmem>>, vector<1x4x128xf32>
    %348 = vector.shape_cast %347 : vector<1x4x128xf32> to vector<4x128xf32>
    %349 = vector.shape_cast %346 : vector<128xf32> to vector<1x128xf32>
    %350 = vector.broadcast %349 : vector<1x128xf32> to vector<4x128xf32>
    %351 = arith.mulf %350, %348 : vector<4x128xf32>
    %352 = arith.addf %344, %351 : vector<4x128xf32>
    %c0_222 = arith.constant 0 : index
    %c44 = arith.constant 44 : index
    %c0_223 = arith.constant 0 : index
    %353 = vector.load %arg1[%c0_222, %c44, %c0_223] : memref<2x64x128xf32, #tpu.memory_space<vmem>>, vector<1x1x128xf32>
    %354 = vector.shape_cast %353 : vector<1x1x128xf32> to vector<128xf32>
    %c44_224 = arith.constant 44 : index
    %c0_225 = arith.constant 0 : index
    %c0_226 = arith.constant 0 : index
    %355 = vector.load %arg2[%c44_224, %c0_225, %c0_226] : memref<64x4x128xf32, #tpu.memory_space<vmem>>, vector<1x4x128xf32>
    %356 = vector.shape_cast %355 : vector<1x4x128xf32> to vector<4x128xf32>
    %357 = vector.shape_cast %354 : vector<128xf32> to vector<1x128xf32>
    %358 = vector.broadcast %357 : vector<1x128xf32> to vector<4x128xf32>
    %359 = arith.mulf %358, %356 : vector<4x128xf32>
    %360 = arith.addf %352, %359 : vector<4x128xf32>
    %c0_227 = arith.constant 0 : index
    %c45 = arith.constant 45 : index
    %c0_228 = arith.constant 0 : index
    %361 = vector.load %arg1[%c0_227, %c45, %c0_228] : memref<2x64x128xf32, #tpu.memory_space<vmem>>, vector<1x1x128xf32>
    %362 = vector.shape_cast %361 : vector<1x1x128xf32> to vector<128xf32>
    %c45_229 = arith.constant 45 : index
    %c0_230 = arith.constant 0 : index
    %c0_231 = arith.constant 0 : index
    %363 = vector.load %arg2[%c45_229, %c0_230, %c0_231] : memref<64x4x128xf32, #tpu.memory_space<vmem>>, vector<1x4x128xf32>
    %364 = vector.shape_cast %363 : vector<1x4x128xf32> to vector<4x128xf32>
    %365 = vector.shape_cast %362 : vector<128xf32> to vector<1x128xf32>
    %366 = vector.broadcast %365 : vector<1x128xf32> to vector<4x128xf32>
    %367 = arith.mulf %366, %364 : vector<4x128xf32>
    %368 = arith.addf %360, %367 : vector<4x128xf32>
    %c0_232 = arith.constant 0 : index
    %c46 = arith.constant 46 : index
    %c0_233 = arith.constant 0 : index
    %369 = vector.load %arg1[%c0_232, %c46, %c0_233] : memref<2x64x128xf32, #tpu.memory_space<vmem>>, vector<1x1x128xf32>
    %370 = vector.shape_cast %369 : vector<1x1x128xf32> to vector<128xf32>
    %c46_234 = arith.constant 46 : index
    %c0_235 = arith.constant 0 : index
    %c0_236 = arith.constant 0 : index
    %371 = vector.load %arg2[%c46_234, %c0_235, %c0_236] : memref<64x4x128xf32, #tpu.memory_space<vmem>>, vector<1x4x128xf32>
    %372 = vector.shape_cast %371 : vector<1x4x128xf32> to vector<4x128xf32>
    %373 = vector.shape_cast %370 : vector<128xf32> to vector<1x128xf32>
    %374 = vector.broadcast %373 : vector<1x128xf32> to vector<4x128xf32>
    %375 = arith.mulf %374, %372 : vector<4x128xf32>
    %376 = arith.addf %368, %375 : vector<4x128xf32>
    %c0_237 = arith.constant 0 : index
    %c47 = arith.constant 47 : index
    %c0_238 = arith.constant 0 : index
    %377 = vector.load %arg1[%c0_237, %c47, %c0_238] : memref<2x64x128xf32, #tpu.memory_space<vmem>>, vector<1x1x128xf32>
    %378 = vector.shape_cast %377 : vector<1x1x128xf32> to vector<128xf32>
    %c47_239 = arith.constant 47 : index
    %c0_240 = arith.constant 0 : index
    %c0_241 = arith.constant 0 : index
    %379 = vector.load %arg2[%c47_239, %c0_240, %c0_241] : memref<64x4x128xf32, #tpu.memory_space<vmem>>, vector<1x4x128xf32>
    %380 = vector.shape_cast %379 : vector<1x4x128xf32> to vector<4x128xf32>
    %381 = vector.shape_cast %378 : vector<128xf32> to vector<1x128xf32>
    %382 = vector.broadcast %381 : vector<1x128xf32> to vector<4x128xf32>
    %383 = arith.mulf %382, %380 : vector<4x128xf32>
    %384 = arith.addf %376, %383 : vector<4x128xf32>
    %c0_242 = arith.constant 0 : index
    %c48 = arith.constant 48 : index
    %c0_243 = arith.constant 0 : index
    %385 = vector.load %arg1[%c0_242, %c48, %c0_243] : memref<2x64x128xf32, #tpu.memory_space<vmem>>, vector<1x1x128xf32>
    %386 = vector.shape_cast %385 : vector<1x1x128xf32> to vector<128xf32>
    %c48_244 = arith.constant 48 : index
    %c0_245 = arith.constant 0 : index
    %c0_246 = arith.constant 0 : index
    %387 = vector.load %arg2[%c48_244, %c0_245, %c0_246] : memref<64x4x128xf32, #tpu.memory_space<vmem>>, vector<1x4x128xf32>
    %388 = vector.shape_cast %387 : vector<1x4x128xf32> to vector<4x128xf32>
    %389 = vector.shape_cast %386 : vector<128xf32> to vector<1x128xf32>
    %390 = vector.broadcast %389 : vector<1x128xf32> to vector<4x128xf32>
    %391 = arith.mulf %390, %388 : vector<4x128xf32>
    %392 = arith.addf %384, %391 : vector<4x128xf32>
    %c0_247 = arith.constant 0 : index
    %c49 = arith.constant 49 : index
    %c0_248 = arith.constant 0 : index
    %393 = vector.load %arg1[%c0_247, %c49, %c0_248] : memref<2x64x128xf32, #tpu.memory_space<vmem>>, vector<1x1x128xf32>
    %394 = vector.shape_cast %393 : vector<1x1x128xf32> to vector<128xf32>
    %c49_249 = arith.constant 49 : index
    %c0_250 = arith.constant 0 : index
    %c0_251 = arith.constant 0 : index
    %395 = vector.load %arg2[%c49_249, %c0_250, %c0_251] : memref<64x4x128xf32, #tpu.memory_space<vmem>>, vector<1x4x128xf32>
    %396 = vector.shape_cast %395 : vector<1x4x128xf32> to vector<4x128xf32>
    %397 = vector.shape_cast %394 : vector<128xf32> to vector<1x128xf32>
    %398 = vector.broadcast %397 : vector<1x128xf32> to vector<4x128xf32>
    %399 = arith.mulf %398, %396 : vector<4x128xf32>
    %400 = arith.addf %392, %399 : vector<4x128xf32>
    %c0_252 = arith.constant 0 : index
    %c50 = arith.constant 50 : index
    %c0_253 = arith.constant 0 : index
    %401 = vector.load %arg1[%c0_252, %c50, %c0_253] : memref<2x64x128xf32, #tpu.memory_space<vmem>>, vector<1x1x128xf32>
    %402 = vector.shape_cast %401 : vector<1x1x128xf32> to vector<128xf32>
    %c50_254 = arith.constant 50 : index
    %c0_255 = arith.constant 0 : index
    %c0_256 = arith.constant 0 : index
    %403 = vector.load %arg2[%c50_254, %c0_255, %c0_256] : memref<64x4x128xf32, #tpu.memory_space<vmem>>, vector<1x4x128xf32>
    %404 = vector.shape_cast %403 : vector<1x4x128xf32> to vector<4x128xf32>
    %405 = vector.shape_cast %402 : vector<128xf32> to vector<1x128xf32>
    %406 = vector.broadcast %405 : vector<1x128xf32> to vector<4x128xf32>
    %407 = arith.mulf %406, %404 : vector<4x128xf32>
    %408 = arith.addf %400, %407 : vector<4x128xf32>
    %c0_257 = arith.constant 0 : index
    %c51 = arith.constant 51 : index
    %c0_258 = arith.constant 0 : index
    %409 = vector.load %arg1[%c0_257, %c51, %c0_258] : memref<2x64x128xf32, #tpu.memory_space<vmem>>, vector<1x1x128xf32>
    %410 = vector.shape_cast %409 : vector<1x1x128xf32> to vector<128xf32>
    %c51_259 = arith.constant 51 : index
    %c0_260 = arith.constant 0 : index
    %c0_261 = arith.constant 0 : index
    %411 = vector.load %arg2[%c51_259, %c0_260, %c0_261] : memref<64x4x128xf32, #tpu.memory_space<vmem>>, vector<1x4x128xf32>
    %412 = vector.shape_cast %411 : vector<1x4x128xf32> to vector<4x128xf32>
    %413 = vector.shape_cast %410 : vector<128xf32> to vector<1x128xf32>
    %414 = vector.broadcast %413 : vector<1x128xf32> to vector<4x128xf32>
    %415 = arith.mulf %414, %412 : vector<4x128xf32>
    %416 = arith.addf %408, %415 : vector<4x128xf32>
    %c0_262 = arith.constant 0 : index
    %c52 = arith.constant 52 : index
    %c0_263 = arith.constant 0 : index
    %417 = vector.load %arg1[%c0_262, %c52, %c0_263] : memref<2x64x128xf32, #tpu.memory_space<vmem>>, vector<1x1x128xf32>
    %418 = vector.shape_cast %417 : vector<1x1x128xf32> to vector<128xf32>
    %c52_264 = arith.constant 52 : index
    %c0_265 = arith.constant 0 : index
    %c0_266 = arith.constant 0 : index
    %419 = vector.load %arg2[%c52_264, %c0_265, %c0_266] : memref<64x4x128xf32, #tpu.memory_space<vmem>>, vector<1x4x128xf32>
    %420 = vector.shape_cast %419 : vector<1x4x128xf32> to vector<4x128xf32>
    %421 = vector.shape_cast %418 : vector<128xf32> to vector<1x128xf32>
    %422 = vector.broadcast %421 : vector<1x128xf32> to vector<4x128xf32>
    %423 = arith.mulf %422, %420 : vector<4x128xf32>
    %424 = arith.addf %416, %423 : vector<4x128xf32>
    %c0_267 = arith.constant 0 : index
    %c53 = arith.constant 53 : index
    %c0_268 = arith.constant 0 : index
    %425 = vector.load %arg1[%c0_267, %c53, %c0_268] : memref<2x64x128xf32, #tpu.memory_space<vmem>>, vector<1x1x128xf32>
    %426 = vector.shape_cast %425 : vector<1x1x128xf32> to vector<128xf32>
    %c53_269 = arith.constant 53 : index
    %c0_270 = arith.constant 0 : index
    %c0_271 = arith.constant 0 : index
    %427 = vector.load %arg2[%c53_269, %c0_270, %c0_271] : memref<64x4x128xf32, #tpu.memory_space<vmem>>, vector<1x4x128xf32>
    %428 = vector.shape_cast %427 : vector<1x4x128xf32> to vector<4x128xf32>
    %429 = vector.shape_cast %426 : vector<128xf32> to vector<1x128xf32>
    %430 = vector.broadcast %429 : vector<1x128xf32> to vector<4x128xf32>
    %431 = arith.mulf %430, %428 : vector<4x128xf32>
    %432 = arith.addf %424, %431 : vector<4x128xf32>
    %c0_272 = arith.constant 0 : index
    %c54 = arith.constant 54 : index
    %c0_273 = arith.constant 0 : index
    %433 = vector.load %arg1[%c0_272, %c54, %c0_273] : memref<2x64x128xf32, #tpu.memory_space<vmem>>, vector<1x1x128xf32>
    %434 = vector.shape_cast %433 : vector<1x1x128xf32> to vector<128xf32>
    %c54_274 = arith.constant 54 : index
    %c0_275 = arith.constant 0 : index
    %c0_276 = arith.constant 0 : index
    %435 = vector.load %arg2[%c54_274, %c0_275, %c0_276] : memref<64x4x128xf32, #tpu.memory_space<vmem>>, vector<1x4x128xf32>
    %436 = vector.shape_cast %435 : vector<1x4x128xf32> to vector<4x128xf32>
    %437 = vector.shape_cast %434 : vector<128xf32> to vector<1x128xf32>
    %438 = vector.broadcast %437 : vector<1x128xf32> to vector<4x128xf32>
    %439 = arith.mulf %438, %436 : vector<4x128xf32>
    %440 = arith.addf %432, %439 : vector<4x128xf32>
    %c0_277 = arith.constant 0 : index
    %c55 = arith.constant 55 : index
    %c0_278 = arith.constant 0 : index
    %441 = vector.load %arg1[%c0_277, %c55, %c0_278] : memref<2x64x128xf32, #tpu.memory_space<vmem>>, vector<1x1x128xf32>
    %442 = vector.shape_cast %441 : vector<1x1x128xf32> to vector<128xf32>
    %c55_279 = arith.constant 55 : index
    %c0_280 = arith.constant 0 : index
    %c0_281 = arith.constant 0 : index
    %443 = vector.load %arg2[%c55_279, %c0_280, %c0_281] : memref<64x4x128xf32, #tpu.memory_space<vmem>>, vector<1x4x128xf32>
    %444 = vector.shape_cast %443 : vector<1x4x128xf32> to vector<4x128xf32>
    %445 = vector.shape_cast %442 : vector<128xf32> to vector<1x128xf32>
    %446 = vector.broadcast %445 : vector<1x128xf32> to vector<4x128xf32>
    %447 = arith.mulf %446, %444 : vector<4x128xf32>
    %448 = arith.addf %440, %447 : vector<4x128xf32>
    %c0_282 = arith.constant 0 : index
    %c56 = arith.constant 56 : index
    %c0_283 = arith.constant 0 : index
    %449 = vector.load %arg1[%c0_282, %c56, %c0_283] : memref<2x64x128xf32, #tpu.memory_space<vmem>>, vector<1x1x128xf32>
    %450 = vector.shape_cast %449 : vector<1x1x128xf32> to vector<128xf32>
    %c56_284 = arith.constant 56 : index
    %c0_285 = arith.constant 0 : index
    %c0_286 = arith.constant 0 : index
    %451 = vector.load %arg2[%c56_284, %c0_285, %c0_286] : memref<64x4x128xf32, #tpu.memory_space<vmem>>, vector<1x4x128xf32>
    %452 = vector.shape_cast %451 : vector<1x4x128xf32> to vector<4x128xf32>
    %453 = vector.shape_cast %450 : vector<128xf32> to vector<1x128xf32>
    %454 = vector.broadcast %453 : vector<1x128xf32> to vector<4x128xf32>
    %455 = arith.mulf %454, %452 : vector<4x128xf32>
    %456 = arith.addf %448, %455 : vector<4x128xf32>
    %c0_287 = arith.constant 0 : index
    %c57 = arith.constant 57 : index
    %c0_288 = arith.constant 0 : index
    %457 = vector.load %arg1[%c0_287, %c57, %c0_288] : memref<2x64x128xf32, #tpu.memory_space<vmem>>, vector<1x1x128xf32>
    %458 = vector.shape_cast %457 : vector<1x1x128xf32> to vector<128xf32>
    %c57_289 = arith.constant 57 : index
    %c0_290 = arith.constant 0 : index
    %c0_291 = arith.constant 0 : index
    %459 = vector.load %arg2[%c57_289, %c0_290, %c0_291] : memref<64x4x128xf32, #tpu.memory_space<vmem>>, vector<1x4x128xf32>
    %460 = vector.shape_cast %459 : vector<1x4x128xf32> to vector<4x128xf32>
    %461 = vector.shape_cast %458 : vector<128xf32> to vector<1x128xf32>
    %462 = vector.broadcast %461 : vector<1x128xf32> to vector<4x128xf32>
    %463 = arith.mulf %462, %460 : vector<4x128xf32>
    %464 = arith.addf %456, %463 : vector<4x128xf32>
    %c0_292 = arith.constant 0 : index
    %c58 = arith.constant 58 : index
    %c0_293 = arith.constant 0 : index
    %465 = vector.load %arg1[%c0_292, %c58, %c0_293] : memref<2x64x128xf32, #tpu.memory_space<vmem>>, vector<1x1x128xf32>
    %466 = vector.shape_cast %465 : vector<1x1x128xf32> to vector<128xf32>
    %c58_294 = arith.constant 58 : index
    %c0_295 = arith.constant 0 : index
    %c0_296 = arith.constant 0 : index
    %467 = vector.load %arg2[%c58_294, %c0_295, %c0_296] : memref<64x4x128xf32, #tpu.memory_space<vmem>>, vector<1x4x128xf32>
    %468 = vector.shape_cast %467 : vector<1x4x128xf32> to vector<4x128xf32>
    %469 = vector.shape_cast %466 : vector<128xf32> to vector<1x128xf32>
    %470 = vector.broadcast %469 : vector<1x128xf32> to vector<4x128xf32>
    %471 = arith.mulf %470, %468 : vector<4x128xf32>
    %472 = arith.addf %464, %471 : vector<4x128xf32>
    %c0_297 = arith.constant 0 : index
    %c59 = arith.constant 59 : index
    %c0_298 = arith.constant 0 : index
    %473 = vector.load %arg1[%c0_297, %c59, %c0_298] : memref<2x64x128xf32, #tpu.memory_space<vmem>>, vector<1x1x128xf32>
    %474 = vector.shape_cast %473 : vector<1x1x128xf32> to vector<128xf32>
    %c59_299 = arith.constant 59 : index
    %c0_300 = arith.constant 0 : index
    %c0_301 = arith.constant 0 : index
    %475 = vector.load %arg2[%c59_299, %c0_300, %c0_301] : memref<64x4x128xf32, #tpu.memory_space<vmem>>, vector<1x4x128xf32>
    %476 = vector.shape_cast %475 : vector<1x4x128xf32> to vector<4x128xf32>
    %477 = vector.shape_cast %474 : vector<128xf32> to vector<1x128xf32>
    %478 = vector.broadcast %477 : vector<1x128xf32> to vector<4x128xf32>
    %479 = arith.mulf %478, %476 : vector<4x128xf32>
    %480 = arith.addf %472, %479 : vector<4x128xf32>
    %c0_302 = arith.constant 0 : index
    %c60 = arith.constant 60 : index
    %c0_303 = arith.constant 0 : index
    %481 = vector.load %arg1[%c0_302, %c60, %c0_303] : memref<2x64x128xf32, #tpu.memory_space<vmem>>, vector<1x1x128xf32>
    %482 = vector.shape_cast %481 : vector<1x1x128xf32> to vector<128xf32>
    %c60_304 = arith.constant 60 : index
    %c0_305 = arith.constant 0 : index
    %c0_306 = arith.constant 0 : index
    %483 = vector.load %arg2[%c60_304, %c0_305, %c0_306] : memref<64x4x128xf32, #tpu.memory_space<vmem>>, vector<1x4x128xf32>
    %484 = vector.shape_cast %483 : vector<1x4x128xf32> to vector<4x128xf32>
    %485 = vector.shape_cast %482 : vector<128xf32> to vector<1x128xf32>
    %486 = vector.broadcast %485 : vector<1x128xf32> to vector<4x128xf32>
    %487 = arith.mulf %486, %484 : vector<4x128xf32>
    %488 = arith.addf %480, %487 : vector<4x128xf32>
    %c0_307 = arith.constant 0 : index
    %c61 = arith.constant 61 : index
    %c0_308 = arith.constant 0 : index
    %489 = vector.load %arg1[%c0_307, %c61, %c0_308] : memref<2x64x128xf32, #tpu.memory_space<vmem>>, vector<1x1x128xf32>
    %490 = vector.shape_cast %489 : vector<1x1x128xf32> to vector<128xf32>
    %c61_309 = arith.constant 61 : index
    %c0_310 = arith.constant 0 : index
    %c0_311 = arith.constant 0 : index
    %491 = vector.load %arg2[%c61_309, %c0_310, %c0_311] : memref<64x4x128xf32, #tpu.memory_space<vmem>>, vector<1x4x128xf32>
    %492 = vector.shape_cast %491 : vector<1x4x128xf32> to vector<4x128xf32>
    %493 = vector.shape_cast %490 : vector<128xf32> to vector<1x128xf32>
    %494 = vector.broadcast %493 : vector<1x128xf32> to vector<4x128xf32>
    %495 = arith.mulf %494, %492 : vector<4x128xf32>
    %496 = arith.addf %488, %495 : vector<4x128xf32>
    %c0_312 = arith.constant 0 : index
    %c62 = arith.constant 62 : index
    %c0_313 = arith.constant 0 : index
    %497 = vector.load %arg1[%c0_312, %c62, %c0_313] : memref<2x64x128xf32, #tpu.memory_space<vmem>>, vector<1x1x128xf32>
    %498 = vector.shape_cast %497 : vector<1x1x128xf32> to vector<128xf32>
    %c62_314 = arith.constant 62 : index
    %c0_315 = arith.constant 0 : index
    %c0_316 = arith.constant 0 : index
    %499 = vector.load %arg2[%c62_314, %c0_315, %c0_316] : memref<64x4x128xf32, #tpu.memory_space<vmem>>, vector<1x4x128xf32>
    %500 = vector.shape_cast %499 : vector<1x4x128xf32> to vector<4x128xf32>
    %501 = vector.shape_cast %498 : vector<128xf32> to vector<1x128xf32>
    %502 = vector.broadcast %501 : vector<1x128xf32> to vector<4x128xf32>
    %503 = arith.mulf %502, %500 : vector<4x128xf32>
    %504 = arith.addf %496, %503 : vector<4x128xf32>
    %c0_317 = arith.constant 0 : index
    %c63 = arith.constant 63 : index
    %c0_318 = arith.constant 0 : index
    %505 = vector.load %arg1[%c0_317, %c63, %c0_318] : memref<2x64x128xf32, #tpu.memory_space<vmem>>, vector<1x1x128xf32>
    %506 = vector.shape_cast %505 : vector<1x1x128xf32> to vector<128xf32>
    %c63_319 = arith.constant 63 : index
    %c0_320 = arith.constant 0 : index
    %c0_321 = arith.constant 0 : index
    %507 = vector.load %arg2[%c63_319, %c0_320, %c0_321] : memref<64x4x128xf32, #tpu.memory_space<vmem>>, vector<1x4x128xf32>
    %508 = vector.shape_cast %507 : vector<1x4x128xf32> to vector<4x128xf32>
    %509 = vector.shape_cast %506 : vector<128xf32> to vector<1x128xf32>
    %510 = vector.broadcast %509 : vector<1x128xf32> to vector<4x128xf32>
    %511 = arith.mulf %510, %508 : vector<4x128xf32>
    %512 = arith.addf %504, %511 : vector<4x128xf32>
    %c0_322 = arith.constant 0 : index
    %c0_323 = arith.constant 0 : index
    %c0_324 = arith.constant 0 : index
    %513 = vector.load %arg4[%c0_322, %c0_323, %c0_324] : memref<2x4x128xf32, #tpu.memory_space<vmem>>, vector<1x4x128xf32>
    %514 = vector.shape_cast %513 : vector<1x4x128xf32> to vector<4x128xf32>
    %515 = vector.shape_cast %512 : vector<4x128xf32> to vector<1x4x128xf32>
    tpu.vector_store %arg4[%c0_322, %c0_323, %c0_324], %515 {strides = array<i32>} : memref<2x4x128xf32, #tpu.memory_space<vmem>>, vector<1x4x128xf32>,
    %c1_325 = arith.constant 1 : index
    %c0_326 = arith.constant 0 : index
    %c0_327 = arith.constant 0 : index
    %516 = vector.load %arg1[%c1_325, %c0_326, %c0_327] : memref<2x64x128xf32, #tpu.memory_space<vmem>>, vector<1x1x128xf32>
    %517 = vector.shape_cast %516 : vector<1x1x128xf32> to vector<128xf32>
    %c0_328 = arith.constant 0 : index
    %c0_329 = arith.constant 0 : index
    %c0_330 = arith.constant 0 : index
    %518 = vector.load %arg2[%c0_328, %c0_329, %c0_330] : memref<64x4x128xf32, #tpu.memory_space<vmem>>, vector<1x4x128xf32>
    %519 = vector.shape_cast %518 : vector<1x4x128xf32> to vector<4x128xf32>
    %520 = vector.shape_cast %517 : vector<128xf32> to vector<1x128xf32>
    %521 = vector.broadcast %520 : vector<1x128xf32> to vector<4x128xf32>
    %522 = arith.mulf %521, %519 : vector<4x128xf32>
    %523 = arith.addf %0, %522 : vector<4x128xf32>
    %c1_331 = arith.constant 1 : index
    %c1_332 = arith.constant 1 : index
    %c0_333 = arith.constant 0 : index
    %524 = vector.load %arg1[%c1_331, %c1_332, %c0_333] : memref<2x64x128xf32, #tpu.memory_space<vmem>>, vector<1x1x128xf32>
    %525 = vector.shape_cast %524 : vector<1x1x128xf32> to vector<128xf32>
    %c1_334 = arith.constant 1 : index
    %c0_335 = arith.constant 0 : index
    %c0_336 = arith.constant 0 : index
    %526 = vector.load %arg2[%c1_334, %c0_335, %c0_336] : memref<64x4x128xf32, #tpu.memory_space<vmem>>, vector<1x4x128xf32>
    %527 = vector.shape_cast %526 : vector<1x4x128xf32> to vector<4x128xf32>
    %528 = vector.shape_cast %525 : vector<128xf32> to vector<1x128xf32>
    %529 = vector.broadcast %528 : vector<1x128xf32> to vector<4x128xf32>
    %530 = arith.mulf %529, %527 : vector<4x128xf32>
    %531 = arith.addf %523, %530 : vector<4x128xf32>
    %c1_337 = arith.constant 1 : index
    %c2_338 = arith.constant 2 : index
    %c0_339 = arith.constant 0 : index
    %532 = vector.load %arg1[%c1_337, %c2_338, %c0_339] : memref<2x64x128xf32, #tpu.memory_space<vmem>>, vector<1x1x128xf32>
    %533 = vector.shape_cast %532 : vector<1x1x128xf32> to vector<128xf32>
    %c2_340 = arith.constant 2 : index
    %c0_341 = arith.constant 0 : index
    %c0_342 = arith.constant 0 : index
    %534 = vector.load %arg2[%c2_340, %c0_341, %c0_342] : memref<64x4x128xf32, #tpu.memory_space<vmem>>, vector<1x4x128xf32>
    %535 = vector.shape_cast %534 : vector<1x4x128xf32> to vector<4x128xf32>
    %536 = vector.shape_cast %533 : vector<128xf32> to vector<1x128xf32>
    %537 = vector.broadcast %536 : vector<1x128xf32> to vector<4x128xf32>
    %538 = arith.mulf %537, %535 : vector<4x128xf32>
    %539 = arith.addf %531, %538 : vector<4x128xf32>
    %c1_343 = arith.constant 1 : index
    %c3_344 = arith.constant 3 : index
    %c0_345 = arith.constant 0 : index
    %540 = vector.load %arg1[%c1_343, %c3_344, %c0_345] : memref<2x64x128xf32, #tpu.memory_space<vmem>>, vector<1x1x128xf32>
    %541 = vector.shape_cast %540 : vector<1x1x128xf32> to vector<128xf32>
    %c3_346 = arith.constant 3 : index
    %c0_347 = arith.constant 0 : index
    %c0_348 = arith.constant 0 : index
    %542 = vector.load %arg2[%c3_346, %c0_347, %c0_348] : memref<64x4x128xf32, #tpu.memory_space<vmem>>, vector<1x4x128xf32>
    %543 = vector.shape_cast %542 : vector<1x4x128xf32> to vector<4x128xf32>
    %544 = vector.shape_cast %541 : vector<128xf32> to vector<1x128xf32>
    %545 = vector.broadcast %544 : vector<1x128xf32> to vector<4x128xf32>
    %546 = arith.mulf %545, %543 : vector<4x128xf32>
    %547 = arith.addf %539, %546 : vector<4x128xf32>
    %c1_349 = arith.constant 1 : index
    %c4_350 = arith.constant 4 : index
    %c0_351 = arith.constant 0 : index
    %548 = vector.load %arg1[%c1_349, %c4_350, %c0_351] : memref<2x64x128xf32, #tpu.memory_space<vmem>>, vector<1x1x128xf32>
    %549 = vector.shape_cast %548 : vector<1x1x128xf32> to vector<128xf32>
    %c4_352 = arith.constant 4 : index
    %c0_353 = arith.constant 0 : index
    %c0_354 = arith.constant 0 : index
    %550 = vector.load %arg2[%c4_352, %c0_353, %c0_354] : memref<64x4x128xf32, #tpu.memory_space<vmem>>, vector<1x4x128xf32>
    %551 = vector.shape_cast %550 : vector<1x4x128xf32> to vector<4x128xf32>
    %552 = vector.shape_cast %549 : vector<128xf32> to vector<1x128xf32>
    %553 = vector.broadcast %552 : vector<1x128xf32> to vector<4x128xf32>
    %554 = arith.mulf %553, %551 : vector<4x128xf32>
    %555 = arith.addf %547, %554 : vector<4x128xf32>
    %c1_355 = arith.constant 1 : index
    %c5_356 = arith.constant 5 : index
    %c0_357 = arith.constant 0 : index
    %556 = vector.load %arg1[%c1_355, %c5_356, %c0_357] : memref<2x64x128xf32, #tpu.memory_space<vmem>>, vector<1x1x128xf32>
    %557 = vector.shape_cast %556 : vector<1x1x128xf32> to vector<128xf32>
    %c5_358 = arith.constant 5 : index
    %c0_359 = arith.constant 0 : index
    %c0_360 = arith.constant 0 : index
    %558 = vector.load %arg2[%c5_358, %c0_359, %c0_360] : memref<64x4x128xf32, #tpu.memory_space<vmem>>, vector<1x4x128xf32>
    %559 = vector.shape_cast %558 : vector<1x4x128xf32> to vector<4x128xf32>
    %560 = vector.shape_cast %557 : vector<128xf32> to vector<1x128xf32>
    %561 = vector.broadcast %560 : vector<1x128xf32> to vector<4x128xf32>
    %562 = arith.mulf %561, %559 : vector<4x128xf32>
    %563 = arith.addf %555, %562 : vector<4x128xf32>
    %c1_361 = arith.constant 1 : index
    %c6_362 = arith.constant 6 : index
    %c0_363 = arith.constant 0 : index
    %564 = vector.load %arg1[%c1_361, %c6_362, %c0_363] : memref<2x64x128xf32, #tpu.memory_space<vmem>>, vector<1x1x128xf32>
    %565 = vector.shape_cast %564 : vector<1x1x128xf32> to vector<128xf32>
    %c6_364 = arith.constant 6 : index
    %c0_365 = arith.constant 0 : index
    %c0_366 = arith.constant 0 : index
    %566 = vector.load %arg2[%c6_364, %c0_365, %c0_366] : memref<64x4x128xf32, #tpu.memory_space<vmem>>, vector<1x4x128xf32>
    %567 = vector.shape_cast %566 : vector<1x4x128xf32> to vector<4x128xf32>
    %568 = vector.shape_cast %565 : vector<128xf32> to vector<1x128xf32>
    %569 = vector.broadcast %568 : vector<1x128xf32> to vector<4x128xf32>
    %570 = arith.mulf %569, %567 : vector<4x128xf32>
    %571 = arith.addf %563, %570 : vector<4x128xf32>
    %c1_367 = arith.constant 1 : index
    %c7_368 = arith.constant 7 : index
    %c0_369 = arith.constant 0 : index
    %572 = vector.load %arg1[%c1_367, %c7_368, %c0_369] : memref<2x64x128xf32, #tpu.memory_space<vmem>>, vector<1x1x128xf32>
    %573 = vector.shape_cast %572 : vector<1x1x128xf32> to vector<128xf32>
    %c7_370 = arith.constant 7 : index
    %c0_371 = arith.constant 0 : index
    %c0_372 = arith.constant 0 : index
    %574 = vector.load %arg2[%c7_370, %c0_371, %c0_372] : memref<64x4x128xf32, #tpu.memory_space<vmem>>, vector<1x4x128xf32>
    %575 = vector.shape_cast %574 : vector<1x4x128xf32> to vector<4x128xf32>
    %576 = vector.shape_cast %573 : vector<128xf32> to vector<1x128xf32>
    %577 = vector.broadcast %576 : vector<1x128xf32> to vector<4x128xf32>
    %578 = arith.mulf %577, %575 : vector<4x128xf32>
    %579 = arith.addf %571, %578 : vector<4x128xf32>
    %c1_373 = arith.constant 1 : index
    %c8_374 = arith.constant 8 : index
    %c0_375 = arith.constant 0 : index
    %580 = vector.load %arg1[%c1_373, %c8_374, %c0_375] : memref<2x64x128xf32, #tpu.memory_space<vmem>>, vector<1x1x128xf32>
    %581 = vector.shape_cast %580 : vector<1x1x128xf32> to vector<128xf32>
    %c8_376 = arith.constant 8 : index
    %c0_377 = arith.constant 0 : index
    %c0_378 = arith.constant 0 : index
    %582 = vector.load %arg2[%c8_376, %c0_377, %c0_378] : memref<64x4x128xf32, #tpu.memory_space<vmem>>, vector<1x4x128xf32>
    %583 = vector.shape_cast %582 : vector<1x4x128xf32> to vector<4x128xf32>
    %584 = vector.shape_cast %581 : vector<128xf32> to vector<1x128xf32>
    %585 = vector.broadcast %584 : vector<1x128xf32> to vector<4x128xf32>
    %586 = arith.mulf %585, %583 : vector<4x128xf32>
    %587 = arith.addf %579, %586 : vector<4x128xf32>
    %c1_379 = arith.constant 1 : index
    %c9_380 = arith.constant 9 : index
    %c0_381 = arith.constant 0 : index
    %588 = vector.load %arg1[%c1_379, %c9_380, %c0_381] : memref<2x64x128xf32, #tpu.memory_space<vmem>>, vector<1x1x128xf32>
    %589 = vector.shape_cast %588 : vector<1x1x128xf32> to vector<128xf32>
    %c9_382 = arith.constant 9 : index
    %c0_383 = arith.constant 0 : index
    %c0_384 = arith.constant 0 : index
    %590 = vector.load %arg2[%c9_382, %c0_383, %c0_384] : memref<64x4x128xf32, #tpu.memory_space<vmem>>, vector<1x4x128xf32>
    %591 = vector.shape_cast %590 : vector<1x4x128xf32> to vector<4x128xf32>
    %592 = vector.shape_cast %589 : vector<128xf32> to vector<1x128xf32>
    %593 = vector.broadcast %592 : vector<1x128xf32> to vector<4x128xf32>
    %594 = arith.mulf %593, %591 : vector<4x128xf32>
    %595 = arith.addf %587, %594 : vector<4x128xf32>
    %c1_385 = arith.constant 1 : index
    %c10_386 = arith.constant 10 : index
    %c0_387 = arith.constant 0 : index
    %596 = vector.load %arg1[%c1_385, %c10_386, %c0_387] : memref<2x64x128xf32, #tpu.memory_space<vmem>>, vector<1x1x128xf32>
    %597 = vector.shape_cast %596 : vector<1x1x128xf32> to vector<128xf32>
    %c10_388 = arith.constant 10 : index
    %c0_389 = arith.constant 0 : index
    %c0_390 = arith.constant 0 : index
    %598 = vector.load %arg2[%c10_388, %c0_389, %c0_390] : memref<64x4x128xf32, #tpu.memory_space<vmem>>, vector<1x4x128xf32>
    %599 = vector.shape_cast %598 : vector<1x4x128xf32> to vector<4x128xf32>
    %600 = vector.shape_cast %597 : vector<128xf32> to vector<1x128xf32>
    %601 = vector.broadcast %600 : vector<1x128xf32> to vector<4x128xf32>
    %602 = arith.mulf %601, %599 : vector<4x128xf32>
    %603 = arith.addf %595, %602 : vector<4x128xf32>
    %c1_391 = arith.constant 1 : index
    %c11_392 = arith.constant 11 : index
    %c0_393 = arith.constant 0 : index
    %604 = vector.load %arg1[%c1_391, %c11_392, %c0_393] : memref<2x64x128xf32, #tpu.memory_space<vmem>>, vector<1x1x128xf32>
    %605 = vector.shape_cast %604 : vector<1x1x128xf32> to vector<128xf32>
    %c11_394 = arith.constant 11 : index
    %c0_395 = arith.constant 0 : index
    %c0_396 = arith.constant 0 : index
    %606 = vector.load %arg2[%c11_394, %c0_395, %c0_396] : memref<64x4x128xf32, #tpu.memory_space<vmem>>, vector<1x4x128xf32>
    %607 = vector.shape_cast %606 : vector<1x4x128xf32> to vector<4x128xf32>
    %608 = vector.shape_cast %605 : vector<128xf32> to vector<1x128xf32>
    %609 = vector.broadcast %608 : vector<1x128xf32> to vector<4x128xf32>
    %610 = arith.mulf %609, %607 : vector<4x128xf32>
    %611 = arith.addf %603, %610 : vector<4x128xf32>
    %c1_397 = arith.constant 1 : index
    %c12_398 = arith.constant 12 : index
    %c0_399 = arith.constant 0 : index
    %612 = vector.load %arg1[%c1_397, %c12_398, %c0_399] : memref<2x64x128xf32, #tpu.memory_space<vmem>>, vector<1x1x128xf32>
    %613 = vector.shape_cast %612 : vector<1x1x128xf32> to vector<128xf32>
    %c12_400 = arith.constant 12 : index
    %c0_401 = arith.constant 0 : index
    %c0_402 = arith.constant 0 : index
    %614 = vector.load %arg2[%c12_400, %c0_401, %c0_402] : memref<64x4x128xf32, #tpu.memory_space<vmem>>, vector<1x4x128xf32>
    %615 = vector.shape_cast %614 : vector<1x4x128xf32> to vector<4x128xf32>
    %616 = vector.shape_cast %613 : vector<128xf32> to vector<1x128xf32>
    %617 = vector.broadcast %616 : vector<1x128xf32> to vector<4x128xf32>
    %618 = arith.mulf %617, %615 : vector<4x128xf32>
    %619 = arith.addf %611, %618 : vector<4x128xf32>
    %c1_403 = arith.constant 1 : index
    %c13_404 = arith.constant 13 : index
    %c0_405 = arith.constant 0 : index
    %620 = vector.load %arg1[%c1_403, %c13_404, %c0_405] : memref<2x64x128xf32, #tpu.memory_space<vmem>>, vector<1x1x128xf32>
    %621 = vector.shape_cast %620 : vector<1x1x128xf32> to vector<128xf32>
    %c13_406 = arith.constant 13 : index
    %c0_407 = arith.constant 0 : index
    %c0_408 = arith.constant 0 : index
    %622 = vector.load %arg2[%c13_406, %c0_407, %c0_408] : memref<64x4x128xf32, #tpu.memory_space<vmem>>, vector<1x4x128xf32>
    %623 = vector.shape_cast %622 : vector<1x4x128xf32> to vector<4x128xf32>
    %624 = vector.shape_cast %621 : vector<128xf32> to vector<1x128xf32>
    %625 = vector.broadcast %624 : vector<1x128xf32> to vector<4x128xf32>
    %626 = arith.mulf %625, %623 : vector<4x128xf32>
    %627 = arith.addf %619, %626 : vector<4x128xf32>
    %c1_409 = arith.constant 1 : index
    %c14_410 = arith.constant 14 : index
    %c0_411 = arith.constant 0 : index
    %628 = vector.load %arg1[%c1_409, %c14_410, %c0_411] : memref<2x64x128xf32, #tpu.memory_space<vmem>>, vector<1x1x128xf32>
    %629 = vector.shape_cast %628 : vector<1x1x128xf32> to vector<128xf32>
    %c14_412 = arith.constant 14 : index
    %c0_413 = arith.constant 0 : index
    %c0_414 = arith.constant 0 : index
    %630 = vector.load %arg2[%c14_412, %c0_413, %c0_414] : memref<64x4x128xf32, #tpu.memory_space<vmem>>, vector<1x4x128xf32>
    %631 = vector.shape_cast %630 : vector<1x4x128xf32> to vector<4x128xf32>
    %632 = vector.shape_cast %629 : vector<128xf32> to vector<1x128xf32>
    %633 = vector.broadcast %632 : vector<1x128xf32> to vector<4x128xf32>
    %634 = arith.mulf %633, %631 : vector<4x128xf32>
    %635 = arith.addf %627, %634 : vector<4x128xf32>
    %c1_415 = arith.constant 1 : index
    %c15_416 = arith.constant 15 : index
    %c0_417 = arith.constant 0 : index
    %636 = vector.load %arg1[%c1_415, %c15_416, %c0_417] : memref<2x64x128xf32, #tpu.memory_space<vmem>>, vector<1x1x128xf32>
    %637 = vector.shape_cast %636 : vector<1x1x128xf32> to vector<128xf32>
    %c15_418 = arith.constant 15 : index
    %c0_419 = arith.constant 0 : index
    %c0_420 = arith.constant 0 : index
    %638 = vector.load %arg2[%c15_418, %c0_419, %c0_420] : memref<64x4x128xf32, #tpu.memory_space<vmem>>, vector<1x4x128xf32>
    %639 = vector.shape_cast %638 : vector<1x4x128xf32> to vector<4x128xf32>
    %640 = vector.shape_cast %637 : vector<128xf32> to vector<1x128xf32>
    %641 = vector.broadcast %640 : vector<1x128xf32> to vector<4x128xf32>
    %642 = arith.mulf %641, %639 : vector<4x128xf32>
    %643 = arith.addf %635, %642 : vector<4x128xf32>
    %c1_421 = arith.constant 1 : index
    %c16_422 = arith.constant 16 : index
    %c0_423 = arith.constant 0 : index
    %644 = vector.load %arg1[%c1_421, %c16_422, %c0_423] : memref<2x64x128xf32, #tpu.memory_space<vmem>>, vector<1x1x128xf32>
    %645 = vector.shape_cast %644 : vector<1x1x128xf32> to vector<128xf32>
    %c16_424 = arith.constant 16 : index
    %c0_425 = arith.constant 0 : index
    %c0_426 = arith.constant 0 : index
    %646 = vector.load %arg2[%c16_424, %c0_425, %c0_426] : memref<64x4x128xf32, #tpu.memory_space<vmem>>, vector<1x4x128xf32>
    %647 = vector.shape_cast %646 : vector<1x4x128xf32> to vector<4x128xf32>
    %648 = vector.shape_cast %645 : vector<128xf32> to vector<1x128xf32>
    %649 = vector.broadcast %648 : vector<1x128xf32> to vector<4x128xf32>
    %650 = arith.mulf %649, %647 : vector<4x128xf32>
    %651 = arith.addf %643, %650 : vector<4x128xf32>
    %c1_427 = arith.constant 1 : index
    %c17_428 = arith.constant 17 : index
    %c0_429 = arith.constant 0 : index
    %652 = vector.load %arg1[%c1_427, %c17_428, %c0_429] : memref<2x64x128xf32, #tpu.memory_space<vmem>>, vector<1x1x128xf32>
    %653 = vector.shape_cast %652 : vector<1x1x128xf32> to vector<128xf32>
    %c17_430 = arith.constant 17 : index
    %c0_431 = arith.constant 0 : index
    %c0_432 = arith.constant 0 : index
    %654 = vector.load %arg2[%c17_430, %c0_431, %c0_432] : memref<64x4x128xf32, #tpu.memory_space<vmem>>, vector<1x4x128xf32>
    %655 = vector.shape_cast %654 : vector<1x4x128xf32> to vector<4x128xf32>
    %656 = vector.shape_cast %653 : vector<128xf32> to vector<1x128xf32>
    %657 = vector.broadcast %656 : vector<1x128xf32> to vector<4x128xf32>
    %658 = arith.mulf %657, %655 : vector<4x128xf32>
    %659 = arith.addf %651, %658 : vector<4x128xf32>
    %c1_433 = arith.constant 1 : index
    %c18_434 = arith.constant 18 : index
    %c0_435 = arith.constant 0 : index
    %660 = vector.load %arg1[%c1_433, %c18_434, %c0_435] : memref<2x64x128xf32, #tpu.memory_space<vmem>>, vector<1x1x128xf32>
    %661 = vector.shape_cast %660 : vector<1x1x128xf32> to vector<128xf32>
    %c18_436 = arith.constant 18 : index
    %c0_437 = arith.constant 0 : index
    %c0_438 = arith.constant 0 : index
    %662 = vector.load %arg2[%c18_436, %c0_437, %c0_438] : memref<64x4x128xf32, #tpu.memory_space<vmem>>, vector<1x4x128xf32>
    %663 = vector.shape_cast %662 : vector<1x4x128xf32> to vector<4x128xf32>
    %664 = vector.shape_cast %661 : vector<128xf32> to vector<1x128xf32>
    %665 = vector.broadcast %664 : vector<1x128xf32> to vector<4x128xf32>
    %666 = arith.mulf %665, %663 : vector<4x128xf32>
    %667 = arith.addf %659, %666 : vector<4x128xf32>
    %c1_439 = arith.constant 1 : index
    %c19_440 = arith.constant 19 : index
    %c0_441 = arith.constant 0 : index
    %668 = vector.load %arg1[%c1_439, %c19_440, %c0_441] : memref<2x64x128xf32, #tpu.memory_space<vmem>>, vector<1x1x128xf32>
    %669 = vector.shape_cast %668 : vector<1x1x128xf32> to vector<128xf32>
    %c19_442 = arith.constant 19 : index
    %c0_443 = arith.constant 0 : index
    %c0_444 = arith.constant 0 : index
    %670 = vector.load %arg2[%c19_442, %c0_443, %c0_444] : memref<64x4x128xf32, #tpu.memory_space<vmem>>, vector<1x4x128xf32>
    %671 = vector.shape_cast %670 : vector<1x4x128xf32> to vector<4x128xf32>
    %672 = vector.shape_cast %669 : vector<128xf32> to vector<1x128xf32>
    %673 = vector.broadcast %672 : vector<1x128xf32> to vector<4x128xf32>
    %674 = arith.mulf %673, %671 : vector<4x128xf32>
    %675 = arith.addf %667, %674 : vector<4x128xf32>
    %c1_445 = arith.constant 1 : index
    %c20_446 = arith.constant 20 : index
    %c0_447 = arith.constant 0 : index
    %676 = vector.load %arg1[%c1_445, %c20_446, %c0_447] : memref<2x64x128xf32, #tpu.memory_space<vmem>>, vector<1x1x128xf32>
    %677 = vector.shape_cast %676 : vector<1x1x128xf32> to vector<128xf32>
    %c20_448 = arith.constant 20 : index
    %c0_449 = arith.constant 0 : index
    %c0_450 = arith.constant 0 : index
    %678 = vector.load %arg2[%c20_448, %c0_449, %c0_450] : memref<64x4x128xf32, #tpu.memory_space<vmem>>, vector<1x4x128xf32>
    %679 = vector.shape_cast %678 : vector<1x4x128xf32> to vector<4x128xf32>
    %680 = vector.shape_cast %677 : vector<128xf32> to vector<1x128xf32>
    %681 = vector.broadcast %680 : vector<1x128xf32> to vector<4x128xf32>
    %682 = arith.mulf %681, %679 : vector<4x128xf32>
    %683 = arith.addf %675, %682 : vector<4x128xf32>
    %c1_451 = arith.constant 1 : index
    %c21_452 = arith.constant 21 : index
    %c0_453 = arith.constant 0 : index
    %684 = vector.load %arg1[%c1_451, %c21_452, %c0_453] : memref<2x64x128xf32, #tpu.memory_space<vmem>>, vector<1x1x128xf32>
    %685 = vector.shape_cast %684 : vector<1x1x128xf32> to vector<128xf32>
    %c21_454 = arith.constant 21 : index
    %c0_455 = arith.constant 0 : index
    %c0_456 = arith.constant 0 : index
    %686 = vector.load %arg2[%c21_454, %c0_455, %c0_456] : memref<64x4x128xf32, #tpu.memory_space<vmem>>, vector<1x4x128xf32>
    %687 = vector.shape_cast %686 : vector<1x4x128xf32> to vector<4x128xf32>
    %688 = vector.shape_cast %685 : vector<128xf32> to vector<1x128xf32>
    %689 = vector.broadcast %688 : vector<1x128xf32> to vector<4x128xf32>
    %690 = arith.mulf %689, %687 : vector<4x128xf32>
    %691 = arith.addf %683, %690 : vector<4x128xf32>
    %c1_457 = arith.constant 1 : index
    %c22_458 = arith.constant 22 : index
    %c0_459 = arith.constant 0 : index
    %692 = vector.load %arg1[%c1_457, %c22_458, %c0_459] : memref<2x64x128xf32, #tpu.memory_space<vmem>>, vector<1x1x128xf32>
    %693 = vector.shape_cast %692 : vector<1x1x128xf32> to vector<128xf32>
    %c22_460 = arith.constant 22 : index
    %c0_461 = arith.constant 0 : index
    %c0_462 = arith.constant 0 : index
    %694 = vector.load %arg2[%c22_460, %c0_461, %c0_462] : memref<64x4x128xf32, #tpu.memory_space<vmem>>, vector<1x4x128xf32>
    %695 = vector.shape_cast %694 : vector<1x4x128xf32> to vector<4x128xf32>
    %696 = vector.shape_cast %693 : vector<128xf32> to vector<1x128xf32>
    %697 = vector.broadcast %696 : vector<1x128xf32> to vector<4x128xf32>
    %698 = arith.mulf %697, %695 : vector<4x128xf32>
    %699 = arith.addf %691, %698 : vector<4x128xf32>
    %c1_463 = arith.constant 1 : index
    %c23_464 = arith.constant 23 : index
    %c0_465 = arith.constant 0 : index
    %700 = vector.load %arg1[%c1_463, %c23_464, %c0_465] : memref<2x64x128xf32, #tpu.memory_space<vmem>>, vector<1x1x128xf32>
    %701 = vector.shape_cast %700 : vector<1x1x128xf32> to vector<128xf32>
    %c23_466 = arith.constant 23 : index
    %c0_467 = arith.constant 0 : index
    %c0_468 = arith.constant 0 : index
    %702 = vector.load %arg2[%c23_466, %c0_467, %c0_468] : memref<64x4x128xf32, #tpu.memory_space<vmem>>, vector<1x4x128xf32>
    %703 = vector.shape_cast %702 : vector<1x4x128xf32> to vector<4x128xf32>
    %704 = vector.shape_cast %701 : vector<128xf32> to vector<1x128xf32>
    %705 = vector.broadcast %704 : vector<1x128xf32> to vector<4x128xf32>
    %706 = arith.mulf %705, %703 : vector<4x128xf32>
    %707 = arith.addf %699, %706 : vector<4x128xf32>
    %c1_469 = arith.constant 1 : index
    %c24_470 = arith.constant 24 : index
    %c0_471 = arith.constant 0 : index
    %708 = vector.load %arg1[%c1_469, %c24_470, %c0_471] : memref<2x64x128xf32, #tpu.memory_space<vmem>>, vector<1x1x128xf32>
    %709 = vector.shape_cast %708 : vector<1x1x128xf32> to vector<128xf32>
    %c24_472 = arith.constant 24 : index
    %c0_473 = arith.constant 0 : index
    %c0_474 = arith.constant 0 : index
    %710 = vector.load %arg2[%c24_472, %c0_473, %c0_474] : memref<64x4x128xf32, #tpu.memory_space<vmem>>, vector<1x4x128xf32>
    %711 = vector.shape_cast %710 : vector<1x4x128xf32> to vector<4x128xf32>
    %712 = vector.shape_cast %709 : vector<128xf32> to vector<1x128xf32>
    %713 = vector.broadcast %712 : vector<1x128xf32> to vector<4x128xf32>
    %714 = arith.mulf %713, %711 : vector<4x128xf32>
    %715 = arith.addf %707, %714 : vector<4x128xf32>
    %c1_475 = arith.constant 1 : index
    %c25_476 = arith.constant 25 : index
    %c0_477 = arith.constant 0 : index
    %716 = vector.load %arg1[%c1_475, %c25_476, %c0_477] : memref<2x64x128xf32, #tpu.memory_space<vmem>>, vector<1x1x128xf32>
    %717 = vector.shape_cast %716 : vector<1x1x128xf32> to vector<128xf32>
    %c25_478 = arith.constant 25 : index
    %c0_479 = arith.constant 0 : index
    %c0_480 = arith.constant 0 : index
    %718 = vector.load %arg2[%c25_478, %c0_479, %c0_480] : memref<64x4x128xf32, #tpu.memory_space<vmem>>, vector<1x4x128xf32>
    %719 = vector.shape_cast %718 : vector<1x4x128xf32> to vector<4x128xf32>
    %720 = vector.shape_cast %717 : vector<128xf32> to vector<1x128xf32>
    %721 = vector.broadcast %720 : vector<1x128xf32> to vector<4x128xf32>
    %722 = arith.mulf %721, %719 : vector<4x128xf32>
    %723 = arith.addf %715, %722 : vector<4x128xf32>
    %c1_481 = arith.constant 1 : index
    %c26_482 = arith.constant 26 : index
    %c0_483 = arith.constant 0 : index
    %724 = vector.load %arg1[%c1_481, %c26_482, %c0_483] : memref<2x64x128xf32, #tpu.memory_space<vmem>>, vector<1x1x128xf32>
    %725 = vector.shape_cast %724 : vector<1x1x128xf32> to vector<128xf32>
    %c26_484 = arith.constant 26 : index
    %c0_485 = arith.constant 0 : index
    %c0_486 = arith.constant 0 : index
    %726 = vector.load %arg2[%c26_484, %c0_485, %c0_486] : memref<64x4x128xf32, #tpu.memory_space<vmem>>, vector<1x4x128xf32>
    %727 = vector.shape_cast %726 : vector<1x4x128xf32> to vector<4x128xf32>
    %728 = vector.shape_cast %725 : vector<128xf32> to vector<1x128xf32>
    %729 = vector.broadcast %728 : vector<1x128xf32> to vector<4x128xf32>
    %730 = arith.mulf %729, %727 : vector<4x128xf32>
    %731 = arith.addf %723, %730 : vector<4x128xf32>
    %c1_487 = arith.constant 1 : index
    %c27_488 = arith.constant 27 : index
    %c0_489 = arith.constant 0 : index
    %732 = vector.load %arg1[%c1_487, %c27_488, %c0_489] : memref<2x64x128xf32, #tpu.memory_space<vmem>>, vector<1x1x128xf32>
    %733 = vector.shape_cast %732 : vector<1x1x128xf32> to vector<128xf32>
    %c27_490 = arith.constant 27 : index
    %c0_491 = arith.constant 0 : index
    %c0_492 = arith.constant 0 : index
    %734 = vector.load %arg2[%c27_490, %c0_491, %c0_492] : memref<64x4x128xf32, #tpu.memory_space<vmem>>, vector<1x4x128xf32>
    %735 = vector.shape_cast %734 : vector<1x4x128xf32> to vector<4x128xf32>
    %736 = vector.shape_cast %733 : vector<128xf32> to vector<1x128xf32>
    %737 = vector.broadcast %736 : vector<1x128xf32> to vector<4x128xf32>
    %738 = arith.mulf %737, %735 : vector<4x128xf32>
    %739 = arith.addf %731, %738 : vector<4x128xf32>
    %c1_493 = arith.constant 1 : index
    %c28_494 = arith.constant 28 : index
    %c0_495 = arith.constant 0 : index
    %740 = vector.load %arg1[%c1_493, %c28_494, %c0_495] : memref<2x64x128xf32, #tpu.memory_space<vmem>>, vector<1x1x128xf32>
    %741 = vector.shape_cast %740 : vector<1x1x128xf32> to vector<128xf32>
    %c28_496 = arith.constant 28 : index
    %c0_497 = arith.constant 0 : index
    %c0_498 = arith.constant 0 : index
    %742 = vector.load %arg2[%c28_496, %c0_497, %c0_498] : memref<64x4x128xf32, #tpu.memory_space<vmem>>, vector<1x4x128xf32>
    %743 = vector.shape_cast %742 : vector<1x4x128xf32> to vector<4x128xf32>
    %744 = vector.shape_cast %741 : vector<128xf32> to vector<1x128xf32>
    %745 = vector.broadcast %744 : vector<1x128xf32> to vector<4x128xf32>
    %746 = arith.mulf %745, %743 : vector<4x128xf32>
    %747 = arith.addf %739, %746 : vector<4x128xf32>
    %c1_499 = arith.constant 1 : index
    %c29_500 = arith.constant 29 : index
    %c0_501 = arith.constant 0 : index
    %748 = vector.load %arg1[%c1_499, %c29_500, %c0_501] : memref<2x64x128xf32, #tpu.memory_space<vmem>>, vector<1x1x128xf32>
    %749 = vector.shape_cast %748 : vector<1x1x128xf32> to vector<128xf32>
    %c29_502 = arith.constant 29 : index
    %c0_503 = arith.constant 0 : index
    %c0_504 = arith.constant 0 : index
    %750 = vector.load %arg2[%c29_502, %c0_503, %c0_504] : memref<64x4x128xf32, #tpu.memory_space<vmem>>, vector<1x4x128xf32>
    %751 = vector.shape_cast %750 : vector<1x4x128xf32> to vector<4x128xf32>
    %752 = vector.shape_cast %749 : vector<128xf32> to vector<1x128xf32>
    %753 = vector.broadcast %752 : vector<1x128xf32> to vector<4x128xf32>
    %754 = arith.mulf %753, %751 : vector<4x128xf32>
    %755 = arith.addf %747, %754 : vector<4x128xf32>
    %c1_505 = arith.constant 1 : index
    %c30_506 = arith.constant 30 : index
    %c0_507 = arith.constant 0 : index
    %756 = vector.load %arg1[%c1_505, %c30_506, %c0_507] : memref<2x64x128xf32, #tpu.memory_space<vmem>>, vector<1x1x128xf32>
    %757 = vector.shape_cast %756 : vector<1x1x128xf32> to vector<128xf32>
    %c30_508 = arith.constant 30 : index
    %c0_509 = arith.constant 0 : index
    %c0_510 = arith.constant 0 : index
    %758 = vector.load %arg2[%c30_508, %c0_509, %c0_510] : memref<64x4x128xf32, #tpu.memory_space<vmem>>, vector<1x4x128xf32>
    %759 = vector.shape_cast %758 : vector<1x4x128xf32> to vector<4x128xf32>
    %760 = vector.shape_cast %757 : vector<128xf32> to vector<1x128xf32>
    %761 = vector.broadcast %760 : vector<1x128xf32> to vector<4x128xf32>
    %762 = arith.mulf %761, %759 : vector<4x128xf32>
    %763 = arith.addf %755, %762 : vector<4x128xf32>
    %c1_511 = arith.constant 1 : index
    %c31_512 = arith.constant 31 : index
    %c0_513 = arith.constant 0 : index
    %764 = vector.load %arg1[%c1_511, %c31_512, %c0_513] : memref<2x64x128xf32, #tpu.memory_space<vmem>>, vector<1x1x128xf32>
    %765 = vector.shape_cast %764 : vector<1x1x128xf32> to vector<128xf32>
    %c31_514 = arith.constant 31 : index
    %c0_515 = arith.constant 0 : index
    %c0_516 = arith.constant 0 : index
    %766 = vector.load %arg2[%c31_514, %c0_515, %c0_516] : memref<64x4x128xf32, #tpu.memory_space<vmem>>, vector<1x4x128xf32>
    %767 = vector.shape_cast %766 : vector<1x4x128xf32> to vector<4x128xf32>
    %768 = vector.shape_cast %765 : vector<128xf32> to vector<1x128xf32>
    %769 = vector.broadcast %768 : vector<1x128xf32> to vector<4x128xf32>
    %770 = arith.mulf %769, %767 : vector<4x128xf32>
    %771 = arith.addf %763, %770 : vector<4x128xf32>
    %c1_517 = arith.constant 1 : index
    %c32_518 = arith.constant 32 : index
    %c0_519 = arith.constant 0 : index
    %772 = vector.load %arg1[%c1_517, %c32_518, %c0_519] : memref<2x64x128xf32, #tpu.memory_space<vmem>>, vector<1x1x128xf32>
    %773 = vector.shape_cast %772 : vector<1x1x128xf32> to vector<128xf32>
    %c32_520 = arith.constant 32 : index
    %c0_521 = arith.constant 0 : index
    %c0_522 = arith.constant 0 : index
    %774 = vector.load %arg2[%c32_520, %c0_521, %c0_522] : memref<64x4x128xf32, #tpu.memory_space<vmem>>, vector<1x4x128xf32>
    %775 = vector.shape_cast %774 : vector<1x4x128xf32> to vector<4x128xf32>
    %776 = vector.shape_cast %773 : vector<128xf32> to vector<1x128xf32>
    %777 = vector.broadcast %776 : vector<1x128xf32> to vector<4x128xf32>
    %778 = arith.mulf %777, %775 : vector<4x128xf32>
    %779 = arith.addf %771, %778 : vector<4x128xf32>
    %c1_523 = arith.constant 1 : index
    %c33_524 = arith.constant 33 : index
    %c0_525 = arith.constant 0 : index
    %780 = vector.load %arg1[%c1_523, %c33_524, %c0_525] : memref<2x64x128xf32, #tpu.memory_space<vmem>>, vector<1x1x128xf32>
    %781 = vector.shape_cast %780 : vector<1x1x128xf32> to vector<128xf32>
    %c33_526 = arith.constant 33 : index
    %c0_527 = arith.constant 0 : index
    %c0_528 = arith.constant 0 : index
    %782 = vector.load %arg2[%c33_526, %c0_527, %c0_528] : memref<64x4x128xf32, #tpu.memory_space<vmem>>, vector<1x4x128xf32>
    %783 = vector.shape_cast %782 : vector<1x4x128xf32> to vector<4x128xf32>
    %784 = vector.shape_cast %781 : vector<128xf32> to vector<1x128xf32>
    %785 = vector.broadcast %784 : vector<1x128xf32> to vector<4x128xf32>
    %786 = arith.mulf %785, %783 : vector<4x128xf32>
    %787 = arith.addf %779, %786 : vector<4x128xf32>
    %c1_529 = arith.constant 1 : index
    %c34_530 = arith.constant 34 : index
    %c0_531 = arith.constant 0 : index
    %788 = vector.load %arg1[%c1_529, %c34_530, %c0_531] : memref<2x64x128xf32, #tpu.memory_space<vmem>>, vector<1x1x128xf32>
    %789 = vector.shape_cast %788 : vector<1x1x128xf32> to vector<128xf32>
    %c34_532 = arith.constant 34 : index
    %c0_533 = arith.constant 0 : index
    %c0_534 = arith.constant 0 : index
    %790 = vector.load %arg2[%c34_532, %c0_533, %c0_534] : memref<64x4x128xf32, #tpu.memory_space<vmem>>, vector<1x4x128xf32>
    %791 = vector.shape_cast %790 : vector<1x4x128xf32> to vector<4x128xf32>
    %792 = vector.shape_cast %789 : vector<128xf32> to vector<1x128xf32>
    %793 = vector.broadcast %792 : vector<1x128xf32> to vector<4x128xf32>
    %794 = arith.mulf %793, %791 : vector<4x128xf32>
    %795 = arith.addf %787, %794 : vector<4x128xf32>
    %c1_535 = arith.constant 1 : index
    %c35_536 = arith.constant 35 : index
    %c0_537 = arith.constant 0 : index
    %796 = vector.load %arg1[%c1_535, %c35_536, %c0_537] : memref<2x64x128xf32, #tpu.memory_space<vmem>>, vector<1x1x128xf32>
    %797 = vector.shape_cast %796 : vector<1x1x128xf32> to vector<128xf32>
    %c35_538 = arith.constant 35 : index
    %c0_539 = arith.constant 0 : index
    %c0_540 = arith.constant 0 : index
    %798 = vector.load %arg2[%c35_538, %c0_539, %c0_540] : memref<64x4x128xf32, #tpu.memory_space<vmem>>, vector<1x4x128xf32>
    %799 = vector.shape_cast %798 : vector<1x4x128xf32> to vector<4x128xf32>
    %800 = vector.shape_cast %797 : vector<128xf32> to vector<1x128xf32>
    %801 = vector.broadcast %800 : vector<1x128xf32> to vector<4x128xf32>
    %802 = arith.mulf %801, %799 : vector<4x128xf32>
    %803 = arith.addf %795, %802 : vector<4x128xf32>
    %c1_541 = arith.constant 1 : index
    %c36_542 = arith.constant 36 : index
    %c0_543 = arith.constant 0 : index
    %804 = vector.load %arg1[%c1_541, %c36_542, %c0_543] : memref<2x64x128xf32, #tpu.memory_space<vmem>>, vector<1x1x128xf32>
    %805 = vector.shape_cast %804 : vector<1x1x128xf32> to vector<128xf32>
    %c36_544 = arith.constant 36 : index
    %c0_545 = arith.constant 0 : index
    %c0_546 = arith.constant 0 : index
    %806 = vector.load %arg2[%c36_544, %c0_545, %c0_546] : memref<64x4x128xf32, #tpu.memory_space<vmem>>, vector<1x4x128xf32>
    %807 = vector.shape_cast %806 : vector<1x4x128xf32> to vector<4x128xf32>
    %808 = vector.shape_cast %805 : vector<128xf32> to vector<1x128xf32>
    %809 = vector.broadcast %808 : vector<1x128xf32> to vector<4x128xf32>
    %810 = arith.mulf %809, %807 : vector<4x128xf32>
    %811 = arith.addf %803, %810 : vector<4x128xf32>
    %c1_547 = arith.constant 1 : index
    %c37_548 = arith.constant 37 : index
    %c0_549 = arith.constant 0 : index
    %812 = vector.load %arg1[%c1_547, %c37_548, %c0_549] : memref<2x64x128xf32, #tpu.memory_space<vmem>>, vector<1x1x128xf32>
    %813 = vector.shape_cast %812 : vector<1x1x128xf32> to vector<128xf32>
    %c37_550 = arith.constant 37 : index
    %c0_551 = arith.constant 0 : index
    %c0_552 = arith.constant 0 : index
    %814 = vector.load %arg2[%c37_550, %c0_551, %c0_552] : memref<64x4x128xf32, #tpu.memory_space<vmem>>, vector<1x4x128xf32>
    %815 = vector.shape_cast %814 : vector<1x4x128xf32> to vector<4x128xf32>
    %816 = vector.shape_cast %813 : vector<128xf32> to vector<1x128xf32>
    %817 = vector.broadcast %816 : vector<1x128xf32> to vector<4x128xf32>
    %818 = arith.mulf %817, %815 : vector<4x128xf32>
    %819 = arith.addf %811, %818 : vector<4x128xf32>
    %c1_553 = arith.constant 1 : index
    %c38_554 = arith.constant 38 : index
    %c0_555 = arith.constant 0 : index
    %820 = vector.load %arg1[%c1_553, %c38_554, %c0_555] : memref<2x64x128xf32, #tpu.memory_space<vmem>>, vector<1x1x128xf32>
    %821 = vector.shape_cast %820 : vector<1x1x128xf32> to vector<128xf32>
    %c38_556 = arith.constant 38 : index
    %c0_557 = arith.constant 0 : index
    %c0_558 = arith.constant 0 : index
    %822 = vector.load %arg2[%c38_556, %c0_557, %c0_558] : memref<64x4x128xf32, #tpu.memory_space<vmem>>, vector<1x4x128xf32>
    %823 = vector.shape_cast %822 : vector<1x4x128xf32> to vector<4x128xf32>
    %824 = vector.shape_cast %821 : vector<128xf32> to vector<1x128xf32>
    %825 = vector.broadcast %824 : vector<1x128xf32> to vector<4x128xf32>
    %826 = arith.mulf %825, %823 : vector<4x128xf32>
    %827 = arith.addf %819, %826 : vector<4x128xf32>
    %c1_559 = arith.constant 1 : index
    %c39_560 = arith.constant 39 : index
    %c0_561 = arith.constant 0 : index
    %828 = vector.load %arg1[%c1_559, %c39_560, %c0_561] : memref<2x64x128xf32, #tpu.memory_space<vmem>>, vector<1x1x128xf32>
    %829 = vector.shape_cast %828 : vector<1x1x128xf32> to vector<128xf32>
    %c39_562 = arith.constant 39 : index
    %c0_563 = arith.constant 0 : index
    %c0_564 = arith.constant 0 : index
    %830 = vector.load %arg2[%c39_562, %c0_563, %c0_564] : memref<64x4x128xf32, #tpu.memory_space<vmem>>, vector<1x4x128xf32>
    %831 = vector.shape_cast %830 : vector<1x4x128xf32> to vector<4x128xf32>
    %832 = vector.shape_cast %829 : vector<128xf32> to vector<1x128xf32>
    %833 = vector.broadcast %832 : vector<1x128xf32> to vector<4x128xf32>
    %834 = arith.mulf %833, %831 : vector<4x128xf32>
    %835 = arith.addf %827, %834 : vector<4x128xf32>
    %c1_565 = arith.constant 1 : index
    %c40_566 = arith.constant 40 : index
    %c0_567 = arith.constant 0 : index
    %836 = vector.load %arg1[%c1_565, %c40_566, %c0_567] : memref<2x64x128xf32, #tpu.memory_space<vmem>>, vector<1x1x128xf32>
    %837 = vector.shape_cast %836 : vector<1x1x128xf32> to vector<128xf32>
    %c40_568 = arith.constant 40 : index
    %c0_569 = arith.constant 0 : index
    %c0_570 = arith.constant 0 : index
    %838 = vector.load %arg2[%c40_568, %c0_569, %c0_570] : memref<64x4x128xf32, #tpu.memory_space<vmem>>, vector<1x4x128xf32>
    %839 = vector.shape_cast %838 : vector<1x4x128xf32> to vector<4x128xf32>
    %840 = vector.shape_cast %837 : vector<128xf32> to vector<1x128xf32>
    %841 = vector.broadcast %840 : vector<1x128xf32> to vector<4x128xf32>
    %842 = arith.mulf %841, %839 : vector<4x128xf32>
    %843 = arith.addf %835, %842 : vector<4x128xf32>
    %c1_571 = arith.constant 1 : index
    %c41_572 = arith.constant 41 : index
    %c0_573 = arith.constant 0 : index
    %844 = vector.load %arg1[%c1_571, %c41_572, %c0_573] : memref<2x64x128xf32, #tpu.memory_space<vmem>>, vector<1x1x128xf32>
    %845 = vector.shape_cast %844 : vector<1x1x128xf32> to vector<128xf32>
    %c41_574 = arith.constant 41 : index
    %c0_575 = arith.constant 0 : index
    %c0_576 = arith.constant 0 : index
    %846 = vector.load %arg2[%c41_574, %c0_575, %c0_576] : memref<64x4x128xf32, #tpu.memory_space<vmem>>, vector<1x4x128xf32>
    %847 = vector.shape_cast %846 : vector<1x4x128xf32> to vector<4x128xf32>
    %848 = vector.shape_cast %845 : vector<128xf32> to vector<1x128xf32>
    %849 = vector.broadcast %848 : vector<1x128xf32> to vector<4x128xf32>
    %850 = arith.mulf %849, %847 : vector<4x128xf32>
    %851 = arith.addf %843, %850 : vector<4x128xf32>
    %c1_577 = arith.constant 1 : index
    %c42_578 = arith.constant 42 : index
    %c0_579 = arith.constant 0 : index
    %852 = vector.load %arg1[%c1_577, %c42_578, %c0_579] : memref<2x64x128xf32, #tpu.memory_space<vmem>>, vector<1x1x128xf32>
    %853 = vector.shape_cast %852 : vector<1x1x128xf32> to vector<128xf32>
    %c42_580 = arith.constant 42 : index
    %c0_581 = arith.constant 0 : index
    %c0_582 = arith.constant 0 : index
    %854 = vector.load %arg2[%c42_580, %c0_581, %c0_582] : memref<64x4x128xf32, #tpu.memory_space<vmem>>, vector<1x4x128xf32>
    %855 = vector.shape_cast %854 : vector<1x4x128xf32> to vector<4x128xf32>
    %856 = vector.shape_cast %853 : vector<128xf32> to vector<1x128xf32>
    %857 = vector.broadcast %856 : vector<1x128xf32> to vector<4x128xf32>
    %858 = arith.mulf %857, %855 : vector<4x128xf32>
    %859 = arith.addf %851, %858 : vector<4x128xf32>
    %c1_583 = arith.constant 1 : index
    %c43_584 = arith.constant 43 : index
    %c0_585 = arith.constant 0 : index
    %860 = vector.load %arg1[%c1_583, %c43_584, %c0_585] : memref<2x64x128xf32, #tpu.memory_space<vmem>>, vector<1x1x128xf32>
    %861 = vector.shape_cast %860 : vector<1x1x128xf32> to vector<128xf32>
    %c43_586 = arith.constant 43 : index
    %c0_587 = arith.constant 0 : index
    %c0_588 = arith.constant 0 : index
    %862 = vector.load %arg2[%c43_586, %c0_587, %c0_588] : memref<64x4x128xf32, #tpu.memory_space<vmem>>, vector<1x4x128xf32>
    %863 = vector.shape_cast %862 : vector<1x4x128xf32> to vector<4x128xf32>
    %864 = vector.shape_cast %861 : vector<128xf32> to vector<1x128xf32>
    %865 = vector.broadcast %864 : vector<1x128xf32> to vector<4x128xf32>
    %866 = arith.mulf %865, %863 : vector<4x128xf32>
    %867 = arith.addf %859, %866 : vector<4x128xf32>
    %c1_589 = arith.constant 1 : index
    %c44_590 = arith.constant 44 : index
    %c0_591 = arith.constant 0 : index
    %868 = vector.load %arg1[%c1_589, %c44_590, %c0_591] : memref<2x64x128xf32, #tpu.memory_space<vmem>>, vector<1x1x128xf32>
    %869 = vector.shape_cast %868 : vector<1x1x128xf32> to vector<128xf32>
    %c44_592 = arith.constant 44 : index
    %c0_593 = arith.constant 0 : index
    %c0_594 = arith.constant 0 : index
    %870 = vector.load %arg2[%c44_592, %c0_593, %c0_594] : memref<64x4x128xf32, #tpu.memory_space<vmem>>, vector<1x4x128xf32>
    %871 = vector.shape_cast %870 : vector<1x4x128xf32> to vector<4x128xf32>
    %872 = vector.shape_cast %869 : vector<128xf32> to vector<1x128xf32>
    %873 = vector.broadcast %872 : vector<1x128xf32> to vector<4x128xf32>
    %874 = arith.mulf %873, %871 : vector<4x128xf32>
    %875 = arith.addf %867, %874 : vector<4x128xf32>
    %c1_595 = arith.constant 1 : index
    %c45_596 = arith.constant 45 : index
    %c0_597 = arith.constant 0 : index
    %876 = vector.load %arg1[%c1_595, %c45_596, %c0_597] : memref<2x64x128xf32, #tpu.memory_space<vmem>>, vector<1x1x128xf32>
    %877 = vector.shape_cast %876 : vector<1x1x128xf32> to vector<128xf32>
    %c45_598 = arith.constant 45 : index
    %c0_599 = arith.constant 0 : index
    %c0_600 = arith.constant 0 : index
    %878 = vector.load %arg2[%c45_598, %c0_599, %c0_600] : memref<64x4x128xf32, #tpu.memory_space<vmem>>, vector<1x4x128xf32>
    %879 = vector.shape_cast %878 : vector<1x4x128xf32> to vector<4x128xf32>
    %880 = vector.shape_cast %877 : vector<128xf32> to vector<1x128xf32>
    %881 = vector.broadcast %880 : vector<1x128xf32> to vector<4x128xf32>
    %882 = arith.mulf %881, %879 : vector<4x128xf32>
    %883 = arith.addf %875, %882 : vector<4x128xf32>
    %c1_601 = arith.constant 1 : index
    %c46_602 = arith.constant 46 : index
    %c0_603 = arith.constant 0 : index
    %884 = vector.load %arg1[%c1_601, %c46_602, %c0_603] : memref<2x64x128xf32, #tpu.memory_space<vmem>>, vector<1x1x128xf32>
    %885 = vector.shape_cast %884 : vector<1x1x128xf32> to vector<128xf32>
    %c46_604 = arith.constant 46 : index
    %c0_605 = arith.constant 0 : index
    %c0_606 = arith.constant 0 : index
    %886 = vector.load %arg2[%c46_604, %c0_605, %c0_606] : memref<64x4x128xf32, #tpu.memory_space<vmem>>, vector<1x4x128xf32>
    %887 = vector.shape_cast %886 : vector<1x4x128xf32> to vector<4x128xf32>
    %888 = vector.shape_cast %885 : vector<128xf32> to vector<1x128xf32>
    %889 = vector.broadcast %888 : vector<1x128xf32> to vector<4x128xf32>
    %890 = arith.mulf %889, %887 : vector<4x128xf32>
    %891 = arith.addf %883, %890 : vector<4x128xf32>
    %c1_607 = arith.constant 1 : index
    %c47_608 = arith.constant 47 : index
    %c0_609 = arith.constant 0 : index
    %892 = vector.load %arg1[%c1_607, %c47_608, %c0_609] : memref<2x64x128xf32, #tpu.memory_space<vmem>>, vector<1x1x128xf32>
    %893 = vector.shape_cast %892 : vector<1x1x128xf32> to vector<128xf32>
    %c47_610 = arith.constant 47 : index
    %c0_611 = arith.constant 0 : index
    %c0_612 = arith.constant 0 : index
    %894 = vector.load %arg2[%c47_610, %c0_611, %c0_612] : memref<64x4x128xf32, #tpu.memory_space<vmem>>, vector<1x4x128xf32>
    %895 = vector.shape_cast %894 : vector<1x4x128xf32> to vector<4x128xf32>
    %896 = vector.shape_cast %893 : vector<128xf32> to vector<1x128xf32>
    %897 = vector.broadcast %896 : vector<1x128xf32> to vector<4x128xf32>
    %898 = arith.mulf %897, %895 : vector<4x128xf32>
    %899 = arith.addf %891, %898 : vector<4x128xf32>
    %c1_613 = arith.constant 1 : index
    %c48_614 = arith.constant 48 : index
    %c0_615 = arith.constant 0 : index
    %900 = vector.load %arg1[%c1_613, %c48_614, %c0_615] : memref<2x64x128xf32, #tpu.memory_space<vmem>>, vector<1x1x128xf32>
    %901 = vector.shape_cast %900 : vector<1x1x128xf32> to vector<128xf32>
    %c48_616 = arith.constant 48 : index
    %c0_617 = arith.constant 0 : index
    %c0_618 = arith.constant 0 : index
    %902 = vector.load %arg2[%c48_616, %c0_617, %c0_618] : memref<64x4x128xf32, #tpu.memory_space<vmem>>, vector<1x4x128xf32>
    %903 = vector.shape_cast %902 : vector<1x4x128xf32> to vector<4x128xf32>
    %904 = vector.shape_cast %901 : vector<128xf32> to vector<1x128xf32>
    %905 = vector.broadcast %904 : vector<1x128xf32> to vector<4x128xf32>
    %906 = arith.mulf %905, %903 : vector<4x128xf32>
    %907 = arith.addf %899, %906 : vector<4x128xf32>
    %c1_619 = arith.constant 1 : index
    %c49_620 = arith.constant 49 : index
    %c0_621 = arith.constant 0 : index
    %908 = vector.load %arg1[%c1_619, %c49_620, %c0_621] : memref<2x64x128xf32, #tpu.memory_space<vmem>>, vector<1x1x128xf32>
    %909 = vector.shape_cast %908 : vector<1x1x128xf32> to vector<128xf32>
    %c49_622 = arith.constant 49 : index
    %c0_623 = arith.constant 0 : index
    %c0_624 = arith.constant 0 : index
    %910 = vector.load %arg2[%c49_622, %c0_623, %c0_624] : memref<64x4x128xf32, #tpu.memory_space<vmem>>, vector<1x4x128xf32>
    %911 = vector.shape_cast %910 : vector<1x4x128xf32> to vector<4x128xf32>
    %912 = vector.shape_cast %909 : vector<128xf32> to vector<1x128xf32>
    %913 = vector.broadcast %912 : vector<1x128xf32> to vector<4x128xf32>
    %914 = arith.mulf %913, %911 : vector<4x128xf32>
    %915 = arith.addf %907, %914 : vector<4x128xf32>
    %c1_625 = arith.constant 1 : index
    %c50_626 = arith.constant 50 : index
    %c0_627 = arith.constant 0 : index
    %916 = vector.load %arg1[%c1_625, %c50_626, %c0_627] : memref<2x64x128xf32, #tpu.memory_space<vmem>>, vector<1x1x128xf32>
    %917 = vector.shape_cast %916 : vector<1x1x128xf32> to vector<128xf32>
    %c50_628 = arith.constant 50 : index
    %c0_629 = arith.constant 0 : index
    %c0_630 = arith.constant 0 : index
    %918 = vector.load %arg2[%c50_628, %c0_629, %c0_630] : memref<64x4x128xf32, #tpu.memory_space<vmem>>, vector<1x4x128xf32>
    %919 = vector.shape_cast %918 : vector<1x4x128xf32> to vector<4x128xf32>
    %920 = vector.shape_cast %917 : vector<128xf32> to vector<1x128xf32>
    %921 = vector.broadcast %920 : vector<1x128xf32> to vector<4x128xf32>
    %922 = arith.mulf %921, %919 : vector<4x128xf32>
    %923 = arith.addf %915, %922 : vector<4x128xf32>
    %c1_631 = arith.constant 1 : index
    %c51_632 = arith.constant 51 : index
    %c0_633 = arith.constant 0 : index
    %924 = vector.load %arg1[%c1_631, %c51_632, %c0_633] : memref<2x64x128xf32, #tpu.memory_space<vmem>>, vector<1x1x128xf32>
    %925 = vector.shape_cast %924 : vector<1x1x128xf32> to vector<128xf32>
    %c51_634 = arith.constant 51 : index
    %c0_635 = arith.constant 0 : index
    %c0_636 = arith.constant 0 : index
    %926 = vector.load %arg2[%c51_634, %c0_635, %c0_636] : memref<64x4x128xf32, #tpu.memory_space<vmem>>, vector<1x4x128xf32>
    %927 = vector.shape_cast %926 : vector<1x4x128xf32> to vector<4x128xf32>
    %928 = vector.shape_cast %925 : vector<128xf32> to vector<1x128xf32>
    %929 = vector.broadcast %928 : vector<1x128xf32> to vector<4x128xf32>
    %930 = arith.mulf %929, %927 : vector<4x128xf32>
    %931 = arith.addf %923, %930 : vector<4x128xf32>
    %c1_637 = arith.constant 1 : index
    %c52_638 = arith.constant 52 : index
    %c0_639 = arith.constant 0 : index
    %932 = vector.load %arg1[%c1_637, %c52_638, %c0_639] : memref<2x64x128xf32, #tpu.memory_space<vmem>>, vector<1x1x128xf32>
    %933 = vector.shape_cast %932 : vector<1x1x128xf32> to vector<128xf32>
    %c52_640 = arith.constant 52 : index
    %c0_641 = arith.constant 0 : index
    %c0_642 = arith.constant 0 : index
    %934 = vector.load %arg2[%c52_640, %c0_641, %c0_642] : memref<64x4x128xf32, #tpu.memory_space<vmem>>, vector<1x4x128xf32>
    %935 = vector.shape_cast %934 : vector<1x4x128xf32> to vector<4x128xf32>
    %936 = vector.shape_cast %933 : vector<128xf32> to vector<1x128xf32>
    %937 = vector.broadcast %936 : vector<1x128xf32> to vector<4x128xf32>
    %938 = arith.mulf %937, %935 : vector<4x128xf32>
    %939 = arith.addf %931, %938 : vector<4x128xf32>
    %c1_643 = arith.constant 1 : index
    %c53_644 = arith.constant 53 : index
    %c0_645 = arith.constant 0 : index
    %940 = vector.load %arg1[%c1_643, %c53_644, %c0_645] : memref<2x64x128xf32, #tpu.memory_space<vmem>>, vector<1x1x128xf32>
    %941 = vector.shape_cast %940 : vector<1x1x128xf32> to vector<128xf32>
    %c53_646 = arith.constant 53 : index
    %c0_647 = arith.constant 0 : index
    %c0_648 = arith.constant 0 : index
    %942 = vector.load %arg2[%c53_646, %c0_647, %c0_648] : memref<64x4x128xf32, #tpu.memory_space<vmem>>, vector<1x4x128xf32>
    %943 = vector.shape_cast %942 : vector<1x4x128xf32> to vector<4x128xf32>
    %944 = vector.shape_cast %941 : vector<128xf32> to vector<1x128xf32>
    %945 = vector.broadcast %944 : vector<1x128xf32> to vector<4x128xf32>
    %946 = arith.mulf %945, %943 : vector<4x128xf32>
    %947 = arith.addf %939, %946 : vector<4x128xf32>
    %c1_649 = arith.constant 1 : index
    %c54_650 = arith.constant 54 : index
    %c0_651 = arith.constant 0 : index
    %948 = vector.load %arg1[%c1_649, %c54_650, %c0_651] : memref<2x64x128xf32, #tpu.memory_space<vmem>>, vector<1x1x128xf32>
    %949 = vector.shape_cast %948 : vector<1x1x128xf32> to vector<128xf32>
    %c54_652 = arith.constant 54 : index
    %c0_653 = arith.constant 0 : index
    %c0_654 = arith.constant 0 : index
    %950 = vector.load %arg2[%c54_652, %c0_653, %c0_654] : memref<64x4x128xf32, #tpu.memory_space<vmem>>, vector<1x4x128xf32>
    %951 = vector.shape_cast %950 : vector<1x4x128xf32> to vector<4x128xf32>
    %952 = vector.shape_cast %949 : vector<128xf32> to vector<1x128xf32>
    %953 = vector.broadcast %952 : vector<1x128xf32> to vector<4x128xf32>
    %954 = arith.mulf %953, %951 : vector<4x128xf32>
    %955 = arith.addf %947, %954 : vector<4x128xf32>
    %c1_655 = arith.constant 1 : index
    %c55_656 = arith.constant 55 : index
    %c0_657 = arith.constant 0 : index
    %956 = vector.load %arg1[%c1_655, %c55_656, %c0_657] : memref<2x64x128xf32, #tpu.memory_space<vmem>>, vector<1x1x128xf32>
    %957 = vector.shape_cast %956 : vector<1x1x128xf32> to vector<128xf32>
    %c55_658 = arith.constant 55 : index
    %c0_659 = arith.constant 0 : index
    %c0_660 = arith.constant 0 : index
    %958 = vector.load %arg2[%c55_658, %c0_659, %c0_660] : memref<64x4x128xf32, #tpu.memory_space<vmem>>, vector<1x4x128xf32>
    %959 = vector.shape_cast %958 : vector<1x4x128xf32> to vector<4x128xf32>
    %960 = vector.shape_cast %957 : vector<128xf32> to vector<1x128xf32>
    %961 = vector.broadcast %960 : vector<1x128xf32> to vector<4x128xf32>
    %962 = arith.mulf %961, %959 : vector<4x128xf32>
    %963 = arith.addf %955, %962 : vector<4x128xf32>
    %c1_661 = arith.constant 1 : index
    %c56_662 = arith.constant 56 : index
    %c0_663 = arith.constant 0 : index
    %964 = vector.load %arg1[%c1_661, %c56_662, %c0_663] : memref<2x64x128xf32, #tpu.memory_space<vmem>>, vector<1x1x128xf32>
    %965 = vector.shape_cast %964 : vector<1x1x128xf32> to vector<128xf32>
    %c56_664 = arith.constant 56 : index
    %c0_665 = arith.constant 0 : index
    %c0_666 = arith.constant 0 : index
    %966 = vector.load %arg2[%c56_664, %c0_665, %c0_666] : memref<64x4x128xf32, #tpu.memory_space<vmem>>, vector<1x4x128xf32>
    %967 = vector.shape_cast %966 : vector<1x4x128xf32> to vector<4x128xf32>
    %968 = vector.shape_cast %965 : vector<128xf32> to vector<1x128xf32>
    %969 = vector.broadcast %968 : vector<1x128xf32> to vector<4x128xf32>
    %970 = arith.mulf %969, %967 : vector<4x128xf32>
    %971 = arith.addf %963, %970 : vector<4x128xf32>
    %c1_667 = arith.constant 1 : index
    %c57_668 = arith.constant 57 : index
    %c0_669 = arith.constant 0 : index
    %972 = vector.load %arg1[%c1_667, %c57_668, %c0_669] : memref<2x64x128xf32, #tpu.memory_space<vmem>>, vector<1x1x128xf32>
    %973 = vector.shape_cast %972 : vector<1x1x128xf32> to vector<128xf32>
    %c57_670 = arith.constant 57 : index
    %c0_671 = arith.constant 0 : index
    %c0_672 = arith.constant 0 : index
    %974 = vector.load %arg2[%c57_670, %c0_671, %c0_672] : memref<64x4x128xf32, #tpu.memory_space<vmem>>, vector<1x4x128xf32>
    %975 = vector.shape_cast %974 : vector<1x4x128xf32> to vector<4x128xf32>
    %976 = vector.shape_cast %973 : vector<128xf32> to vector<1x128xf32>
    %977 = vector.broadcast %976 : vector<1x128xf32> to vector<4x128xf32>
    %978 = arith.mulf %977, %975 : vector<4x128xf32>
    %979 = arith.addf %971, %978 : vector<4x128xf32>
    %c1_673 = arith.constant 1 : index
    %c58_674 = arith.constant 58 : index
    %c0_675 = arith.constant 0 : index
    %980 = vector.load %arg1[%c1_673, %c58_674, %c0_675] : memref<2x64x128xf32, #tpu.memory_space<vmem>>, vector<1x1x128xf32>
    %981 = vector.shape_cast %980 : vector<1x1x128xf32> to vector<128xf32>
    %c58_676 = arith.constant 58 : index
    %c0_677 = arith.constant 0 : index
    %c0_678 = arith.constant 0 : index
    %982 = vector.load %arg2[%c58_676, %c0_677, %c0_678] : memref<64x4x128xf32, #tpu.memory_space<vmem>>, vector<1x4x128xf32>
    %983 = vector.shape_cast %982 : vector<1x4x128xf32> to vector<4x128xf32>
    %984 = vector.shape_cast %981 : vector<128xf32> to vector<1x128xf32>
    %985 = vector.broadcast %984 : vector<1x128xf32> to vector<4x128xf32>
    %986 = arith.mulf %985, %983 : vector<4x128xf32>
    %987 = arith.addf %979, %986 : vector<4x128xf32>
    %c1_679 = arith.constant 1 : index
    %c59_680 = arith.constant 59 : index
    %c0_681 = arith.constant 0 : index
    %988 = vector.load %arg1[%c1_679, %c59_680, %c0_681] : memref<2x64x128xf32, #tpu.memory_space<vmem>>, vector<1x1x128xf32>
    %989 = vector.shape_cast %988 : vector<1x1x128xf32> to vector<128xf32>
    %c59_682 = arith.constant 59 : index
    %c0_683 = arith.constant 0 : index
    %c0_684 = arith.constant 0 : index
    %990 = vector.load %arg2[%c59_682, %c0_683, %c0_684] : memref<64x4x128xf32, #tpu.memory_space<vmem>>, vector<1x4x128xf32>
    %991 = vector.shape_cast %990 : vector<1x4x128xf32> to vector<4x128xf32>
    %992 = vector.shape_cast %989 : vector<128xf32> to vector<1x128xf32>
    %993 = vector.broadcast %992 : vector<1x128xf32> to vector<4x128xf32>
    %994 = arith.mulf %993, %991 : vector<4x128xf32>
    %995 = arith.addf %987, %994 : vector<4x128xf32>
    %c1_685 = arith.constant 1 : index
    %c60_686 = arith.constant 60 : index
    %c0_687 = arith.constant 0 : index
    %996 = vector.load %arg1[%c1_685, %c60_686, %c0_687] : memref<2x64x128xf32, #tpu.memory_space<vmem>>, vector<1x1x128xf32>
    %997 = vector.shape_cast %996 : vector<1x1x128xf32> to vector<128xf32>
    %c60_688 = arith.constant 60 : index
    %c0_689 = arith.constant 0 : index
    %c0_690 = arith.constant 0 : index
    %998 = vector.load %arg2[%c60_688, %c0_689, %c0_690] : memref<64x4x128xf32, #tpu.memory_space<vmem>>, vector<1x4x128xf32>
    %999 = vector.shape_cast %998 : vector<1x4x128xf32> to vector<4x128xf32>
    %1000 = vector.shape_cast %997 : vector<128xf32> to vector<1x128xf32>
    %1001 = vector.broadcast %1000 : vector<1x128xf32> to vector<4x128xf32>
    %1002 = arith.mulf %1001, %999 : vector<4x128xf32>
    %1003 = arith.addf %995, %1002 : vector<4x128xf32>
    %c1_691 = arith.constant 1 : index
    %c61_692 = arith.constant 61 : index
    %c0_693 = arith.constant 0 : index
    %1004 = vector.load %arg1[%c1_691, %c61_692, %c0_693] : memref<2x64x128xf32, #tpu.memory_space<vmem>>, vector<1x1x128xf32>
    %1005 = vector.shape_cast %1004 : vector<1x1x128xf32> to vector<128xf32>
    %c61_694 = arith.constant 61 : index
    %c0_695 = arith.constant 0 : index
    %c0_696 = arith.constant 0 : index
    %1006 = vector.load %arg2[%c61_694, %c0_695, %c0_696] : memref<64x4x128xf32, #tpu.memory_space<vmem>>, vector<1x4x128xf32>
    %1007 = vector.shape_cast %1006 : vector<1x4x128xf32> to vector<4x128xf32>
    %1008 = vector.shape_cast %1005 : vector<128xf32> to vector<1x128xf32>
    %1009 = vector.broadcast %1008 : vector<1x128xf32> to vector<4x128xf32>
    %1010 = arith.mulf %1009, %1007 : vector<4x128xf32>
    %1011 = arith.addf %1003, %1010 : vector<4x128xf32>
    %c1_697 = arith.constant 1 : index
    %c62_698 = arith.constant 62 : index
    %c0_699 = arith.constant 0 : index
    %1012 = vector.load %arg1[%c1_697, %c62_698, %c0_699] : memref<2x64x128xf32, #tpu.memory_space<vmem>>, vector<1x1x128xf32>
    %1013 = vector.shape_cast %1012 : vector<1x1x128xf32> to vector<128xf32>
    %c62_700 = arith.constant 62 : index
    %c0_701 = arith.constant 0 : index
    %c0_702 = arith.constant 0 : index
    %1014 = vector.load %arg2[%c62_700, %c0_701, %c0_702] : memref<64x4x128xf32, #tpu.memory_space<vmem>>, vector<1x4x128xf32>
    %1015 = vector.shape_cast %1014 : vector<1x4x128xf32> to vector<4x128xf32>
    %1016 = vector.shape_cast %1013 : vector<128xf32> to vector<1x128xf32>
    %1017 = vector.broadcast %1016 : vector<1x128xf32> to vector<4x128xf32>
    %1018 = arith.mulf %1017, %1015 : vector<4x128xf32>
    %1019 = arith.addf %1011, %1018 : vector<4x128xf32>
    %c1_703 = arith.constant 1 : index
    %c63_704 = arith.constant 63 : index
    %c0_705 = arith.constant 0 : index
    %1020 = vector.load %arg1[%c1_703, %c63_704, %c0_705] : memref<2x64x128xf32, #tpu.memory_space<vmem>>, vector<1x1x128xf32>
    %1021 = vector.shape_cast %1020 : vector<1x1x128xf32> to vector<128xf32>
    %c63_706 = arith.constant 63 : index
    %c0_707 = arith.constant 0 : index
    %c0_708 = arith.constant 0 : index
    %1022 = vector.load %arg2[%c63_706, %c0_707, %c0_708] : memref<64x4x128xf32, #tpu.memory_space<vmem>>, vector<1x4x128xf32>
    %1023 = vector.shape_cast %1022 : vector<1x4x128xf32> to vector<4x128xf32>
    %1024 = vector.shape_cast %1021 : vector<128xf32> to vector<1x128xf32>
    %1025 = vector.broadcast %1024 : vector<1x128xf32> to vector<4x128xf32>
    %1026 = arith.mulf %1025, %1023 : vector<4x128xf32>
    %1027 = arith.addf %1019, %1026 : vector<4x128xf32>
    %c1_709 = arith.constant 1 : index
    %c0_710 = arith.constant 0 : index
    %c0_711 = arith.constant 0 : index
    %1028 = vector.load %arg4[%c1_709, %c0_710, %c0_711] : memref<2x4x128xf32, #tpu.memory_space<vmem>>, vector<1x4x128xf32>
    %1029 = vector.shape_cast %1028 : vector<1x4x128xf32> to vector<4x128xf32>
    %1030 = vector.shape_cast %1027 : vector<4x128xf32> to vector<1x4x128xf32>
    tpu.vector_store %arg4[%c1_709, %c0_710, %c0_711], %1030 {strides = array<i32>} : memref<2x4x128xf32, #tpu.memory_space<vmem>>, vector<1x4x128xf32>,
    return
  }
  func.func @transform_0(%arg0: i32) -> (i32, i32, i32) {
    %c0_i32 = arith.constant 0 : i32
    %c0_i32_0 = arith.constant 0 : i32
    %c0_i32_1 = arith.constant 0 : i32
    return %c0_i32, %c0_i32_0, %arg0 : i32, i32, i32
  }
  func.func @transform_1(%arg0: i32) -> (i32, i32, i32) {
    %c0_i32 = arith.constant 0 : i32
    %c0_i32_0 = arith.constant 0 : i32
    %c0_i32_1 = arith.constant 0 : i32
    return %c0_i32, %c0_i32_0, %arg0 : i32, i32, i32
  }
  func.func @transform_2(%arg0: i32) -> (i32, i32) {
    %c0_i32 = arith.constant 0 : i32
    %c0_i32_0 = arith.constant 0 : i32
    return %c0_i32, %arg0 : i32, i32
  }
  func.func @transform_3(%arg0: i32) -> (i32, i32, i32) {
    %c0_i32 = arith.constant 0 : i32
    %c0_i32_0 = arith.constant 0 : i32
    %c0_i32_1 = arith.constant 0 : i32
    return %c0_i32, %c0_i32_0, %arg0 : i32, i32, i32
  }
}

</mosaic_0001>

<llo_original>
// kernel: tpu_custom_call.1
$region0: #{tpu_custom_call.1}
  #allocation0 [shape = 'u32[]', space=smem, size = 0x4, offset = 0x4, fixed_abs, tag = 'smem constant byte address 0x4 - core index']
  #allocation1 [shape = 'u32[144,128]{1,0:T(1,128)}', space=vmem, size = 0x12000, scoped, tag = 'internal scratch']
  %s0 = inlined_call_operand.hbm [shape: f32[2,64,128], index: 0, kind: input, shape index: {}]
  %s1 = inlined_call_operand.hbm [shape: f32[64,4,128], index: 1, kind: input, shape index: {}]
  %s2 = inlined_call_operand.vmem [shape: f32[4,128], index: 2, kind: input, shape index: {}]
  %s3 = inlined_call_operand.hbm [shape: f32[2,4,128], index: 3, kind: output, shape index: {}]
  %s4 = sld [smem:[#allocation0]]
  $region30: #{tpu_custom_call.1} parent=0
    _
  %s6 = ssub.s32 1, %s4
  %s7 = scalar_select 0, %s6, %s4
  $region1: #{tpu_custom_call.1} parent=0
    #allocation2 [shape = 'u8[65536]{0}', space=vmem, size = 0x10000, scoped, tag = 'input window, operand 0, single buffered']
    #allocation3 [shape = 's32[1]{0}', space=sflag, size = 0x4, scoped, tag = 'scoped memory for tpu_custom_call.1']
    #allocation4 [shape = 's32[1]{0}', space=sflag, size = 0x4, scoped, tag = 'scoped memory for tpu_custom_call.1']
    #allocation5 [shape = 'u8[131072]{0}', space=vmem, size = 0x20000, scoped, tag = 'input window, operand 1, single buffered']
    #allocation6 [shape = 's32[1]{0}', space=sflag, size = 0x4, scoped, tag = 'scoped memory for tpu_custom_call.1']
    #allocation7 [shape = 'u8[4096]{0}', space=vmem, size = 0x1000, scoped, tag = 'output window, operand 0, single buffered']
    %8 = vsyncpa [#allocation3], 0
    %9 = vsyncpa [#allocation6], 0
    %10 = vsyncpa [#allocation4], 0
    // Predicated region
    $region2: #{tpu_custom_call.1} parent=1 // pred_check
      _
    $region3: #{tpu_custom_call.1} parent=1 // pred_check_branch
      %12 = sbr.rel (0) target = $region5
    $region4: #{tpu_custom_call.1} parent=1 // pred_region
      %s14 = ssub.s32 2048, 2048
      %15 = vsyncadd [#allocation3], %s14
      %s16 = sshll.u32 [#allocation2], 4
      %s17 = int_to_ptr.vmem [resolvable:$true] %s16
      %22 = dma.hbm_to_vmem [thread:$0]  %s0, 2048, %s17, [#allocation3], 128, 128, 8
    $region5: #{tpu_custom_call.1} parent=1 // pred_fallthru
      _
    // Predicated region
    $region6: #{tpu_custom_call.1} parent=1 // pred_check
      _
    $region7: #{tpu_custom_call.1} parent=1 // pred_check_branch
      %24 = sbr.rel (0) target = $region9
    $region8: #{tpu_custom_call.1} parent=1 // pred_region
      %s26 = ssub.s32 4096, 4096
      %27 = vsyncadd [#allocation6], %s26
      %s28 = sshll.u32 [#allocation5], 4
      %s29 = int_to_ptr.vmem [resolvable:$true] %s28
      %34 = dma.hbm_to_vmem [thread:$0]  %s1, 4096, %s29, [#allocation6], 64, 64, 4
    $region9: #{tpu_custom_call.1} parent=1 // pred_fallthru
      _
    // Predicated region
    $region10: #{tpu_custom_call.1} parent=1 // pred_check
      _
    $region11: #{tpu_custom_call.1} parent=1 // pred_check_branch
      %36 = sbr.rel (0) target = $region13
    $region12: #{tpu_custom_call.1} parent=1 // pred_region
      _
    $region13: #{tpu_custom_call.1} parent=1 // pred_fallthru
      _
    // Predicated region
    $region14: #{tpu_custom_call.1} parent=1 // pred_check
      _
    $region15: #{tpu_custom_call.1} parent=1 // pred_check_branch
      %38 = sbr.rel (0) target = $region17
    $region16: #{tpu_custom_call.1} parent=1 // pred_region
      %39 = dma.done [#allocation3], 2048
    $region17: #{tpu_custom_call.1} parent=1 // pred_fallthru
      _
    // Predicated region
    $region18: #{tpu_custom_call.1} parent=1 // pred_check
      _
    $region19: #{tpu_custom_call.1} parent=1 // pred_check_branch
      %41 = sbr.rel (0) target = $region21
    $region20: #{tpu_custom_call.1} parent=1 // pred_region
      %42 = dma.done [#allocation6], 4096
    $region21: #{tpu_custom_call.1} parent=1 // pred_fallthru
      _
    %v43 = vld [vmem:[%s2] sm:$0xf]
    %v44 = vld [vmem:[#allocation2] sm:$0x1]
    %v45 = vld [vmem:[#allocation5] sm:$0xf]
    %v46 = vlaneseq
    %v47 = vshrl.u32 %v46, 7
    %v48 = vsub.s32 0, %v47
    %v49 = vrot.slane %v44, %v48
    %v50 = vmul.f32 %v49, %v45
    %v51 = vadd.f32 %v43, %v50
    %v52 = vld [vmem:[#allocation2 + $0x1] sm:$0x1]
    %s53 = scalar_lea.vmem [#allocation5], 4
    %v54 = vld [vmem:[%s53] sm:$0xf]
    %v55 = vlaneseq
    %v56 = vshrl.u32 %v55, 7
    %v57 = vsub.s32 0, %v56
    %v58 = vrot.slane %v52, %v57
    %v59 = vmul.f32 %v58, %v54
    %v60 = vadd.f32 %v51, %v59
    %v61 = vld [vmem:[#allocation2 + $0x2] sm:$0x1]
    %s62 = scalar_lea.vmem [#allocation5], 8
    %v63 = vld [vmem:[%s62] sm:$0xf]
    %v64 = vlaneseq
    %v65 = vshrl.u32 %v64, 7
    %v66 = vsub.s32 0, %v65
    %v67 = vrot.slane %v61, %v66
    %v68 = vmul.f32 %v67, %v63
    %v69 = vadd.f32 %v60, %v68
    %v70 = vld [vmem:[#allocation2 + $0x3] sm:$0x1]
    %s71 = scalar_lea.vmem [#allocation5], 12
    %v72 = vld [vmem:[%s71] sm:$0xf]
    %v73 = vlaneseq
    %v74 = vshrl.u32 %v73, 7
    %v75 = vsub.s32 0, %v74
    %v76 = vrot.slane %v70, %v75
    %v77 = vmul.f32 %v76, %v72
    %v78 = vadd.f32 %v69, %v77
    %v79 = vld [vmem:[#allocation2 + $0x4] sm:$0x1]
    %s80 = scalar_lea.vmem [#allocation5], 16
    %v81 = vld [vmem:[%s80] sm:$0xf]
    %v82 = vlaneseq
    %v83 = vshrl.u32 %v82, 7
    %v84 = vsub.s32 0, %v83
    %v85 = vrot.slane %v79, %v84
    %v86 = vmul.f32 %v85, %v81
    %v87 = vadd.f32 %v78, %v86
    %v88 = vld [vmem:[#allocation2 + $0x5] sm:$0x1]
    %s89 = scalar_lea.vmem [#allocation5], 20
    %v90 = vld [vmem:[%s89] sm:$0xf]
    %v91 = vlaneseq
    %v92 = vshrl.u32 %v91, 7
    %v93 = vsub.s32 0, %v92
    %v94 = vrot.slane %v88, %v93
    %v95 = vmul.f32 %v94, %v90
    %v96 = vadd.f32 %v87, %v95
    %v97 = vld [vmem:[#allocation2 + $0x6] sm:$0x1]
    %s98 = scalar_lea.vmem [#allocation5], 24
    %v99 = vld [vmem:[%s98] sm:$0xf]
    %v100 = vlaneseq
    %v101 = vshrl.u32 %v100, 7
    %v102 = vsub.s32 0, %v101
    %v103 = vrot.slane %v97, %v102
    %v104 = vmul.f32 %v103, %v99
    %v105 = vadd.f32 %v96, %v104
    %v106 = vld [vmem:[#allocation2 + $0x7] sm:$0x1]
    %s107 = scalar_lea.vmem [#allocation5], 28
    %v108 = vld [vmem:[%s107] sm:$0xf]
    %v109 = vlaneseq
    %v110 = vshrl.u32 %v109, 7
    %v111 = vsub.s32 0, %v110
    %v112 = vrot.slane %v106, %v111
    %v113 = vmul.f32 %v112, %v108
    %v114 = vadd.f32 %v105, %v113
    %v115 = vld [vmem:[#allocation2 + $0x8] sm:$0x1]
    %s116 = scalar_lea.vmem [#allocation5], 32
    %v117 = vld [vmem:[%s116] sm:$0xf]
    %v118 = vlaneseq
    %v119 = vshrl.u32 %v118, 7
    %v120 = vsub.s32 0, %v119
    %v121 = vrot.slane %v115, %v120
    %v122 = vmul.f32 %v121, %v117
    %v123 = vadd.f32 %v114, %v122
    %v124 = vld [vmem:[#allocation2 + $0x9] sm:$0x1]
    %s125 = scalar_lea.vmem [#allocation5], 36
    %v126 = vld [vmem:[%s125] sm:$0xf]
    %v127 = vlaneseq
    %v128 = vshrl.u32 %v127, 7
    %v129 = vsub.s32 0, %v128
    %v130 = vrot.slane %v124, %v129
    %v131 = vmul.f32 %v130, %v126
    %v132 = vadd.f32 %v123, %v131
    %v133 = vld [vmem:[#allocation2 + $0xa] sm:$0x1]
    %s134 = scalar_lea.vmem [#allocation5], 40
    %v135 = vld [vmem:[%s134] sm:$0xf]
    %v136 = vlaneseq
    %v137 = vshrl.u32 %v136, 7
    %v138 = vsub.s32 0, %v137
    %v139 = vrot.slane %v133, %v138
    %v140 = vmul.f32 %v139, %v135
    %v141 = vadd.f32 %v132, %v140
    %v142 = vld [vmem:[#allocation2 + $0xb] sm:$0x1]
    %s143 = scalar_lea.vmem [#allocation5], 44
    %v144 = vld [vmem:[%s143] sm:$0xf]
    %v145 = vlaneseq
    %v146 = vshrl.u32 %v145, 7
    %v147 = vsub.s32 0, %v146
    %v148 = vrot.slane %v142, %v147
    %v149 = vmul.f32 %v148, %v144
    %v150 = vadd.f32 %v141, %v149
    %v151 = vld [vmem:[#allocation2 + $0xc] sm:$0x1]
    %s152 = scalar_lea.vmem [#allocation5], 48
    %v153 = vld [vmem:[%s152] sm:$0xf]
    %v154 = vlaneseq
    %v155 = vshrl.u32 %v154, 7
    %v156 = vsub.s32 0, %v155
    %v157 = vrot.slane %v151, %v156
    %v158 = vmul.f32 %v157, %v153
    %v159 = vadd.f32 %v150, %v158
    %v160 = vld [vmem:[#allocation2 + $0xd] sm:$0x1]
    %s161 = scalar_lea.vmem [#allocation5], 52
    %v162 = vld [vmem:[%s161] sm:$0xf]
    %v163 = vlaneseq
    %v164 = vshrl.u32 %v163, 7
    %v165 = vsub.s32 0, %v164
    %v166 = vrot.slane %v160, %v165
    %v167 = vmul.f32 %v166, %v162
    %v168 = vadd.f32 %v159, %v167
    %v169 = vld [vmem:[#allocation2 + $0xe] sm:$0x1]
    %s170 = scalar_lea.vmem [#allocation5], 56
    %v171 = vld [vmem:[%s170] sm:$0xf]
    %v172 = vlaneseq
    %v173 = vshrl.u32 %v172, 7
    %v174 = vsub.s32 0, %v173
    %v175 = vrot.slane %v169, %v174
    %v176 = vmul.f32 %v175, %v171
    %v177 = vadd.f32 %v168, %v176
    %v178 = vld [vmem:[#allocation2 + $0xf] sm:$0x1]
    %s179 = scalar_lea.vmem [#allocation5], 60
    %v180 = vld [vmem:[%s179] sm:$0xf]
    %v181 = vlaneseq
    %v182 = vshrl.u32 %v181, 7
    %v183 = vsub.s32 0, %v182
    %v184 = vrot.slane %v178, %v183
    %v185 = vmul.f32 %v184, %v180
    %v186 = vadd.f32 %v177, %v185
    %v187 = vld [vmem:[#allocation2 + $0x10] sm:$0x1]
    %s188 = scalar_lea.vmem [#allocation5], 64
    %v189 = vld [vmem:[%s188] sm:$0xf]
    %v190 = vlaneseq
    %v191 = vshrl.u32 %v190, 7
    %v192 = vsub.s32 0, %v191
    %v193 = vrot.slane %v187, %v192
    %v194 = vmul.f32 %v193, %v189
    %v195 = vadd.f32 %v186, %v194
    %v196 = vld [vmem:[#allocation2 + $0x11] sm:$0x1]
    %s197 = scalar_lea.vmem [#allocation5], 68
    %v198 = vld [vmem:[%s197] sm:$0xf]
    %v199 = vlaneseq
    %v200 = vshrl.u32 %v199, 7
    %v201 = vsub.s32 0, %v200
    %v202 = vrot.slane %v196, %v201
    %v203 = vmul.f32 %v202, %v198
    %v204 = vadd.f32 %v195, %v203
    %v205 = vld [vmem:[#allocation2 + $0x12] sm:$0x1]
    %s206 = scalar_lea.vmem [#allocation5], 72
    %v207 = vld [vmem:[%s206] sm:$0xf]
    %v208 = vlaneseq
    %v209 = vshrl.u32 %v208, 7
    %v210 = vsub.s32 0, %v209
    %v211 = vrot.slane %v205, %v210
    %v212 = vmul.f32 %v211, %v207
    %v213 = vadd.f32 %v204, %v212
    %v214 = vld [vmem:[#allocation2 + $0x13] sm:$0x1]
    %s215 = scalar_lea.vmem [#allocation5], 76
    %v216 = vld [vmem:[%s215] sm:$0xf]
    %v217 = vlaneseq
    %v218 = vshrl.u32 %v217, 7
    %v219 = vsub.s32 0, %v218
    %v220 = vrot.slane %v214, %v219
    %v221 = vmul.f32 %v220, %v216
    %v222 = vadd.f32 %v213, %v221
    %v223 = vld [vmem:[#allocation2 + $0x14] sm:$0x1]
    %s224 = scalar_lea.vmem [#allocation5], 80
    %v225 = vld [vmem:[%s224] sm:$0xf]
    %v226 = vlaneseq
    %v227 = vshrl.u32 %v226, 7
    %v228 = vsub.s32 0, %v227
    %v229 = vrot.slane %v223, %v228
    %v230 = vmul.f32 %v229, %v225
    %v231 = vadd.f32 %v222, %v230
    %v232 = vld [vmem:[#allocation2 + $0x15] sm:$0x1]
    %s233 = scalar_lea.vmem [#allocation5], 84
    %v234 = vld [vmem:[%s233] sm:$0xf]
    %v235 = vlaneseq
    %v236 = vshrl.u32 %v235, 7
    %v237 = vsub.s32 0, %v236
    %v238 = vrot.slane %v232, %v237
    %v239 = vmul.f32 %v238, %v234
    %v240 = vadd.f32 %v231, %v239
    %v241 = vld [vmem:[#allocation2 + $0x16] sm:$0x1]
    %s242 = scalar_lea.vmem [#allocation5], 88
    %v243 = vld [vmem:[%s242] sm:$0xf]
    %v244 = vlaneseq
    %v245 = vshrl.u32 %v244, 7
    %v246 = vsub.s32 0, %v245
    %v247 = vrot.slane %v241, %v246
    %v248 = vmul.f32 %v247, %v243
    %v249 = vadd.f32 %v240, %v248
    %v250 = vld [vmem:[#allocation2 + $0x17] sm:$0x1]
    %s251 = scalar_lea.vmem [#allocation5], 92
    %v252 = vld [vmem:[%s251] sm:$0xf]
    %v253 = vlaneseq
    %v254 = vshrl.u32 %v253, 7
    %v255 = vsub.s32 0, %v254
    %v256 = vrot.slane %v250, %v255
    %v257 = vmul.f32 %v256, %v252
    %v258 = vadd.f32 %v249, %v257
    %v259 = vld [vmem:[#allocation2 + $0x18] sm:$0x1]
    %s260 = scalar_lea.vmem [#allocation5], 96
    %v261 = vld [vmem:[%s260] sm:$0xf]
    %v262 = vlaneseq
    %v263 = vshrl.u32 %v262, 7
    %v264 = vsub.s32 0, %v263
    %v265 = vrot.slane %v259, %v264
    %v266 = vmul.f32 %v265, %v261
    %v267 = vadd.f32 %v258, %v266
    %v268 = vld [vmem:[#allocation2 + $0x19] sm:$0x1]
    %s269 = scalar_lea.vmem [#allocation5], 100
    %v270 = vld [vmem:[%s269] sm:$0xf]
    %v271 = vlaneseq
    %v272 = vshrl.u32 %v271, 7
    %v273 = vsub.s32 0, %v272
    %v274 = vrot.slane %v268, %v273
    %v275 = vmul.f32 %v274, %v270
    %v276 = vadd.f32 %v267, %v275
    %v277 = vld [vmem:[#allocation2 + $0x1a] sm:$0x1]
    %s278 = scalar_lea.vmem [#allocation5], 104
    %v279 = vld [vmem:[%s278] sm:$0xf]
    %v280 = vlaneseq
    %v281 = vshrl.u32 %v280, 7
    %v282 = vsub.s32 0, %v281
    %v283 = vrot.slane %v277, %v282
    %v284 = vmul.f32 %v283, %v279
    %v285 = vadd.f32 %v276, %v284
    %v286 = vld [vmem:[#allocation2 + $0x1b] sm:$0x1]
    %s287 = scalar_lea.vmem [#allocation5], 108
    %v288 = vld [vmem:[%s287] sm:$0xf]
    %v289 = vlaneseq
    %v290 = vshrl.u32 %v289, 7
    %v291 = vsub.s32 0, %v290
    %v292 = vrot.slane %v286, %v291
    %v293 = vmul.f32 %v292, %v288
    %v294 = vadd.f32 %v285, %v293
    %v295 = vld [vmem:[#allocation2 + $0x1c] sm:$0x1]
    %s296 = scalar_lea.vmem [#allocation5], 112
    %v297 = vld [vmem:[%s296] sm:$0xf]
    %v298 = vlaneseq
    %v299 = vshrl.u32 %v298, 7
    %v300 = vsub.s32 0, %v299
    %v301 = vrot.slane %v295, %v300
    %v302 = vmul.f32 %v301, %v297
    %v303 = vadd.f32 %v294, %v302
    %v304 = vld [vmem:[#allocation2 + $0x1d] sm:$0x1]
    %s305 = scalar_lea.vmem [#allocation5], 116
    %v306 = vld [vmem:[%s305] sm:$0xf]
    %v307 = vlaneseq
    %v308 = vshrl.u32 %v307, 7
    %v309 = vsub.s32 0, %v308
    %v310 = vrot.slane %v304, %v309
    %v311 = vmul.f32 %v310, %v306
    %v312 = vadd.f32 %v303, %v311
    %v313 = vld [vmem:[#allocation2 + $0x1e] sm:$0x1]
    %s314 = scalar_lea.vmem [#allocation5], 120
    %v315 = vld [vmem:[%s314] sm:$0xf]
    %v316 = vlaneseq
    %v317 = vshrl.u32 %v316, 7
    %v318 = vsub.s32 0, %v317
    %v319 = vrot.slane %v313, %v318
    %v320 = vmul.f32 %v319, %v315
    %v321 = vadd.f32 %v312, %v320
    %v322 = vld [vmem:[#allocation2 + $0x1f] sm:$0x1]
    %s323 = scalar_lea.vmem [#allocation5], 124
    %v324 = vld [vmem:[%s323] sm:$0xf]
    %v325 = vlaneseq
    %v326 = vshrl.u32 %v325, 7
    %v327 = vsub.s32 0, %v326
    %v328 = vrot.slane %v322, %v327
    %v329 = vmul.f32 %v328, %v324
    %v330 = vadd.f32 %v321, %v329
    %v331 = vld [vmem:[#allocation2 + $0x20] sm:$0x1]
    %s332 = scalar_lea.vmem [#allocation5], 128
    %v333 = vld [vmem:[%s332] sm:$0xf]
    %v334 = vlaneseq
    %v335 = vshrl.u32 %v334, 7
    %v336 = vsub.s32 0, %v335
    %v337 = vrot.slane %v331, %v336
    %v338 = vmul.f32 %v337, %v333
    %v339 = vadd.f32 %v330, %v338
    %v340 = vld [vmem:[#allocation2 + $0x21] sm:$0x1]
    %s341 = scalar_lea.vmem [#allocation5], 132
    %v342 = vld [vmem:[%s341] sm:$0xf]
    %v343 = vlaneseq
    %v344 = vshrl.u32 %v343, 7
    %v345 = vsub.s32 0, %v344
    %v346 = vrot.slane %v340, %v345
    %v347 = vmul.f32 %v346, %v342
    %v348 = vadd.f32 %v339, %v347
    %v349 = vld [vmem:[#allocation2 + $0x22] sm:$0x1]
    %s350 = scalar_lea.vmem [#allocation5], 136
    %v351 = vld [vmem:[%s350] sm:$0xf]
    %v352 = vlaneseq
    %v353 = vshrl.u32 %v352, 7
    %v354 = vsub.s32 0, %v353
    %v355 = vrot.slane %v349, %v354
    %v356 = vmul.f32 %v355, %v351
    %v357 = vadd.f32 %v348, %v356
    %v358 = vld [vmem:[#allocation2 + $0x23] sm:$0x1]
    %s359 = scalar_lea.vmem [#allocation5], 140
    %v360 = vld [vmem:[%s359] sm:$0xf]
    %v361 = vlaneseq
    %v362 = vshrl.u32 %v361, 7
    %v363 = vsub.s32 0, %v362
    %v364 = vrot.slane %v358, %v363
    %v365 = vmul.f32 %v364, %v360
    %v366 = vadd.f32 %v357, %v365
    %v367 = vld [vmem:[#allocation2 + $0x24] sm:$0x1]
    %s368 = scalar_lea.vmem [#allocation5], 144
    %v369 = vld [vmem:[%s368] sm:$0xf]
    %v370 = vlaneseq
    %v371 = vshrl.u32 %v370, 7
    %v372 = vsub.s32 0, %v371
    %v373 = vrot.slane %v367, %v372
    %v374 = vmul.f32 %v373, %v369
    %v375 = vadd.f32 %v366, %v374
    %v376 = vld [vmem:[#allocation2 + $0x25] sm:$0x1]
    %s377 = scalar_lea.vmem [#allocation5], 148
    %v378 = vld [vmem:[%s377] sm:$0xf]
    %v379 = vlaneseq
    %v380 = vshrl.u32 %v379, 7
    %v381 = vsub.s32 0, %v380
    %v382 = vrot.slane %v376, %v381
    %v383 = vmul.f32 %v382, %v378
    %v384 = vadd.f32 %v375, %v383
    %v385 = vld [vmem:[#allocation2 + $0x26] sm:$0x1]
    %s386 = scalar_lea.vmem [#allocation5], 152
    %v387 = vld [vmem:[%s386] sm:$0xf]
    %v388 = vlaneseq
    %v389 = vshrl.u32 %v388, 7
    %v390 = vsub.s32 0, %v389
    %v391 = vrot.slane %v385, %v390
    %v392 = vmul.f32 %v391, %v387
    %v393 = vadd.f32 %v384, %v392
    %v394 = vld [vmem:[#allocation2 + $0x27] sm:$0x1]
    %s395 = scalar_lea.vmem [#allocation5], 156
    %v396 = vld [vmem:[%s395] sm:$0xf]
    %v397 = vlaneseq
    %v398 = vshrl.u32 %v397, 7
    %v399 = vsub.s32 0, %v398
    %v400 = vrot.slane %v394, %v399
    %v401 = vmul.f32 %v400, %v396
    %v402 = vadd.f32 %v393, %v401
    %v403 = vld [vmem:[#allocation2 + $0x28] sm:$0x1]
    %s404 = scalar_lea.vmem [#allocation5], 160
    %v405 = vld [vmem:[%s404] sm:$0xf]
    %v406 = vlaneseq
    %v407 = vshrl.u32 %v406, 7
    %v408 = vsub.s32 0, %v407
    %v409 = vrot.slane %v403, %v408
    %v410 = vmul.f32 %v409, %v405
    %v411 = vadd.f32 %v402, %v410
    %v412 = vld [vmem:[#allocation2 + $0x29] sm:$0x1]
    %s413 = scalar_lea.vmem [#allocation5], 164
    %v414 = vld [vmem:[%s413] sm:$0xf]
    %v415 = vlaneseq
    %v416 = vshrl.u32 %v415, 7
    %v417 = vsub.s32 0, %v416
    %v418 = vrot.slane %v412, %v417
    %v419 = vmul.f32 %v418, %v414
    %v420 = vadd.f32 %v411, %v419
    %v421 = vld [vmem:[#allocation2 + $0x2a] sm:$0x1]
    %s422 = scalar_lea.vmem [#allocation5], 168
    %v423 = vld [vmem:[%s422] sm:$0xf]
    %v424 = vlaneseq
    %v425 = vshrl.u32 %v424, 7
    %v426 = vsub.s32 0, %v425
    %v427 = vrot.slane %v421, %v426
    %v428 = vmul.f32 %v427, %v423
    %v429 = vadd.f32 %v420, %v428
    %v430 = vld [vmem:[#allocation2 + $0x2b] sm:$0x1]
    %s431 = scalar_lea.vmem [#allocation5], 172
    %v432 = vld [vmem:[%s431] sm:$0xf]
    %v433 = vlaneseq
    %v434 = vshrl.u32 %v433, 7
    %v435 = vsub.s32 0, %v434
    %v436 = vrot.slane %v430, %v435
    %v437 = vmul.f32 %v436, %v432
    %v438 = vadd.f32 %v429, %v437
    %v439 = vld [vmem:[#allocation2 + $0x2c] sm:$0x1]
    %s440 = scalar_lea.vmem [#allocation5], 176
    %v441 = vld [vmem:[%s440] sm:$0xf]
    %v442 = vlaneseq
    %v443 = vshrl.u32 %v442, 7
    %v444 = vsub.s32 0, %v443
    %v445 = vrot.slane %v439, %v444
    %v446 = vmul.f32 %v445, %v441
    %v447 = vadd.f32 %v438, %v446
    %v448 = vld [vmem:[#allocation2 + $0x2d] sm:$0x1]
    %s449 = scalar_lea.vmem [#allocation5], 180
    %v450 = vld [vmem:[%s449] sm:$0xf]
    %v451 = vlaneseq
    %v452 = vshrl.u32 %v451, 7
    %v453 = vsub.s32 0, %v452
    %v454 = vrot.slane %v448, %v453
    %v455 = vmul.f32 %v454, %v450
    %v456 = vadd.f32 %v447, %v455
    %v457 = vld [vmem:[#allocation2 + $0x2e] sm:$0x1]
    %s458 = scalar_lea.vmem [#allocation5], 184
    %v459 = vld [vmem:[%s458] sm:$0xf]
    %v460 = vlaneseq
    %v461 = vshrl.u32 %v460, 7
    %v462 = vsub.s32 0, %v461
    %v463 = vrot.slane %v457, %v462
    %v464 = vmul.f32 %v463, %v459
    %v465 = vadd.f32 %v456, %v464
    %v466 = vld [vmem:[#allocation2 + $0x2f] sm:$0x1]
    %s467 = scalar_lea.vmem [#allocation5], 188
    %v468 = vld [vmem:[%s467] sm:$0xf]
    %v469 = vlaneseq
    %v470 = vshrl.u32 %v469, 7
    %v471 = vsub.s32 0, %v470
    %v472 = vrot.slane %v466, %v471
    %v473 = vmul.f32 %v472, %v468
    %v474 = vadd.f32 %v465, %v473
    %v475 = vld [vmem:[#allocation2 + $0x30] sm:$0x1]
    %s476 = scalar_lea.vmem [#allocation5], 192
    %v477 = vld [vmem:[%s476] sm:$0xf]
    %v478 = vlaneseq
    %v479 = vshrl.u32 %v478, 7
    %v480 = vsub.s32 0, %v479
    %v481 = vrot.slane %v475, %v480
    %v482 = vmul.f32 %v481, %v477
    %v483 = vadd.f32 %v474, %v482
    %v484 = vld [vmem:[#allocation2 + $0x31] sm:$0x1]
    %s485 = scalar_lea.vmem [#allocation5], 196
    %v486 = vld [vmem:[%s485] sm:$0xf]
    %v487 = vlaneseq
    %v488 = vshrl.u32 %v487, 7
    %v489 = vsub.s32 0, %v488
    %v490 = vrot.slane %v484, %v489
    %v491 = vmul.f32 %v490, %v486
    %v492 = vadd.f32 %v483, %v491
    %v493 = vld [vmem:[#allocation2 + $0x32] sm:$0x1]
    %s494 = scalar_lea.vmem [#allocation5], 200
    %v495 = vld [vmem:[%s494] sm:$0xf]
    %v496 = vlaneseq
    %v497 = vshrl.u32 %v496, 7
    %v498 = vsub.s32 0, %v497
    %v499 = vrot.slane %v493, %v498
    %v500 = vmul.f32 %v499, %v495
    %v501 = vadd.f32 %v492, %v500
    %v502 = vld [vmem:[#allocation2 + $0x33] sm:$0x1]
    %s503 = scalar_lea.vmem [#allocation5], 204
    %v504 = vld [vmem:[%s503] sm:$0xf]
    %v505 = vlaneseq
    %v506 = vshrl.u32 %v505, 7
    %v507 = vsub.s32 0, %v506
    %v508 = vrot.slane %v502, %v507
    %v509 = vmul.f32 %v508, %v504
    %v510 = vadd.f32 %v501, %v509
    %v511 = vld [vmem:[#allocation2 + $0x34] sm:$0x1]
    %s512 = scalar_lea.vmem [#allocation5], 208
    %v513 = vld [vmem:[%s512] sm:$0xf]
    %v514 = vlaneseq
    %v515 = vshrl.u32 %v514, 7
    %v516 = vsub.s32 0, %v515
    %v517 = vrot.slane %v511, %v516
    %v518 = vmul.f32 %v517, %v513
    %v519 = vadd.f32 %v510, %v518
    %v520 = vld [vmem:[#allocation2 + $0x35] sm:$0x1]
    %s521 = scalar_lea.vmem [#allocation5], 212
    %v522 = vld [vmem:[%s521] sm:$0xf]
    %v523 = vlaneseq
    %v524 = vshrl.u32 %v523, 7
    %v525 = vsub.s32 0, %v524
    %v526 = vrot.slane %v520, %v525
    %v527 = vmul.f32 %v526, %v522
    %v528 = vadd.f32 %v519, %v527
    %v529 = vld [vmem:[#allocation2 + $0x36] sm:$0x1]
    %s530 = scalar_lea.vmem [#allocation5], 216
    %v531 = vld [vmem:[%s530] sm:$0xf]
    %v532 = vlaneseq
    %v533 = vshrl.u32 %v532, 7
    %v534 = vsub.s32 0, %v533
    %v535 = vrot.slane %v529, %v534
    %v536 = vmul.f32 %v535, %v531
    %v537 = vadd.f32 %v528, %v536
    %v538 = vld [vmem:[#allocation2 + $0x37] sm:$0x1]
    %s539 = scalar_lea.vmem [#allocation5], 220
    %v540 = vld [vmem:[%s539] sm:$0xf]
    %v541 = vlaneseq
    %v542 = vshrl.u32 %v541, 7
    %v543 = vsub.s32 0, %v542
    %v544 = vrot.slane %v538, %v543
    %v545 = vmul.f32 %v544, %v540
    %v546 = vadd.f32 %v537, %v545
    %v547 = vld [vmem:[#allocation2 + $0x38] sm:$0x1]
    %s548 = scalar_lea.vmem [#allocation5], 224
    %v549 = vld [vmem:[%s548] sm:$0xf]
    %v550 = vlaneseq
    %v551 = vshrl.u32 %v550, 7
    %v552 = vsub.s32 0, %v551
    %v553 = vrot.slane %v547, %v552
    %v554 = vmul.f32 %v553, %v549
    %v555 = vadd.f32 %v546, %v554
    %v556 = vld [vmem:[#allocation2 + $0x39] sm:$0x1]
    %s557 = scalar_lea.vmem [#allocation5], 228
    %v558 = vld [vmem:[%s557] sm:$0xf]
    %v559 = vlaneseq
    %v560 = vshrl.u32 %v559, 7
    %v561 = vsub.s32 0, %v560
    %v562 = vrot.slane %v556, %v561
    %v563 = vmul.f32 %v562, %v558
    %v564 = vadd.f32 %v555, %v563
    %v565 = vld [vmem:[#allocation2 + $0x3a] sm:$0x1]
    %s566 = scalar_lea.vmem [#allocation5], 232
    %v567 = vld [vmem:[%s566] sm:$0xf]
    %v568 = vlaneseq
    %v569 = vshrl.u32 %v568, 7
    %v570 = vsub.s32 0, %v569
    %v571 = vrot.slane %v565, %v570
    %v572 = vmul.f32 %v571, %v567
    %v573 = vadd.f32 %v564, %v572
    %v574 = vld [vmem:[#allocation2 + $0x3b] sm:$0x1]
    %s575 = scalar_lea.vmem [#allocation5], 236
    %v576 = vld [vmem:[%s575] sm:$0xf]
    %v577 = vlaneseq
    %v578 = vshrl.u32 %v577, 7
    %v579 = vsub.s32 0, %v578
    %v580 = vrot.slane %v574, %v579
    %v581 = vmul.f32 %v580, %v576
    %v582 = vadd.f32 %v573, %v581
    %v583 = vld [vmem:[#allocation2 + $0x3c] sm:$0x1]
    %s584 = scalar_lea.vmem [#allocation5], 240
    %v585 = vld [vmem:[%s584] sm:$0xf]
    %v586 = vlaneseq
    %v587 = vshrl.u32 %v586, 7
    %v588 = vsub.s32 0, %v587
    %v589 = vrot.slane %v583, %v588
    %v590 = vmul.f32 %v589, %v585
    %v591 = vadd.f32 %v582, %v590
    %v592 = vld [vmem:[#allocation2 + $0x3d] sm:$0x1]
    %s593 = scalar_lea.vmem [#allocation5], 244
    %v594 = vld [vmem:[%s593] sm:$0xf]
    %v595 = vlaneseq
    %v596 = vshrl.u32 %v595, 7
    %v597 = vsub.s32 0, %v596
    %v598 = vrot.slane %v592, %v597
    %v599 = vmul.f32 %v598, %v594
    %v600 = vadd.f32 %v591, %v599
    %v601 = vld [vmem:[#allocation2 + $0x3e] sm:$0x1]
    %s602 = scalar_lea.vmem [#allocation5], 248
    %v603 = vld [vmem:[%s602] sm:$0xf]
    %v604 = vlaneseq
    %v605 = vshrl.u32 %v604, 7
    %v606 = vsub.s32 0, %v605
    %v607 = vrot.slane %v601, %v606
    %v608 = vmul.f32 %v607, %v603
    %v609 = vadd.f32 %v600, %v608
    %v610 = vld [vmem:[#allocation2 + $0x3f] sm:$0x1]
    %s611 = scalar_lea.vmem [#allocation5], 252
    %v612 = vld [vmem:[%s611] sm:$0xf]
    %v613 = vlaneseq
    %v614 = vshrl.u32 %v613, 7
    %v615 = vsub.s32 0, %v614
    %v616 = vrot.slane %v610, %v615
    %v617 = vmul.f32 %v616, %v612
    %v618 = vadd.f32 %v609, %v617
    %619 = vst [vmem:[#allocation7] sm:$0xf] %v618
    %s620 = scalar_lea.vmem [#allocation2], 64
    %v621 = vld [vmem:[%s620] sm:$0x1]
    %v622 = vld [vmem:[#allocation5] sm:$0xf]
    %v623 = vlaneseq
    %v624 = vshrl.u32 %v623, 7
    %v625 = vsub.s32 0, %v624
    %v626 = vrot.slane %v621, %v625
    %v627 = vmul.f32 %v626, %v622
    %v628 = vadd.f32 %v43, %v627
    %v629 = vld [vmem:[%s620 + $0x1] sm:$0x1]
    %v630 = vld [vmem:[%s53] sm:$0xf]
    %v631 = vlaneseq
    %v632 = vshrl.u32 %v631, 7
    %v633 = vsub.s32 0, %v632
    %v634 = vrot.slane %v629, %v633
    %v635 = vmul.f32 %v634, %v630
    %v636 = vadd.f32 %v628, %v635
    %v637 = vld [vmem:[%s620 + $0x2] sm:$0x1]
    %v638 = vld [vmem:[%s62] sm:$0xf]
    %v639 = vlaneseq
    %v640 = vshrl.u32 %v639, 7
    %v641 = vsub.s32 0, %v640
    %v642 = vrot.slane %v637, %v641
    %v643 = vmul.f32 %v642, %v638
    %v644 = vadd.f32 %v636, %v643
    %v645 = vld [vmem:[%s620 + $0x3] sm:$0x1]
    %v646 = vld [vmem:[%s71] sm:$0xf]
    %v647 = vlaneseq
    %v648 = vshrl.u32 %v647, 7
    %v649 = vsub.s32 0, %v648
    %v650 = vrot.slane %v645, %v649
    %v651 = vmul.f32 %v650, %v646
    %v652 = vadd.f32 %v644, %v651
    %v653 = vld [vmem:[%s620 + $0x4] sm:$0x1]
    %v654 = vld [vmem:[%s80] sm:$0xf]
    %v655 = vlaneseq
    %v656 = vshrl.u32 %v655, 7
    %v657 = vsub.s32 0, %v656
    %v658 = vrot.slane %v653, %v657
    %v659 = vmul.f32 %v658, %v654
    %v660 = vadd.f32 %v652, %v659
    %v661 = vld [vmem:[%s620 + $0x5] sm:$0x1]
    %v662 = vld [vmem:[%s89] sm:$0xf]
    %v663 = vlaneseq
    %v664 = vshrl.u32 %v663, 7
    %v665 = vsub.s32 0, %v664
    %v666 = vrot.slane %v661, %v665
    %v667 = vmul.f32 %v666, %v662
    %v668 = vadd.f32 %v660, %v667
    %v669 = vld [vmem:[%s620 + $0x6] sm:$0x1]
    %v670 = vld [vmem:[%s98] sm:$0xf]
    %v671 = vlaneseq
    %v672 = vshrl.u32 %v671, 7
    %v673 = vsub.s32 0, %v672
    %v674 = vrot.slane %v669, %v673
    %v675 = vmul.f32 %v674, %v670
    %v676 = vadd.f32 %v668, %v675
    %v677 = vld [vmem:[%s620 + $0x7] sm:$0x1]
    %v678 = vld [vmem:[%s107] sm:$0xf]
    %v679 = vlaneseq
    %v680 = vshrl.u32 %v679, 7
    %v681 = vsub.s32 0, %v680
    %v682 = vrot.slane %v677, %v681
    %v683 = vmul.f32 %v682, %v678
    %v684 = vadd.f32 %v676, %v683
    %v685 = vld [vmem:[%s620 + $0x8] sm:$0x1]
    %v686 = vld [vmem:[%s116] sm:$0xf]
    %v687 = vlaneseq
    %v688 = vshrl.u32 %v687, 7
    %v689 = vsub.s32 0, %v688
    %v690 = vrot.slane %v685, %v689
    %v691 = vmul.f32 %v690, %v686
    %v692 = vadd.f32 %v684, %v691
    %v693 = vld [vmem:[%s620 + $0x9] sm:$0x1]
    %v694 = vld [vmem:[%s125] sm:$0xf]
    %v695 = vlaneseq
    %v696 = vshrl.u32 %v695, 7
    %v697 = vsub.s32 0, %v696
    %v698 = vrot.slane %v693, %v697
    %v699 = vmul.f32 %v698, %v694
    %v700 = vadd.f32 %v692, %v699
    %v701 = vld [vmem:[%s620 + $0xa] sm:$0x1]
    %v702 = vld [vmem:[%s134] sm:$0xf]
    %v703 = vlaneseq
    %v704 = vshrl.u32 %v703, 7
    %v705 = vsub.s32 0, %v704
    %v706 = vrot.slane %v701, %v705
    %v707 = vmul.f32 %v706, %v702
    %v708 = vadd.f32 %v700, %v707
    %v709 = vld [vmem:[%s620 + $0xb] sm:$0x1]
    %v710 = vld [vmem:[%s143] sm:$0xf]
    %v711 = vlaneseq
    %v712 = vshrl.u32 %v711, 7
    %v713 = vsub.s32 0, %v712
    %v714 = vrot.slane %v709, %v713
    %v715 = vmul.f32 %v714, %v710
    %v716 = vadd.f32 %v708, %v715
    %v717 = vld [vmem:[%s620 + $0xc] sm:$0x1]
    %v718 = vld [vmem:[%s152] sm:$0xf]
    %v719 = vlaneseq
    %v720 = vshrl.u32 %v719, 7
    %v721 = vsub.s32 0, %v720
    %v722 = vrot.slane %v717, %v721
    %v723 = vmul.f32 %v722, %v718
    %v724 = vadd.f32 %v716, %v723
    %v725 = vld [vmem:[%s620 + $0xd] sm:$0x1]
    %v726 = vld [vmem:[%s161] sm:$0xf]
    %v727 = vlaneseq
    %v728 = vshrl.u32 %v727, 7
    %v729 = vsub.s32 0, %v728
    %v730 = vrot.slane %v725, %v729
    %v731 = vmul.f32 %v730, %v726
    %v732 = vadd.f32 %v724, %v731
    %v733 = vld [vmem:[%s620 + $0xe] sm:$0x1]
    %v734 = vld [vmem:[%s170] sm:$0xf]
    %v735 = vlaneseq
    %v736 = vshrl.u32 %v735, 7
    %v737 = vsub.s32 0, %v736
    %v738 = vrot.slane %v733, %v737
    %v739 = vmul.f32 %v738, %v734
    %v740 = vadd.f32 %v732, %v739
    %v741 = vld [vmem:[%s620 + $0xf] sm:$0x1]
    %v742 = vld [vmem:[%s179] sm:$0xf]
    %v743 = vlaneseq
    %v744 = vshrl.u32 %v743, 7
    %v745 = vsub.s32 0, %v744
    %v746 = vrot.slane %v741, %v745
    %v747 = vmul.f32 %v746, %v742
    %v748 = vadd.f32 %v740, %v747
    %v749 = vld [vmem:[%s620 + $0x10] sm:$0x1]
    %v750 = vld [vmem:[%s188] sm:$0xf]
    %v751 = vlaneseq
    %v752 = vshrl.u32 %v751, 7
    %v753 = vsub.s32 0, %v752
    %v754 = vrot.slane %v749, %v753
    %v755 = vmul.f32 %v754, %v750
    %v756 = vadd.f32 %v748, %v755
    %v757 = vld [vmem:[%s620 + $0x11] sm:$0x1]
    %v758 = vld [vmem:[%s197] sm:$0xf]
    %v759 = vlaneseq
    %v760 = vshrl.u32 %v759, 7
    %v761 = vsub.s32 0, %v760
    %v762 = vrot.slane %v757, %v761
    %v763 = vmul.f32 %v762, %v758
    %v764 = vadd.f32 %v756, %v763
    %v765 = vld [vmem:[%s620 + $0x12] sm:$0x1]
    %v766 = vld [vmem:[%s206] sm:$0xf]
    %v767 = vlaneseq
    %v768 = vshrl.u32 %v767, 7
    %v769 = vsub.s32 0, %v768
    %v770 = vrot.slane %v765, %v769
    %v771 = vmul.f32 %v770, %v766
    %v772 = vadd.f32 %v764, %v771
    %v773 = vld [vmem:[%s620 + $0x13] sm:$0x1]
    %v774 = vld [vmem:[%s215] sm:$0xf]
    %v775 = vlaneseq
    %v776 = vshrl.u32 %v775, 7
    %v777 = vsub.s32 0, %v776
    %v778 = vrot.slane %v773, %v777
    %v779 = vmul.f32 %v778, %v774
    %v780 = vadd.f32 %v772, %v779
    %v781 = vld [vmem:[%s620 + $0x14] sm:$0x1]
    %v782 = vld [vmem:[%s224] sm:$0xf]
    %v783 = vlaneseq
    %v784 = vshrl.u32 %v783, 7
    %v785 = vsub.s32 0, %v784
    %v786 = vrot.slane %v781, %v785
    %v787 = vmul.f32 %v786, %v782
    %v788 = vadd.f32 %v780, %v787
    %v789 = vld [vmem:[%s620 + $0x15] sm:$0x1]
    %v790 = vld [vmem:[%s233] sm:$0xf]
    %v791 = vlaneseq
    %v792 = vshrl.u32 %v791, 7
    %v793 = vsub.s32 0, %v792
    %v794 = vrot.slane %v789, %v793
    %v795 = vmul.f32 %v794, %v790
    %v796 = vadd.f32 %v788, %v795
    %v797 = vld [vmem:[%s620 + $0x16] sm:$0x1]
    %v798 = vld [vmem:[%s242] sm:$0xf]
    %v799 = vlaneseq
    %v800 = vshrl.u32 %v799, 7
    %v801 = vsub.s32 0, %v800
    %v802 = vrot.slane %v797, %v801
    %v803 = vmul.f32 %v802, %v798
    %v804 = vadd.f32 %v796, %v803
    %v805 = vld [vmem:[%s620 + $0x17] sm:$0x1]
    %v806 = vld [vmem:[%s251] sm:$0xf]
    %v807 = vlaneseq
    %v808 = vshrl.u32 %v807, 7
    %v809 = vsub.s32 0, %v808
    %v810 = vrot.slane %v805, %v809
    %v811 = vmul.f32 %v810, %v806
    %v812 = vadd.f32 %v804, %v811
    %v813 = vld [vmem:[%s620 + $0x18] sm:$0x1]
    %v814 = vld [vmem:[%s260] sm:$0xf]
    %v815 = vlaneseq
    %v816 = vshrl.u32 %v815, 7
    %v817 = vsub.s32 0, %v816
    %v818 = vrot.slane %v813, %v817
    %v819 = vmul.f32 %v818, %v814
    %v820 = vadd.f32 %v812, %v819
    %v821 = vld [vmem:[%s620 + $0x19] sm:$0x1]
    %v822 = vld [vmem:[%s269] sm:$0xf]
    %v823 = vlaneseq
    %v824 = vshrl.u32 %v823, 7
    %v825 = vsub.s32 0, %v824
    %v826 = vrot.slane %v821, %v825
    %v827 = vmul.f32 %v826, %v822
    %v828 = vadd.f32 %v820, %v827
    %v829 = vld [vmem:[%s620 + $0x1a] sm:$0x1]
    %v830 = vld [vmem:[%s278] sm:$0xf]
    %v831 = vlaneseq
    %v832 = vshrl.u32 %v831, 7
    %v833 = vsub.s32 0, %v832
    %v834 = vrot.slane %v829, %v833
    %v835 = vmul.f32 %v834, %v830
    %v836 = vadd.f32 %v828, %v835
    %v837 = vld [vmem:[%s620 + $0x1b] sm:$0x1]
    %v838 = vld [vmem:[%s287] sm:$0xf]
    %v839 = vlaneseq
    %v840 = vshrl.u32 %v839, 7
    %v841 = vsub.s32 0, %v840
    %v842 = vrot.slane %v837, %v841
    %v843 = vmul.f32 %v842, %v838
    %v844 = vadd.f32 %v836, %v843
    %v845 = vld [vmem:[%s620 + $0x1c] sm:$0x1]
    %v846 = vld [vmem:[%s296] sm:$0xf]
    %v847 = vlaneseq
    %v848 = vshrl.u32 %v847, 7
    %v849 = vsub.s32 0, %v848
    %v850 = vrot.slane %v845, %v849
    %v851 = vmul.f32 %v850, %v846
    %v852 = vadd.f32 %v844, %v851
    %v853 = vld [vmem:[%s620 + $0x1d] sm:$0x1]
    %v854 = vld [vmem:[%s305] sm:$0xf]
    %v855 = vlaneseq
    %v856 = vshrl.u32 %v855, 7
    %v857 = vsub.s32 0, %v856
    %v858 = vrot.slane %v853, %v857
    %v859 = vmul.f32 %v858, %v854
    %v860 = vadd.f32 %v852, %v859
    %v861 = vld [vmem:[%s620 + $0x1e] sm:$0x1]
    %v862 = vld [vmem:[%s314] sm:$0xf]
    %v863 = vlaneseq
    %v864 = vshrl.u32 %v863, 7
    %v865 = vsub.s32 0, %v864
    %v866 = vrot.slane %v861, %v865
    %v867 = vmul.f32 %v866, %v862
    %v868 = vadd.f32 %v860, %v867
    %v869 = vld [vmem:[%s620 + $0x1f] sm:$0x1]
    %v870 = vld [vmem:[%s323] sm:$0xf]
    %v871 = vlaneseq
    %v872 = vshrl.u32 %v871, 7
    %v873 = vsub.s32 0, %v872
    %v874 = vrot.slane %v869, %v873
    %v875 = vmul.f32 %v874, %v870
    %v876 = vadd.f32 %v868, %v875
    %v877 = vld [vmem:[%s620 + $0x20] sm:$0x1]
    %v878 = vld [vmem:[%s332] sm:$0xf]
    %v879 = vlaneseq
    %v880 = vshrl.u32 %v879, 7
    %v881 = vsub.s32 0, %v880
    %v882 = vrot.slane %v877, %v881
    %v883 = vmul.f32 %v882, %v878
    %v884 = vadd.f32 %v876, %v883
    %v885 = vld [vmem:[%s620 + $0x21] sm:$0x1]
    %v886 = vld [vmem:[%s341] sm:$0xf]
    %v887 = vlaneseq
    %v888 = vshrl.u32 %v887, 7
    %v889 = vsub.s32 0, %v888
    %v890 = vrot.slane %v885, %v889
    %v891 = vmul.f32 %v890, %v886
    %v892 = vadd.f32 %v884, %v891
    %v893 = vld [vmem:[%s620 + $0x22] sm:$0x1]
    %v894 = vld [vmem:[%s350] sm:$0xf]
    %v895 = vlaneseq
    %v896 = vshrl.u32 %v895, 7
    %v897 = vsub.s32 0, %v896
    %v898 = vrot.slane %v893, %v897
    %v899 = vmul.f32 %v898, %v894
    %v900 = vadd.f32 %v892, %v899
    %v901 = vld [vmem:[%s620 + $0x23] sm:$0x1]
    %v902 = vld [vmem:[%s359] sm:$0xf]
    %v903 = vlaneseq
    %v904 = vshrl.u32 %v903, 7
    %v905 = vsub.s32 0, %v904
    %v906 = vrot.slane %v901, %v905
    %v907 = vmul.f32 %v906, %v902
    %v908 = vadd.f32 %v900, %v907
    %v909 = vld [vmem:[%s620 + $0x24] sm:$0x1]
    %v910 = vld [vmem:[%s368] sm:$0xf]
    %v911 = vlaneseq
    %v912 = vshrl.u32 %v911, 7
    %v913 = vsub.s32 0, %v912
    %v914 = vrot.slane %v909, %v913
    %v915 = vmul.f32 %v914, %v910
    %v916 = vadd.f32 %v908, %v915
    %v917 = vld [vmem:[%s620 + $0x25] sm:$0x1]
    %v918 = vld [vmem:[%s377] sm:$0xf]
    %v919 = vlaneseq
    %v920 = vshrl.u32 %v919, 7
    %v921 = vsub.s32 0, %v920
    %v922 = vrot.slane %v917, %v921
    %v923 = vmul.f32 %v922, %v918
    %v924 = vadd.f32 %v916, %v923
    %v925 = vld [vmem:[%s620 + $0x26] sm:$0x1]
    %v926 = vld [vmem:[%s386] sm:$0xf]
    %v927 = vlaneseq
    %v928 = vshrl.u32 %v927, 7
    %v929 = vsub.s32 0, %v928
    %v930 = vrot.slane %v925, %v929
    %v931 = vmul.f32 %v930, %v926
    %v932 = vadd.f32 %v924, %v931
    %v933 = vld [vmem:[%s620 + $0x27] sm:$0x1]
    %v934 = vld [vmem:[%s395] sm:$0xf]
    %v935 = vlaneseq
    %v936 = vshrl.u32 %v935, 7
    %v937 = vsub.s32 0, %v936
    %v938 = vrot.slane %v933, %v937
    %v939 = vmul.f32 %v938, %v934
    %v940 = vadd.f32 %v932, %v939
    %v941 = vld [vmem:[%s620 + $0x28] sm:$0x1]
    %v942 = vld [vmem:[%s404] sm:$0xf]
    %v943 = vlaneseq
    %v944 = vshrl.u32 %v943, 7
    %v945 = vsub.s32 0, %v944
    %v946 = vrot.slane %v941, %v945
    %v947 = vmul.f32 %v946, %v942
    %v948 = vadd.f32 %v940, %v947
    %v949 = vld [vmem:[%s620 + $0x29] sm:$0x1]
    %v950 = vld [vmem:[%s413] sm:$0xf]
    %v951 = vlaneseq
    %v952 = vshrl.u32 %v951, 7
    %v953 = vsub.s32 0, %v952
    %v954 = vrot.slane %v949, %v953
    %v955 = vmul.f32 %v954, %v950
    %v956 = vadd.f32 %v948, %v955
    %v957 = vld [vmem:[%s620 + $0x2a] sm:$0x1]
    %v958 = vld [vmem:[%s422] sm:$0xf]
    %v959 = vlaneseq
    %v960 = vshrl.u32 %v959, 7
    %v961 = vsub.s32 0, %v960
    %v962 = vrot.slane %v957, %v961
    %v963 = vmul.f32 %v962, %v958
    %v964 = vadd.f32 %v956, %v963
    %v965 = vld [vmem:[%s620 + $0x2b] sm:$0x1]
    %v966 = vld [vmem:[%s431] sm:$0xf]
    %v967 = vlaneseq
    %v968 = vshrl.u32 %v967, 7
    %v969 = vsub.s32 0, %v968
    %v970 = vrot.slane %v965, %v969
    %v971 = vmul.f32 %v970, %v966
    %v972 = vadd.f32 %v964, %v971
    %v973 = vld [vmem:[%s620 + $0x2c] sm:$0x1]
    %v974 = vld [vmem:[%s440] sm:$0xf]
    %v975 = vlaneseq
    %v976 = vshrl.u32 %v975, 7
    %v977 = vsub.s32 0, %v976
    %v978 = vrot.slane %v973, %v977
    %v979 = vmul.f32 %v978, %v974
    %v980 = vadd.f32 %v972, %v979
    %v981 = vld [vmem:[%s620 + $0x2d] sm:$0x1]
    %v982 = vld [vmem:[%s449] sm:$0xf]
    %v983 = vlaneseq
    %v984 = vshrl.u32 %v983, 7
    %v985 = vsub.s32 0, %v984
    %v986 = vrot.slane %v981, %v985
    %v987 = vmul.f32 %v986, %v982
    %v988 = vadd.f32 %v980, %v987
    %v989 = vld [vmem:[%s620 + $0x2e] sm:$0x1]
    %v990 = vld [vmem:[%s458] sm:$0xf]
    %v991 = vlaneseq
    %v992 = vshrl.u32 %v991, 7
    %v993 = vsub.s32 0, %v992
    %v994 = vrot.slane %v989, %v993
    %v995 = vmul.f32 %v994, %v990
    %v996 = vadd.f32 %v988, %v995
    %v997 = vld [vmem:[%s620 + $0x2f] sm:$0x1]
    %v998 = vld [vmem:[%s467] sm:$0xf]
    %v999 = vlaneseq
    %v1000 = vshrl.u32 %v999, 7
    %v1001 = vsub.s32 0, %v1000
    %v1002 = vrot.slane %v997, %v1001
    %v1003 = vmul.f32 %v1002, %v998
    %v1004 = vadd.f32 %v996, %v1003
    %v1005 = vld [vmem:[%s620 + $0x30] sm:$0x1]
    %v1006 = vld [vmem:[%s476] sm:$0xf]
    %v1007 = vlaneseq
    %v1008 = vshrl.u32 %v1007, 7
    %v1009 = vsub.s32 0, %v1008
    %v1010 = vrot.slane %v1005, %v1009
    %v1011 = vmul.f32 %v1010, %v1006
    %v1012 = vadd.f32 %v1004, %v1011
    %v1013 = vld [vmem:[%s620 + $0x31] sm:$0x1]
    %v1014 = vld [vmem:[%s485] sm:$0xf]
    %v1015 = vlaneseq
    %v1016 = vshrl.u32 %v1015, 7
    %v1017 = vsub.s32 0, %v1016
    %v1018 = vrot.slane %v1013, %v1017
    %v1019 = vmul.f32 %v1018, %v1014
    %v1020 = vadd.f32 %v1012, %v1019
    %v1021 = vld [vmem:[%s620 + $0x32] sm:$0x1]
    %v1022 = vld [vmem:[%s494] sm:$0xf]
    %v1023 = vlaneseq
    %v1024 = vshrl.u32 %v1023, 7
    %v1025 = vsub.s32 0, %v1024
    %v1026 = vrot.slane %v1021, %v1025
    %v1027 = vmul.f32 %v1026, %v1022
    %v1028 = vadd.f32 %v1020, %v1027
    %v1029 = vld [vmem:[%s620 + $0x33] sm:$0x1]
    %v1030 = vld [vmem:[%s503] sm:$0xf]
    %v1031 = vlaneseq
    %v1032 = vshrl.u32 %v1031, 7
    %v1033 = vsub.s32 0, %v1032
    %v1034 = vrot.slane %v1029, %v1033
    %v1035 = vmul.f32 %v1034, %v1030
    %v1036 = vadd.f32 %v1028, %v1035
    %v1037 = vld [vmem:[%s620 + $0x34] sm:$0x1]
    %v1038 = vld [vmem:[%s512] sm:$0xf]
    %v1039 = vlaneseq
    %v1040 = vshrl.u32 %v1039, 7
    %v1041 = vsub.s32 0, %v1040
    %v1042 = vrot.slane %v1037, %v1041
    %v1043 = vmul.f32 %v1042, %v1038
    %v1044 = vadd.f32 %v1036, %v1043
    %v1045 = vld [vmem:[%s620 + $0x35] sm:$0x1]
    %v1046 = vld [vmem:[%s521] sm:$0xf]
    %v1047 = vlaneseq
    %v1048 = vshrl.u32 %v1047, 7
    %v1049 = vsub.s32 0, %v1048
    %v1050 = vrot.slane %v1045, %v1049
    %v1051 = vmul.f32 %v1050, %v1046
    %v1052 = vadd.f32 %v1044, %v1051
    %v1053 = vld [vmem:[%s620 + $0x36] sm:$0x1]
    %v1054 = vld [vmem:[%s530] sm:$0xf]
    %v1055 = vlaneseq
    %v1056 = vshrl.u32 %v1055, 7
    %v1057 = vsub.s32 0, %v1056
    %v1058 = vrot.slane %v1053, %v1057
    %v1059 = vmul.f32 %v1058, %v1054
    %v1060 = vadd.f32 %v1052, %v1059
    %v1061 = vld [vmem:[%s620 + $0x37] sm:$0x1]
    %v1062 = vld [vmem:[%s539] sm:$0xf]
    %v1063 = vlaneseq
    %v1064 = vshrl.u32 %v1063, 7
    %v1065 = vsub.s32 0, %v1064
    %v1066 = vrot.slane %v1061, %v1065
    %v1067 = vmul.f32 %v1066, %v1062
    %v1068 = vadd.f32 %v1060, %v1067
    %v1069 = vld [vmem:[%s620 + $0x38] sm:$0x1]
    %v1070 = vld [vmem:[%s548] sm:$0xf]
    %v1071 = vlaneseq
    %v1072 = vshrl.u32 %v1071, 7
    %v1073 = vsub.s32 0, %v1072
    %v1074 = vrot.slane %v1069, %v1073
    %v1075 = vmul.f32 %v1074, %v1070
    %v1076 = vadd.f32 %v1068, %v1075
    %v1077 = vld [vmem:[%s620 + $0x39] sm:$0x1]
    %v1078 = vld [vmem:[%s557] sm:$0xf]
    %v1079 = vlaneseq
    %v1080 = vshrl.u32 %v1079, 7
    %v1081 = vsub.s32 0, %v1080
    %v1082 = vrot.slane %v1077, %v1081
    %v1083 = vmul.f32 %v1082, %v1078
    %v1084 = vadd.f32 %v1076, %v1083
    %v1085 = vld [vmem:[%s620 + $0x3a] sm:$0x1]
    %v1086 = vld [vmem:[%s566] sm:$0xf]
    %v1087 = vlaneseq
    %v1088 = vshrl.u32 %v1087, 7
    %v1089 = vsub.s32 0, %v1088
    %v1090 = vrot.slane %v1085, %v1089
    %v1091 = vmul.f32 %v1090, %v1086
    %v1092 = vadd.f32 %v1084, %v1091
    %v1093 = vld [vmem:[%s620 + $0x3b] sm:$0x1]
    %v1094 = vld [vmem:[%s575] sm:$0xf]
    %v1095 = vlaneseq
    %v1096 = vshrl.u32 %v1095, 7
    %v1097 = vsub.s32 0, %v1096
    %v1098 = vrot.slane %v1093, %v1097
    %v1099 = vmul.f32 %v1098, %v1094
    %v1100 = vadd.f32 %v1092, %v1099
    %v1101 = vld [vmem:[%s620 + $0x3c] sm:$0x1]
    %v1102 = vld [vmem:[%s584] sm:$0xf]
    %v1103 = vlaneseq
    %v1104 = vshrl.u32 %v1103, 7
    %v1105 = vsub.s32 0, %v1104
    %v1106 = vrot.slane %v1101, %v1105
    %v1107 = vmul.f32 %v1106, %v1102
    %v1108 = vadd.f32 %v1100, %v1107
    %v1109 = vld [vmem:[%s620 + $0x3d] sm:$0x1]
    %v1110 = vld [vmem:[%s593] sm:$0xf]
    %v1111 = vlaneseq
    %v1112 = vshrl.u32 %v1111, 7
    %v1113 = vsub.s32 0, %v1112
    %v1114 = vrot.slane %v1109, %v1113
    %v1115 = vmul.f32 %v1114, %v1110
    %v1116 = vadd.f32 %v1108, %v1115
    %v1117 = vld [vmem:[%s620 + $0x3e] sm:$0x1]
    %v1118 = vld [vmem:[%s602] sm:$0xf]
    %v1119 = vlaneseq
    %v1120 = vshrl.u32 %v1119, 7
    %v1121 = vsub.s32 0, %v1120
    %v1122 = vrot.slane %v1117, %v1121
    %v1123 = vmul.f32 %v1122, %v1118
    %v1124 = vadd.f32 %v1116, %v1123
    %v1125 = vld [vmem:[%s620 + $0x3f] sm:$0x1]
    %v1126 = vld [vmem:[%s611] sm:$0xf]
    %v1127 = vlaneseq
    %v1128 = vshrl.u32 %v1127, 7
    %v1129 = vsub.s32 0, %v1128
    %v1130 = vrot.slane %v1125, %v1129
    %v1131 = vmul.f32 %v1130, %v1126
    %v1132 = vadd.f32 %v1124, %v1131
    %s1133 = scalar_lea.vmem [#allocation7], 4
    %1134 = vst [vmem:[%s1133] sm:$0xf] %v1132
    // Predicated region
    $region22: #{tpu_custom_call.1} parent=1 // pred_check
      _
    $region23: #{tpu_custom_call.1} parent=1 // pred_check_branch
      %1136 = sbr.rel (0) target = $region25
    $region24: #{tpu_custom_call.1} parent=1 // pred_region
      %s1138 = ssub.s32 128, 128
      %1139 = vsyncadd [#allocation4], %s1138
      %s1140 = sshll.u32 [#allocation7], 4
      %s1141 = int_to_ptr.vmem [resolvable:$true] %s1140
      %1146 = dma.vmem_to_hbm [thread:$0]  %s1141, 128, %s3, [#allocation4], 64, 64, 4
    $region25: #{tpu_custom_call.1} parent=1 // pred_fallthru
      _
    // Predicated region
    $region26: #{tpu_custom_call.1} parent=1 // pred_check
      _
    $region27: #{tpu_custom_call.1} parent=1 // pred_check_branch
      %1148 = sbr.rel (0) target = $region29
    $region28: #{tpu_custom_call.1} parent=1 // pred_region
      %1149 = dma.done [#allocation4], 128
    $region29: #{tpu_custom_call.1} parent=1 // pred_fallthru
      _
    %1150 = vsyncpa [#allocation3], 1
    %1151 = vsyncpa [#allocation6], 1
    %1152 = vsyncpa [#allocation4], 1

</llo_original>
